<compile_context>
chip_gen: v7x
topology: tpu7x:2x2x1
jax: 0.10.0
libtpu: 0.0.40
codegen_flags: <defaults>
</compile_context>

<pallas_src>
import numpy as np

import jax
import jax.numpy as jnp
from jax.experimental import pallas as pl
from jax.experimental.pallas import tpu as pltpu


# ----------------------------------------------------------------------------
# Bilinear interpolation matrix (align_corners=True), built at trace time.
# Used for the width axis (dense, tiny) and for the pure-JAX reference.
# ----------------------------------------------------------------------------
def _bilinear_matrix(n_out, n_in):
    if n_out == 1 or n_in == 1:
        m = np.zeros((n_out, n_in), np.float32)
        m[:, 0] = 1.0
        return m
    src = np.arange(n_out, dtype=np.float64) * (n_in - 1) / (n_out - 1)
    lo = np.minimum(np.floor(src).astype(np.int64), n_in - 2)
    frac = src - lo
    m = np.zeros((n_out, n_in), np.float64)
    m[np.arange(n_out), lo] += 1.0 - frac
    m[np.arange(n_out), lo + 1] += frac
    return m.astype(np.float32)


def _pick_tile_h(h, w, target_pixels):
    th = max(1, min(h, max(1, target_pixels // max(w, 1))))
    while h % th:
        th -= 1
    return th


# ----------------------------------------------------------------------------
# Fused decoder forward. Output is NHWC (N, H, W, 128) float32.
# ----------------------------------------------------------------------------
def decoder_mlfn_forward(conv2_2, conv3_3, conv5_x, params, target_tile_pixels=2048):
    n, c2, h, w = conv2_2.shape
    _, c3, h3, w3 = conv3_3.shape
    _, c5, h5, w5 = conv5_x.shape
    assert h >= 2 and h3 >= 2 and h5 >= 2, "spatial heights must be >= 2 for bilinear"

    cu = params["w2"].shape[1]            # 64  (Up_MLFN out channels)
    cf = params["wf"].shape[1]            # 128 (fusion out channels)

    # NCHW -> NHWC + bf16 cast in one fused XLA pass; row flattening is a free reshape.
    x2 = jnp.transpose(conv2_2, (0, 2, 3, 1)).astype(jnp.bfloat16).reshape(n, h * w, c2)
    x3 = jnp.transpose(conv3_3, (0, 2, 3, 1)).astype(jnp.bfloat16).reshape(n, h3 * w3, c3)
    x5 = jnp.transpose(conv5_x, (0, 2, 3, 1)).astype(jnp.bfloat16).reshape(n, h5 * w5, c5)

    tile_h = _pick_tile_h(h, w, target_tile_pixels)
    if (tile_h * w) % 8 != 0:             # keep (8,128)-legal blocks; full block always legal
        tile_h = h
    t_steps = h // tile_h
    tile_pix = tile_h * w

    # Fusion weight split per branch; the 192-channel concat is never materialized.
    wf2 = params["wf"][:cu]
    wf3 = params["wf"][cu:2 * cu]
    wf5 = params["wf"][2 * cu:3 * cu]

    # Dense bf16 width-interp matrices (tiny, MXU-friendly). Height interp is done
    # per output row from in-kernel scalar (lo, frac) -- no (H*W, Hi*Wi) kron matrix.
    aw3 = jnp.asarray(_bilinear_matrix(w, w3), jnp.bfloat16)
    aw5 = jnp.asarray(_bilinear_matrix(w, w5), jnp.bfloat16)
    scale3 = float(h3 - 1) / float(h - 1)
    scale5 = float(h5 - 1) / float(h - 1)

    s2 = params["s2"].reshape(1, cu); b2 = params["b2"].reshape(1, cu)
    s3 = params["s3"].reshape(1, cu); b3 = params["b3"].reshape(1, cu)
    s5 = params["s5"].reshape(1, cu); b5 = params["b5"].reshape(1, cu)
    sf = params["sf"].reshape(1, cf); bf = params["bf"].reshape(1, cf)

    def kernel(x2_ref, x3_ref, x5_ref,
               w2_ref, s2_ref, b2_ref,
               w3_ref, s3_ref, b3_ref,
               w5_ref, s5_ref, b5_ref,
               wf2_ref, wf3_ref, wf5_ref, sf_ref, bf_ref,
               aw3_ref, aw5_ref,
               out_ref,
               u3_ref, u5_ref, b35_ref):
        t = pl.program_id(1)

        # ---- once per batch: low-res Up_MLFN + fusion projection + width interp ----
        @pl.when(t == 0)
        def _():
            def branch(x_ref, w_ref, s_ref, b_ref, wfb_ref, aw_ref, u_ref, hi, wi):
                a = jnp.dot(x_ref[0], w_ref[...], preferred_element_type=jnp.float32)
                y = jnp.maximum(a * s_ref[...] + b_ref[...], 0.0).astype(jnp.bfloat16)
                # Fusion projection commuted ahead of the resize (both are linear).
                c = jnp.dot(y, wfb_ref[...],
                            preferred_element_type=jnp.float32).astype(jnp.bfloat16)
                aw = aw_ref[...]
                for hh in range(hi):                         # small static low-res loop
                    rows = c[hh * wi:(hh + 1) * wi, :]       # (wi, cf)
                    u_ref[hh] = jnp.dot(aw, rows, preferred_element_type=jnp.float32)

            branch(x3_ref, w3_ref, s3_ref, b3_ref, wf3_ref, aw3_ref, u3_ref, h3, w3)
            branch(x5_ref, w5_ref, s5_ref, b5_ref, wf5_ref, aw5_ref, u5_ref, h5, w5)

        # ---- per tile: height interp of the two resident branch contributions ----
        for yl in range(tile_h):
            yf = (t * tile_h + yl).astype(jnp.float32)

            def hrow(u_ref, scale, hi):
                src = yf * scale
                lo = jnp.minimum(jnp.floor(src), float(hi - 2)).astype(jnp.int32)
                fr = src - lo.astype(jnp.float32)
                return u_ref[lo] * (1.0 - fr) + u_ref[lo + 1] * fr   # (w, cf) f32

            b35_ref[yl * w:(yl + 1) * w, :] = (hrow(u3_ref, scale3, h3) +
                                               hrow(u5_ref, scale5, h5))

        # ---- per tile: full-res Up_MLFN + its fusion contribution + epilogue ----
        a2 = jnp.dot(x2_ref[0], w2_ref[...], preferred_element_type=jnp.float32)
        y2 = jnp.maximum(a2 * s2_ref[...] + b2_ref[...], 0.0).astype(jnp.bfloat16)
        acc = jnp.dot(y2, wf2_ref[...], preferred_element_type=jnp.float32)
        acc = acc + b35_ref[...]
        out_ref[0] = jnp.maximum(acc * sf_ref[...] + bf_ref[...], 0.0).astype(out_ref.dtype)

    row2 = lambda b, t: (b, t, 0)
    repb = lambda b, t: (b, 0, 0)
    cst = lambda b, t: (0, 0)

    out2d = pl.pallas_call(
        kernel,
        out_shape=jax.ShapeDtypeStruct((n, h * w, cf), jnp.float32),
        grid=(n, t_steps),
        in_specs=[
            pl.BlockSpec((1, tile_pix, c2), row2),
            pl.BlockSpec((1, h3 * w3, c3), repb),
            pl.BlockSpec((1, h5 * w5, c5), repb),
            pl.BlockSpec((c2, cu), cst), pl.BlockSpec((1, cu), cst), pl.BlockSpec((1, cu), cst),
            pl.BlockSpec((c3, cu), cst), pl.BlockSpec((1, cu), cst), pl.BlockSpec((1, cu), cst),
            pl.BlockSpec((c5, cu), cst), pl.BlockSpec((1, cu), cst), pl.BlockSpec((1, cu), cst),
            pl.BlockSpec((cu, cf), cst), pl.BlockSpec((cu, cf), cst), pl.BlockSpec((cu, cf), cst),
            pl.BlockSpec((1, cf), cst), pl.BlockSpec((1, cf), cst),
            pl.BlockSpec((w, w3), cst), pl.BlockSpec((w, w5), cst),
        ],
        out_specs=pl.BlockSpec((1, tile_pix, cf), row2),
        scratch_shapes=[
            pltpu.VMEM((h3, w, cf), jnp.float32),   # width-interped branch-3 contribution
            pltpu.VMEM((h5, w, cf), jnp.float32),   # width-interped branch-5 contribution
            pltpu.VMEM((tile_pix, cf), jnp.float32),
        ],
        compiler_params=pltpu.CompilerParams(
            dimension_semantics=("parallel", "arbitrary")),
    )(x2, x3, x5,
      params["w2"], s2, b2,
      params["w3"], s3, b3,
      params["w5"], s5, b5,
      wf2, wf3, wf5, sf, bf, aw3, aw5)

    return out2d.reshape(n, h, w, cf)


# ----------------------------------------------------------------------------
# Deterministic parameter init (eval-mode BN folded into per-channel scale/bias).
# ----------------------------------------------------------------------------
def init_params(key, filters, up_ch=64, fuse_ch=128, eps=1e-5):
    keys = iter(jax.random.split(key, 40))

    def nrm(shape, s):
        return s * jax.random.normal(next(keys), shape, jnp.float32)

    def uni(shape):
        return 0.5 + jax.random.uniform(next(keys), shape, dtype=jnp.float32)

    def fold_bn(conv_b, gamma, beta, mean, var):
        s = gamma / jnp.sqrt(var + eps)
        return s, (conv_b - mean) * s + beta

    p = {}
    for tag, cin in (("2", filters[0]), ("3", filters[1]), ("5", filters[2])):
        wgt = nrm((cin, up_ch), 1.0 / np.sqrt(cin))
        s, b = fold_bn(nrm((up_ch,), 0.1), uni((up_ch,)), nrm((up_ch,), 0.1),
                       nrm((up_ch,), 0.1), uni((up_ch,)))
        p["w" + tag] = wgt.astype(jnp.bfloat16)
        p["s" + tag], p["b" + tag] = s, b

    wgt = nrm((3 * up_ch, fuse_ch), 1.0 / np.sqrt(3 * up_ch))
    sf, bf = fold_bn(nrm((fuse_ch,), 0.1), uni((fuse_ch,)), nrm((fuse_ch,), 0.1),
                     nrm((fuse_ch,), 0.1), uni((fuse_ch,)))
    p["wf"] = wgt.astype(jnp.bfloat16)
    p["sf"], p["bf"] = sf, bf
    return p


# ----------------------------------------------------------------------------
# Pure-JAX reference (straight module math in f32; inputs mirrored through bf16).
# ----------------------------------------------------------------------------
def ref_forward(conv2_2, conv3_3, conv5_x, params):
    f32 = jnp.float32
    h, w = conv2_2.shape[2], conv2_2.shape[3]

    def up(x_nchw, wgt, s, b):
        x = jnp.transpose(x_nchw, (0, 2, 3, 1)).astype(jnp.bfloat16).astype(f32)
        y = jnp.einsum("nhwc,cd->nhwd", x, wgt.astype(f32))
        return jnp.maximum(y * s + b, 0.0)

    def resize(y):
        ah = jnp.asarray(_bilinear_matrix(h, y.shape[1]), f32)
        aw = jnp.asarray(_bilinear_matrix(w, y.shape[2]), f32)
        return jnp.einsum("oh,pw,nhwc->nopc", ah, aw, y)

    x2 = up(conv2_2, params["w2"], params["s2"], params["b2"])
    x3 = resize(up(conv3_3, params["w3"], params["s3"], params["b3"]))
    x5 = resize(up(conv5_x, params["w5"], params["s5"], params["b5"]))
    cat = jnp.concatenate([x2, x3, x5], axis=-1)
    z = jnp.einsum("nhwc,cd->nhwd", cat, params["wf"].astype(f32))
    return jnp.maximum(z * params["sf"] + params["bf"], 0.0)


if __name__ == "__main__":
    key = jax.random.PRNGKey(0)
    k2, k3, k5, kp = jax.random.split(key, 4)
    n, h, w = 2, 16, 16
    filters = [128, 256, 512]             # Decoder_MLFN(filters=[128, 256, 512])
    conv2_2 = jax.random.normal(k2, (n, filters[0], h, w), jnp.float32)
    conv3_3 = jax.random.normal(k3, (n, filters[1], h // 2, w // 2), jnp.float32)
    conv5_x = jax.random.normal(k5, (n, filters[2], h // 4, w // 4), jnp.float32)
    params = init_params(kp, filters)

    fwd = jax.jit(lambda a, b, c: decoder_mlfn_forward(a, b, c, params))
    out = jax.block_until_ready(fwd(conv2_2, conv3_3, conv5_x))

    ref = ref_forward(conv2_2, conv3_3, conv5_x, params)
    assert out.shape == (n, h, w, 128), out.shape
    err = jnp.abs(out - ref)
    max_err = float(jnp.max(err))
    mean_err = float(jnp.mean(err))
    assert max_err < 4e-2 and mean_err < 4e-3, (max_err, mean_err)
    print("KERNEL_OK")
</pallas_src>

<mosaic_0001>
module attributes {stable_mosaic.version = 11 : i64} {
  func.func @kernel(%arg0: i32, %arg1: i32, %arg2: memref<1x256x128xbf16, #tpu.memory_space<vmem>>, %arg3: memref<1x64x256xbf16, #tpu.memory_space<vmem>>, %arg4: memref<1x16x512xbf16, #tpu.memory_space<vmem>>, %arg5: memref<128x64xbf16, #tpu.memory_space<vmem>>, %arg6: memref<1x64xf32, #tpu.memory_space<vmem>>, %arg7: memref<1x64xf32, #tpu.memory_space<vmem>>, %arg8: memref<256x64xbf16, #tpu.memory_space<vmem>>, %arg9: memref<1x64xf32, #tpu.memory_space<vmem>>, %arg10: memref<1x64xf32, #tpu.memory_space<vmem>>, %arg11: memref<512x64xbf16, #tpu.memory_space<vmem>>, %arg12: memref<1x64xf32, #tpu.memory_space<vmem>>, %arg13: memref<1x64xf32, #tpu.memory_space<vmem>>, %arg14: memref<64x128xbf16, #tpu.memory_space<vmem>>, %arg15: memref<64x128xbf16, #tpu.memory_space<vmem>>, %arg16: memref<64x128xbf16, #tpu.memory_space<vmem>>, %arg17: memref<1x128xf32, #tpu.memory_space<vmem>>, %arg18: memref<1x128xf32, #tpu.memory_space<vmem>>, %arg19: memref<16x8xbf16, #tpu.memory_space<vmem>>, %arg20: memref<16x4xbf16, #tpu.memory_space<vmem>>, %arg21: memref<1x256x128xf32, #tpu.memory_space<vmem>>, %arg22: memref<8x16x128xf32, #tpu.memory_space<vmem>>, %arg23: memref<4x16x128xf32, #tpu.memory_space<vmem>>, %arg24: memref<256x128xf32, #tpu.memory_space<vmem>>) attributes {dimension_semantics = [#tpu.dimension_semantics<parallel>, #tpu.dimension_semantics<arbitrary>], iteration_bounds = array<i64: 2, 1>, scalar_prefetch = 0 : i64, scratch_operands = 3 : i64, tpu.core_type = #tpu.core_type<tc>, window_params = [{transform_indices = @transform_0, window_bounds = array<i64: 1, 256, 128>}, {transform_indices = @transform_1, window_bounds = array<i64: 1, 64, 256>}, {transform_indices = @transform_2, window_bounds = array<i64: 1, 16, 512>}, {pipeline_mode = #tpu.pipeline_mode<synchronous>, transform_indices = @transform_3, window_bounds = array<i64: 128, 64>}, {pipeline_mode = #tpu.pipeline_mode<synchronous>, transform_indices = @transform_4, window_bounds = array<i64: 1, 64>}, {pipeline_mode = #tpu.pipeline_mode<synchronous>, transform_indices = @transform_5, window_bounds = array<i64: 1, 64>}, {pipeline_mode = #tpu.pipeline_mode<synchronous>, transform_indices = @transform_6, window_bounds = array<i64: 256, 64>}, {pipeline_mode = #tpu.pipeline_mode<synchronous>, transform_indices = @transform_7, window_bounds = array<i64: 1, 64>}, {pipeline_mode = #tpu.pipeline_mode<synchronous>, transform_indices = @transform_8, window_bounds = array<i64: 1, 64>}, {pipeline_mode = #tpu.pipeline_mode<synchronous>, transform_indices = @transform_9, window_bounds = array<i64: 512, 64>}, {pipeline_mode = #tpu.pipeline_mode<synchronous>, transform_indices = @transform_10, window_bounds = array<i64: 1, 64>}, {pipeline_mode = #tpu.pipeline_mode<synchronous>, transform_indices = @transform_11, window_bounds = array<i64: 1, 64>}, {pipeline_mode = #tpu.pipeline_mode<synchronous>, transform_indices = @transform_12, window_bounds = array<i64: 64, 128>}, {pipeline_mode = #tpu.pipeline_mode<synchronous>, transform_indices = @transform_13, window_bounds = array<i64: 64, 128>}, {pipeline_mode = #tpu.pipeline_mode<synchronous>, transform_indices = @transform_14, window_bounds = array<i64: 64, 128>}, {pipeline_mode = #tpu.pipeline_mode<synchronous>, transform_indices = @transform_15, window_bounds = array<i64: 1, 128>}, {pipeline_mode = #tpu.pipeline_mode<synchronous>, transform_indices = @transform_16, window_bounds = array<i64: 1, 128>}, {pipeline_mode = #tpu.pipeline_mode<synchronous>, transform_indices = @transform_17, window_bounds = array<i64: 16, 8>}, {pipeline_mode = #tpu.pipeline_mode<synchronous>, transform_indices = @transform_18, window_bounds = array<i64: 16, 4>}, {transform_indices = @transform_19, window_bounds = array<i64: 1, 256, 128>}]} {
    %c0_i32 = arith.constant 0 : i32
    %0 = arith.cmpi eq, %arg1, %c0_i32 : i32
    %1 = arith.extui %0 : i1 to i32
    %c0_i32_0 = arith.constant 0 : i32
    %2 = arith.cmpi ne, %1, %c0_i32_0 : i32
    scf.if %2 {
      %c0_312 = arith.constant 0 : index
      %c0_313 = arith.constant 0 : index
      %c0_314 = arith.constant 0 : index
      %719 = vector.load %arg3[%c0_312, %c0_313, %c0_314] : memref<1x64x256xbf16, #tpu.memory_space<vmem>>, vector<1x64x256xbf16>
      %720 = vector.shape_cast %719 : vector<1x64x256xbf16> to vector<64x256xbf16>
      %c0_315 = arith.constant 0 : index
      %c0_316 = arith.constant 0 : index
      %721 = vector.load %arg8[%c0_315, %c0_316] : memref<256x64xbf16, #tpu.memory_space<vmem>>, vector<256x64xbf16>
      %cst_317 = arith.constant dense<0.000000e+00> : vector<64x64xf32>
      %722 = tpu.matmul %720, %721, %cst_317 {dimension_numbers = #tpu.dot_dimension_numbers<[1], [0], [0], [1], [0, 0, 1, 1], [], []>} : vector<64x256xbf16>, vector<256x64xbf16>, vector<64x64xf32> -> vector<64x64xf32>
      %c0_318 = arith.constant 0 : index
      %c0_319 = arith.constant 0 : index
      %723 = vector.load %arg9[%c0_318, %c0_319] : memref<1x64xf32, #tpu.memory_space<vmem>>, vector<1x64xf32>
      %724 = vector.broadcast %723 : vector<1x64xf32> to vector<64x64xf32>
      %725 = arith.mulf %722, %724 : vector<64x64xf32>
      %c0_320 = arith.constant 0 : index
      %c0_321 = arith.constant 0 : index
      %726 = vector.load %arg10[%c0_320, %c0_321] : memref<1x64xf32, #tpu.memory_space<vmem>>, vector<1x64xf32>
      %727 = vector.broadcast %726 : vector<1x64xf32> to vector<64x64xf32>
      %728 = arith.addf %725, %727 : vector<64x64xf32>
      %cst_322 = arith.constant 0.000000e+00 : f32
      %729 = vector.broadcast %cst_322 : f32 to vector<64x64xf32>
      %730 = arith.maximumf %728, %729 : vector<64x64xf32>
      %731 = arith.truncf %730 : vector<64x64xf32> to vector<64x64xbf16>
      %c0_323 = arith.constant 0 : index
      %c0_324 = arith.constant 0 : index
      %732 = vector.load %arg15[%c0_323, %c0_324] : memref<64x128xbf16, #tpu.memory_space<vmem>>, vector<64x128xbf16>
      %cst_325 = arith.constant dense<0.000000e+00> : vector<64x128xf32>
      %733 = tpu.matmul %731, %732, %cst_325 {dimension_numbers = #tpu.dot_dimension_numbers<[1], [0], [0], [1], [0, 0, 1, 1], [], []>} : vector<64x64xbf16>, vector<64x128xbf16>, vector<64x128xf32> -> vector<64x128xf32>
      %734 = arith.truncf %733 : vector<64x128xf32> to vector<64x128xbf16>
      %c0_326 = arith.constant 0 : index
      %c0_327 = arith.constant 0 : index
      %735 = vector.load %arg19[%c0_326, %c0_327] : memref<16x8xbf16, #tpu.memory_space<vmem>>, vector<16x8xbf16>
      %736 = vector.extract_strided_slice %734 {offsets = [0, 0], sizes = [8, 128], strides = [1, 1]} : vector<64x128xbf16> to vector<8x128xbf16>
      %cst_328 = arith.constant dense<0.000000e+00> : vector<16x128xf32>
      %737 = tpu.matmul %735, %736, %cst_328 {dimension_numbers = #tpu.dot_dimension_numbers<[1], [0], [0], [1], [0, 0, 1, 1], [], []>} : vector<16x8xbf16>, vector<8x128xbf16>, vector<16x128xf32> -> vector<16x128xf32>
      %c0_329 = arith.constant 0 : index
      %c0_330 = arith.constant 0 : index
      %c0_331 = arith.constant 0 : index
      %738 = vector.load %arg22[%c0_329, %c0_330, %c0_331] : memref<8x16x128xf32, #tpu.memory_space<vmem>>, vector<1x16x128xf32>
      %739 = vector.shape_cast %738 : vector<1x16x128xf32> to vector<16x128xf32>
      %740 = vector.shape_cast %737 : vector<16x128xf32> to vector<1x16x128xf32>
      tpu.vector_store %arg22[%c0_329, %c0_330, %c0_331], %740 {strides = array<i32>} : memref<8x16x128xf32, #tpu.memory_space<vmem>>, vector<1x16x128xf32>,
      %741 = vector.extract_strided_slice %734 {offsets = [8, 0], sizes = [8, 128], strides = [1, 1]} : vector<64x128xbf16> to vector<8x128xbf16>
      %cst_332 = arith.constant dense<0.000000e+00> : vector<16x128xf32>
      %742 = tpu.matmul %735, %741, %cst_332 {dimension_numbers = #tpu.dot_dimension_numbers<[1], [0], [0], [1], [0, 0, 1, 1], [], []>} : vector<16x8xbf16>, vector<8x128xbf16>, vector<16x128xf32> -> vector<16x128xf32>
      %c1 = arith.constant 1 : index
      %c0_333 = arith.constant 0 : index
      %c0_334 = arith.constant 0 : index
      %743 = vector.load %arg22[%c1, %c0_333, %c0_334] : memref<8x16x128xf32, #tpu.memory_space<vmem>>, vector<1x16x128xf32>
      %744 = vector.shape_cast %743 : vector<1x16x128xf32> to vector<16x128xf32>
      %745 = vector.shape_cast %742 : vector<16x128xf32> to vector<1x16x128xf32>
      tpu.vector_store %arg22[%c1, %c0_333, %c0_334], %745 {strides = array<i32>} : memref<8x16x128xf32, #tpu.memory_space<vmem>>, vector<1x16x128xf32>,
      %746 = vector.extract_strided_slice %734 {offsets = [16, 0], sizes = [8, 128], strides = [1, 1]} : vector<64x128xbf16> to vector<8x128xbf16>
      %cst_335 = arith.constant dense<0.000000e+00> : vector<16x128xf32>
      %747 = tpu.matmul %735, %746, %cst_335 {dimension_numbers = #tpu.dot_dimension_numbers<[1], [0], [0], [1], [0, 0, 1, 1], [], []>} : vector<16x8xbf16>, vector<8x128xbf16>, vector<16x128xf32> -> vector<16x128xf32>
      %c2 = arith.constant 2 : index
      %c0_336 = arith.constant 0 : index
      %c0_337 = arith.constant 0 : index
      %748 = vector.load %arg22[%c2, %c0_336, %c0_337] : memref<8x16x128xf32, #tpu.memory_space<vmem>>, vector<1x16x128xf32>
      %749 = vector.shape_cast %748 : vector<1x16x128xf32> to vector<16x128xf32>
      %750 = vector.shape_cast %747 : vector<16x128xf32> to vector<1x16x128xf32>
      tpu.vector_store %arg22[%c2, %c0_336, %c0_337], %750 {strides = array<i32>} : memref<8x16x128xf32, #tpu.memory_space<vmem>>, vector<1x16x128xf32>,
      %751 = vector.extract_strided_slice %734 {offsets = [24, 0], sizes = [8, 128], strides = [1, 1]} : vector<64x128xbf16> to vector<8x128xbf16>
      %cst_338 = arith.constant dense<0.000000e+00> : vector<16x128xf32>
      %752 = tpu.matmul %735, %751, %cst_338 {dimension_numbers = #tpu.dot_dimension_numbers<[1], [0], [0], [1], [0, 0, 1, 1], [], []>} : vector<16x8xbf16>, vector<8x128xbf16>, vector<16x128xf32> -> vector<16x128xf32>
      %c3 = arith.constant 3 : index
      %c0_339 = arith.constant 0 : index
      %c0_340 = arith.constant 0 : index
      %753 = vector.load %arg22[%c3, %c0_339, %c0_340] : memref<8x16x128xf32, #tpu.memory_space<vmem>>, vector<1x16x128xf32>
      %754 = vector.shape_cast %753 : vector<1x16x128xf32> to vector<16x128xf32>
      %755 = vector.shape_cast %752 : vector<16x128xf32> to vector<1x16x128xf32>
      tpu.vector_store %arg22[%c3, %c0_339, %c0_340], %755 {strides = array<i32>} : memref<8x16x128xf32, #tpu.memory_space<vmem>>, vector<1x16x128xf32>,
      %756 = vector.extract_strided_slice %734 {offsets = [32, 0], sizes = [8, 128], strides = [1, 1]} : vector<64x128xbf16> to vector<8x128xbf16>
      %cst_341 = arith.constant dense<0.000000e+00> : vector<16x128xf32>
      %757 = tpu.matmul %735, %756, %cst_341 {dimension_numbers = #tpu.dot_dimension_numbers<[1], [0], [0], [1], [0, 0, 1, 1], [], []>} : vector<16x8xbf16>, vector<8x128xbf16>, vector<16x128xf32> -> vector<16x128xf32>
      %c4 = arith.constant 4 : index
      %c0_342 = arith.constant 0 : index
      %c0_343 = arith.constant 0 : index
      %758 = vector.load %arg22[%c4, %c0_342, %c0_343] : memref<8x16x128xf32, #tpu.memory_space<vmem>>, vector<1x16x128xf32>
      %759 = vector.shape_cast %758 : vector<1x16x128xf32> to vector<16x128xf32>
      %760 = vector.shape_cast %757 : vector<16x128xf32> to vector<1x16x128xf32>
      tpu.vector_store %arg22[%c4, %c0_342, %c0_343], %760 {strides = array<i32>} : memref<8x16x128xf32, #tpu.memory_space<vmem>>, vector<1x16x128xf32>,
      %761 = vector.extract_strided_slice %734 {offsets = [40, 0], sizes = [8, 128], strides = [1, 1]} : vector<64x128xbf16> to vector<8x128xbf16>
      %cst_344 = arith.constant dense<0.000000e+00> : vector<16x128xf32>
      %762 = tpu.matmul %735, %761, %cst_344 {dimension_numbers = #tpu.dot_dimension_numbers<[1], [0], [0], [1], [0, 0, 1, 1], [], []>} : vector<16x8xbf16>, vector<8x128xbf16>, vector<16x128xf32> -> vector<16x128xf32>
      %c5 = arith.constant 5 : index
      %c0_345 = arith.constant 0 : index
      %c0_346 = arith.constant 0 : index
      %763 = vector.load %arg22[%c5, %c0_345, %c0_346] : memref<8x16x128xf32, #tpu.memory_space<vmem>>, vector<1x16x128xf32>
      %764 = vector.shape_cast %763 : vector<1x16x128xf32> to vector<16x128xf32>
      %765 = vector.shape_cast %762 : vector<16x128xf32> to vector<1x16x128xf32>
      tpu.vector_store %arg22[%c5, %c0_345, %c0_346], %765 {strides = array<i32>} : memref<8x16x128xf32, #tpu.memory_space<vmem>>, vector<1x16x128xf32>,
      %766 = vector.extract_strided_slice %734 {offsets = [48, 0], sizes = [8, 128], strides = [1, 1]} : vector<64x128xbf16> to vector<8x128xbf16>
      %cst_347 = arith.constant dense<0.000000e+00> : vector<16x128xf32>
      %767 = tpu.matmul %735, %766, %cst_347 {dimension_numbers = #tpu.dot_dimension_numbers<[1], [0], [0], [1], [0, 0, 1, 1], [], []>} : vector<16x8xbf16>, vector<8x128xbf16>, vector<16x128xf32> -> vector<16x128xf32>
      %c6 = arith.constant 6 : index
      %c0_348 = arith.constant 0 : index
      %c0_349 = arith.constant 0 : index
      %768 = vector.load %arg22[%c6, %c0_348, %c0_349] : memref<8x16x128xf32, #tpu.memory_space<vmem>>, vector<1x16x128xf32>
      %769 = vector.shape_cast %768 : vector<1x16x128xf32> to vector<16x128xf32>
      %770 = vector.shape_cast %767 : vector<16x128xf32> to vector<1x16x128xf32>
      tpu.vector_store %arg22[%c6, %c0_348, %c0_349], %770 {strides = array<i32>} : memref<8x16x128xf32, #tpu.memory_space<vmem>>, vector<1x16x128xf32>,
      %771 = vector.extract_strided_slice %734 {offsets = [56, 0], sizes = [8, 128], strides = [1, 1]} : vector<64x128xbf16> to vector<8x128xbf16>
      %cst_350 = arith.constant dense<0.000000e+00> : vector<16x128xf32>
      %772 = tpu.matmul %735, %771, %cst_350 {dimension_numbers = #tpu.dot_dimension_numbers<[1], [0], [0], [1], [0, 0, 1, 1], [], []>} : vector<16x8xbf16>, vector<8x128xbf16>, vector<16x128xf32> -> vector<16x128xf32>
      %c7 = arith.constant 7 : index
      %c0_351 = arith.constant 0 : index
      %c0_352 = arith.constant 0 : index
      %773 = vector.load %arg22[%c7, %c0_351, %c0_352] : memref<8x16x128xf32, #tpu.memory_space<vmem>>, vector<1x16x128xf32>
      %774 = vector.shape_cast %773 : vector<1x16x128xf32> to vector<16x128xf32>
      %775 = vector.shape_cast %772 : vector<16x128xf32> to vector<1x16x128xf32>
      tpu.vector_store %arg22[%c7, %c0_351, %c0_352], %775 {strides = array<i32>} : memref<8x16x128xf32, #tpu.memory_space<vmem>>, vector<1x16x128xf32>,
      %c0_353 = arith.constant 0 : index
      %c0_354 = arith.constant 0 : index
      %c0_355 = arith.constant 0 : index
      %776 = vector.load %arg4[%c0_353, %c0_354, %c0_355] : memref<1x16x512xbf16, #tpu.memory_space<vmem>>, vector<1x16x512xbf16>
      %777 = vector.shape_cast %776 : vector<1x16x512xbf16> to vector<16x512xbf16>
      %c0_356 = arith.constant 0 : index
      %c0_357 = arith.constant 0 : index
      %778 = vector.load %arg11[%c0_356, %c0_357] : memref<512x64xbf16, #tpu.memory_space<vmem>>, vector<512x64xbf16>
      %cst_358 = arith.constant dense<0.000000e+00> : vector<16x64xf32>
      %779 = tpu.matmul %777, %778, %cst_358 {dimension_numbers = #tpu.dot_dimension_numbers<[1], [0], [0], [1], [0, 0, 1, 1], [], []>} : vector<16x512xbf16>, vector<512x64xbf16>, vector<16x64xf32> -> vector<16x64xf32>
      %c0_359 = arith.constant 0 : index
      %c0_360 = arith.constant 0 : index
      %780 = vector.load %arg12[%c0_359, %c0_360] : memref<1x64xf32, #tpu.memory_space<vmem>>, vector<1x64xf32>
      %781 = vector.broadcast %780 : vector<1x64xf32> to vector<16x64xf32>
      %782 = arith.mulf %779, %781 : vector<16x64xf32>
      %c0_361 = arith.constant 0 : index
      %c0_362 = arith.constant 0 : index
      %783 = vector.load %arg13[%c0_361, %c0_362] : memref<1x64xf32, #tpu.memory_space<vmem>>, vector<1x64xf32>
      %784 = vector.broadcast %783 : vector<1x64xf32> to vector<16x64xf32>
      %785 = arith.addf %782, %784 : vector<16x64xf32>
      %cst_363 = arith.constant 0.000000e+00 : f32
      %786 = vector.broadcast %cst_363 : f32 to vector<16x64xf32>
      %787 = arith.maximumf %785, %786 : vector<16x64xf32>
      %788 = arith.truncf %787 : vector<16x64xf32> to vector<16x64xbf16>
      %c0_364 = arith.constant 0 : index
      %c0_365 = arith.constant 0 : index
      %789 = vector.load %arg16[%c0_364, %c0_365] : memref<64x128xbf16, #tpu.memory_space<vmem>>, vector<64x128xbf16>
      %cst_366 = arith.constant dense<0.000000e+00> : vector<16x128xf32>
      %790 = tpu.matmul %788, %789, %cst_366 {dimension_numbers = #tpu.dot_dimension_numbers<[1], [0], [0], [1], [0, 0, 1, 1], [], []>} : vector<16x64xbf16>, vector<64x128xbf16>, vector<16x128xf32> -> vector<16x128xf32>
      %791 = arith.truncf %790 : vector<16x128xf32> to vector<16x128xbf16>
      %c0_367 = arith.constant 0 : index
      %c0_368 = arith.constant 0 : index
      %792 = vector.load %arg20[%c0_367, %c0_368] : memref<16x4xbf16, #tpu.memory_space<vmem>>, vector<16x4xbf16>
      %793 = vector.extract_strided_slice %791 {offsets = [0, 0], sizes = [4, 128], strides = [1, 1]} : vector<16x128xbf16> to vector<4x128xbf16>
      %cst_369 = arith.constant dense<0.000000e+00> : vector<16x128xf32>
      %794 = tpu.matmul %792, %793, %cst_369 {dimension_numbers = #tpu.dot_dimension_numbers<[1], [0], [0], [1], [0, 0, 1, 1], [], []>} : vector<16x4xbf16>, vector<4x128xbf16>, vector<16x128xf32> -> vector<16x128xf32>
      %c0_370 = arith.constant 0 : index
      %c0_371 = arith.constant 0 : index
      %c0_372 = arith.constant 0 : index
      %795 = vector.load %arg23[%c0_370, %c0_371, %c0_372] : memref<4x16x128xf32, #tpu.memory_space<vmem>>, vector<1x16x128xf32>
      %796 = vector.shape_cast %795 : vector<1x16x128xf32> to vector<16x128xf32>
      %797 = vector.shape_cast %794 : vector<16x128xf32> to vector<1x16x128xf32>
      tpu.vector_store %arg23[%c0_370, %c0_371, %c0_372], %797 {strides = array<i32>} : memref<4x16x128xf32, #tpu.memory_space<vmem>>, vector<1x16x128xf32>,
      %798 = vector.extract_strided_slice %791 {offsets = [4, 0], sizes = [4, 128], strides = [1, 1]} : vector<16x128xbf16> to vector<4x128xbf16>
      %cst_373 = arith.constant dense<0.000000e+00> : vector<16x128xf32>
      %799 = tpu.matmul %792, %798, %cst_373 {dimension_numbers = #tpu.dot_dimension_numbers<[1], [0], [0], [1], [0, 0, 1, 1], [], []>} : vector<16x4xbf16>, vector<4x128xbf16>, vector<16x128xf32> -> vector<16x128xf32>
      %c1_374 = arith.constant 1 : index
      %c0_375 = arith.constant 0 : index
      %c0_376 = arith.constant 0 : index
      %800 = vector.load %arg23[%c1_374, %c0_375, %c0_376] : memref<4x16x128xf32, #tpu.memory_space<vmem>>, vector<1x16x128xf32>
      %801 = vector.shape_cast %800 : vector<1x16x128xf32> to vector<16x128xf32>
      %802 = vector.shape_cast %799 : vector<16x128xf32> to vector<1x16x128xf32>
      tpu.vector_store %arg23[%c1_374, %c0_375, %c0_376], %802 {strides = array<i32>} : memref<4x16x128xf32, #tpu.memory_space<vmem>>, vector<1x16x128xf32>,
      %803 = vector.extract_strided_slice %791 {offsets = [8, 0], sizes = [4, 128], strides = [1, 1]} : vector<16x128xbf16> to vector<4x128xbf16>
      %cst_377 = arith.constant dense<0.000000e+00> : vector<16x128xf32>
      %804 = tpu.matmul %792, %803, %cst_377 {dimension_numbers = #tpu.dot_dimension_numbers<[1], [0], [0], [1], [0, 0, 1, 1], [], []>} : vector<16x4xbf16>, vector<4x128xbf16>, vector<16x128xf32> -> vector<16x128xf32>
      %c2_378 = arith.constant 2 : index
      %c0_379 = arith.constant 0 : index
      %c0_380 = arith.constant 0 : index
      %805 = vector.load %arg23[%c2_378, %c0_379, %c0_380] : memref<4x16x128xf32, #tpu.memory_space<vmem>>, vector<1x16x128xf32>
      %806 = vector.shape_cast %805 : vector<1x16x128xf32> to vector<16x128xf32>
      %807 = vector.shape_cast %804 : vector<16x128xf32> to vector<1x16x128xf32>
      tpu.vector_store %arg23[%c2_378, %c0_379, %c0_380], %807 {strides = array<i32>} : memref<4x16x128xf32, #tpu.memory_space<vmem>>, vector<1x16x128xf32>,
      %808 = vector.extract_strided_slice %791 {offsets = [12, 0], sizes = [4, 128], strides = [1, 1]} : vector<16x128xbf16> to vector<4x128xbf16>
      %cst_381 = arith.constant dense<0.000000e+00> : vector<16x128xf32>
      %809 = tpu.matmul %792, %808, %cst_381 {dimension_numbers = #tpu.dot_dimension_numbers<[1], [0], [0], [1], [0, 0, 1, 1], [], []>} : vector<16x4xbf16>, vector<4x128xbf16>, vector<16x128xf32> -> vector<16x128xf32>
      %c3_382 = arith.constant 3 : index
      %c0_383 = arith.constant 0 : index
      %c0_384 = arith.constant 0 : index
      %810 = vector.load %arg23[%c3_382, %c0_383, %c0_384] : memref<4x16x128xf32, #tpu.memory_space<vmem>>, vector<1x16x128xf32>
      %811 = vector.shape_cast %810 : vector<1x16x128xf32> to vector<16x128xf32>
      %812 = vector.shape_cast %809 : vector<16x128xf32> to vector<1x16x128xf32>
      tpu.vector_store %arg23[%c3_382, %c0_383, %c0_384], %812 {strides = array<i32>} : memref<4x16x128xf32, #tpu.memory_space<vmem>>, vector<1x16x128xf32>,
    } else {
    }
    %c16_i32 = arith.constant 16 : i32
    %3 = arith.muli %arg1, %c16_i32 : i32
    %c0_i32_1 = arith.constant 0 : i32
    %4 = arith.addi %3, %c0_i32_1 : i32
    %5 = arith.sitofp %4 : i32 to f32
    %cst = arith.constant 0.466666669 : f32
    %6 = arith.mulf %5, %cst : f32
    %7 = math.floor %6 : f32
    %cst_2 = arith.constant 6.000000e+00 : f32
    %8 = arith.minimumf %7, %cst_2 : f32
    %9 = arith.fptosi %8 : f32 to i32
    %10 = arith.sitofp %9 : i32 to f32
    %11 = arith.subf %6, %10 : f32
    %12 = arith.index_cast %9 : i32 to index
    %c0 = arith.constant 0 : index
    %c0_3 = arith.constant 0 : index
    %13 = vector.load %arg22[%12, %c0, %c0_3] : memref<8x16x128xf32, #tpu.memory_space<vmem>>, vector<1x16x128xf32>
    %14 = vector.shape_cast %13 : vector<1x16x128xf32> to vector<16x128xf32>
    %cst_4 = arith.constant 1.000000e+00 : f32
    %15 = arith.subf %cst_4, %11 : f32
    %16 = vector.broadcast %15 : f32 to vector<16x128xf32>
    %17 = arith.mulf %14, %16 : vector<16x128xf32>
    %c1_i32 = arith.constant 1 : i32
    %18 = arith.addi %9, %c1_i32 : i32
    %19 = arith.index_cast %18 : i32 to index
    %c0_5 = arith.constant 0 : index
    %c0_6 = arith.constant 0 : index
    %20 = vector.load %arg22[%19, %c0_5, %c0_6] : memref<8x16x128xf32, #tpu.memory_space<vmem>>, vector<1x16x128xf32>
    %21 = vector.shape_cast %20 : vector<1x16x128xf32> to vector<16x128xf32>
    %22 = vector.broadcast %11 : f32 to vector<16x128xf32>
    %23 = arith.mulf %21, %22 : vector<16x128xf32>
    %24 = arith.addf %17, %23 : vector<16x128xf32>
    %cst_7 = arith.constant 2.000000e-01 : f32
    %25 = arith.mulf %5, %cst_7 : f32
    %26 = math.floor %25 : f32
    %cst_8 = arith.constant 2.000000e+00 : f32
    %27 = arith.minimumf %26, %cst_8 : f32
    %28 = arith.fptosi %27 : f32 to i32
    %29 = arith.sitofp %28 : i32 to f32
    %30 = arith.subf %25, %29 : f32
    %31 = arith.index_cast %28 : i32 to index
    %c0_9 = arith.constant 0 : index
    %c0_10 = arith.constant 0 : index
    %32 = vector.load %arg23[%31, %c0_9, %c0_10] : memref<4x16x128xf32, #tpu.memory_space<vmem>>, vector<1x16x128xf32>
    %33 = vector.shape_cast %32 : vector<1x16x128xf32> to vector<16x128xf32>
    %cst_11 = arith.constant 1.000000e+00 : f32
    %34 = arith.subf %cst_11, %30 : f32
    %35 = vector.broadcast %34 : f32 to vector<16x128xf32>
    %36 = arith.mulf %33, %35 : vector<16x128xf32>
    %c1_i32_12 = arith.constant 1 : i32
    %37 = arith.addi %28, %c1_i32_12 : i32
    %38 = arith.index_cast %37 : i32 to index
    %c0_13 = arith.constant 0 : index
    %c0_14 = arith.constant 0 : index
    %39 = vector.load %arg23[%38, %c0_13, %c0_14] : memref<4x16x128xf32, #tpu.memory_space<vmem>>, vector<1x16x128xf32>
    %40 = vector.shape_cast %39 : vector<1x16x128xf32> to vector<16x128xf32>
    %41 = vector.broadcast %30 : f32 to vector<16x128xf32>
    %42 = arith.mulf %40, %41 : vector<16x128xf32>
    %43 = arith.addf %36, %42 : vector<16x128xf32>
    %44 = arith.addf %24, %43 : vector<16x128xf32>
    %c0_15 = arith.constant 0 : index
    %c0_16 = arith.constant 0 : index
    %45 = vector.load %arg24[%c0_15, %c0_16] : memref<256x128xf32, #tpu.memory_space<vmem>>, vector<16x128xf32>
    tpu.vector_store %arg24[%c0_15, %c0_16], %44 {strides = array<i32>} : memref<256x128xf32, #tpu.memory_space<vmem>>, vector<16x128xf32>,
    %c16_i32_17 = arith.constant 16 : i32
    %46 = arith.muli %arg1, %c16_i32_17 : i32
    %c1_i32_18 = arith.constant 1 : i32
    %47 = arith.addi %46, %c1_i32_18 : i32
    %48 = arith.sitofp %47 : i32 to f32
    %cst_19 = arith.constant 0.466666669 : f32
    %49 = arith.mulf %48, %cst_19 : f32
    %50 = math.floor %49 : f32
    %cst_20 = arith.constant 6.000000e+00 : f32
    %51 = arith.minimumf %50, %cst_20 : f32
    %52 = arith.fptosi %51 : f32 to i32
    %53 = arith.sitofp %52 : i32 to f32
    %54 = arith.subf %49, %53 : f32
    %55 = arith.index_cast %52 : i32 to index
    %c0_21 = arith.constant 0 : index
    %c0_22 = arith.constant 0 : index
    %56 = vector.load %arg22[%55, %c0_21, %c0_22] : memref<8x16x128xf32, #tpu.memory_space<vmem>>, vector<1x16x128xf32>
    %57 = vector.shape_cast %56 : vector<1x16x128xf32> to vector<16x128xf32>
    %cst_23 = arith.constant 1.000000e+00 : f32
    %58 = arith.subf %cst_23, %54 : f32
    %59 = vector.broadcast %58 : f32 to vector<16x128xf32>
    %60 = arith.mulf %57, %59 : vector<16x128xf32>
    %c1_i32_24 = arith.constant 1 : i32
    %61 = arith.addi %52, %c1_i32_24 : i32
    %62 = arith.index_cast %61 : i32 to index
    %c0_25 = arith.constant 0 : index
    %c0_26 = arith.constant 0 : index
    %63 = vector.load %arg22[%62, %c0_25, %c0_26] : memref<8x16x128xf32, #tpu.memory_space<vmem>>, vector<1x16x128xf32>
    %64 = vector.shape_cast %63 : vector<1x16x128xf32> to vector<16x128xf32>
    %65 = vector.broadcast %54 : f32 to vector<16x128xf32>
    %66 = arith.mulf %64, %65 : vector<16x128xf32>
    %67 = arith.addf %60, %66 : vector<16x128xf32>
    %cst_27 = arith.constant 2.000000e-01 : f32
    %68 = arith.mulf %48, %cst_27 : f32
    %69 = math.floor %68 : f32
    %cst_28 = arith.constant 2.000000e+00 : f32
    %70 = arith.minimumf %69, %cst_28 : f32
    %71 = arith.fptosi %70 : f32 to i32
    %72 = arith.sitofp %71 : i32 to f32
    %73 = arith.subf %68, %72 : f32
    %74 = arith.index_cast %71 : i32 to index
    %c0_29 = arith.constant 0 : index
    %c0_30 = arith.constant 0 : index
    %75 = vector.load %arg23[%74, %c0_29, %c0_30] : memref<4x16x128xf32, #tpu.memory_space<vmem>>, vector<1x16x128xf32>
    %76 = vector.shape_cast %75 : vector<1x16x128xf32> to vector<16x128xf32>
    %cst_31 = arith.constant 1.000000e+00 : f32
    %77 = arith.subf %cst_31, %73 : f32
    %78 = vector.broadcast %77 : f32 to vector<16x128xf32>
    %79 = arith.mulf %76, %78 : vector<16x128xf32>
    %c1_i32_32 = arith.constant 1 : i32
    %80 = arith.addi %71, %c1_i32_32 : i32
    %81 = arith.index_cast %80 : i32 to index
    %c0_33 = arith.constant 0 : index
    %c0_34 = arith.constant 0 : index
    %82 = vector.load %arg23[%81, %c0_33, %c0_34] : memref<4x16x128xf32, #tpu.memory_space<vmem>>, vector<1x16x128xf32>
    %83 = vector.shape_cast %82 : vector<1x16x128xf32> to vector<16x128xf32>
    %84 = vector.broadcast %73 : f32 to vector<16x128xf32>
    %85 = arith.mulf %83, %84 : vector<16x128xf32>
    %86 = arith.addf %79, %85 : vector<16x128xf32>
    %87 = arith.addf %67, %86 : vector<16x128xf32>
    %c16 = arith.constant 16 : index
    %c0_35 = arith.constant 0 : index
    %88 = vector.load %arg24[%c16, %c0_35] : memref<256x128xf32, #tpu.memory_space<vmem>>, vector<16x128xf32>
    tpu.vector_store %arg24[%c16, %c0_35], %87 {strides = array<i32>} : memref<256x128xf32, #tpu.memory_space<vmem>>, vector<16x128xf32>,
    %c16_i32_36 = arith.constant 16 : i32
    %89 = arith.muli %arg1, %c16_i32_36 : i32
    %c2_i32 = arith.constant 2 : i32
    %90 = arith.addi %89, %c2_i32 : i32
    %91 = arith.sitofp %90 : i32 to f32
    %cst_37 = arith.constant 0.466666669 : f32
    %92 = arith.mulf %91, %cst_37 : f32
    %93 = math.floor %92 : f32
    %cst_38 = arith.constant 6.000000e+00 : f32
    %94 = arith.minimumf %93, %cst_38 : f32
    %95 = arith.fptosi %94 : f32 to i32
    %96 = arith.sitofp %95 : i32 to f32
    %97 = arith.subf %92, %96 : f32
    %98 = arith.index_cast %95 : i32 to index
    %c0_39 = arith.constant 0 : index
    %c0_40 = arith.constant 0 : index
    %99 = vector.load %arg22[%98, %c0_39, %c0_40] : memref<8x16x128xf32, #tpu.memory_space<vmem>>, vector<1x16x128xf32>
    %100 = vector.shape_cast %99 : vector<1x16x128xf32> to vector<16x128xf32>
    %cst_41 = arith.constant 1.000000e+00 : f32
    %101 = arith.subf %cst_41, %97 : f32
    %102 = vector.broadcast %101 : f32 to vector<16x128xf32>
    %103 = arith.mulf %100, %102 : vector<16x128xf32>
    %c1_i32_42 = arith.constant 1 : i32
    %104 = arith.addi %95, %c1_i32_42 : i32
    %105 = arith.index_cast %104 : i32 to index
    %c0_43 = arith.constant 0 : index
    %c0_44 = arith.constant 0 : index
    %106 = vector.load %arg22[%105, %c0_43, %c0_44] : memref<8x16x128xf32, #tpu.memory_space<vmem>>, vector<1x16x128xf32>
    %107 = vector.shape_cast %106 : vector<1x16x128xf32> to vector<16x128xf32>
    %108 = vector.broadcast %97 : f32 to vector<16x128xf32>
    %109 = arith.mulf %107, %108 : vector<16x128xf32>
    %110 = arith.addf %103, %109 : vector<16x128xf32>
    %cst_45 = arith.constant 2.000000e-01 : f32
    %111 = arith.mulf %91, %cst_45 : f32
    %112 = math.floor %111 : f32
    %cst_46 = arith.constant 2.000000e+00 : f32
    %113 = arith.minimumf %112, %cst_46 : f32
    %114 = arith.fptosi %113 : f32 to i32
    %115 = arith.sitofp %114 : i32 to f32
    %116 = arith.subf %111, %115 : f32
    %117 = arith.index_cast %114 : i32 to index
    %c0_47 = arith.constant 0 : index
    %c0_48 = arith.constant 0 : index
    %118 = vector.load %arg23[%117, %c0_47, %c0_48] : memref<4x16x128xf32, #tpu.memory_space<vmem>>, vector<1x16x128xf32>
    %119 = vector.shape_cast %118 : vector<1x16x128xf32> to vector<16x128xf32>
    %cst_49 = arith.constant 1.000000e+00 : f32
    %120 = arith.subf %cst_49, %116 : f32
    %121 = vector.broadcast %120 : f32 to vector<16x128xf32>
    %122 = arith.mulf %119, %121 : vector<16x128xf32>
    %c1_i32_50 = arith.constant 1 : i32
    %123 = arith.addi %114, %c1_i32_50 : i32
    %124 = arith.index_cast %123 : i32 to index
    %c0_51 = arith.constant 0 : index
    %c0_52 = arith.constant 0 : index
    %125 = vector.load %arg23[%124, %c0_51, %c0_52] : memref<4x16x128xf32, #tpu.memory_space<vmem>>, vector<1x16x128xf32>
    %126 = vector.shape_cast %125 : vector<1x16x128xf32> to vector<16x128xf32>
    %127 = vector.broadcast %116 : f32 to vector<16x128xf32>
    %128 = arith.mulf %126, %127 : vector<16x128xf32>
    %129 = arith.addf %122, %128 : vector<16x128xf32>
    %130 = arith.addf %110, %129 : vector<16x128xf32>
    %c32 = arith.constant 32 : index
    %c0_53 = arith.constant 0 : index
    %131 = vector.load %arg24[%c32, %c0_53] : memref<256x128xf32, #tpu.memory_space<vmem>>, vector<16x128xf32>
    tpu.vector_store %arg24[%c32, %c0_53], %130 {strides = array<i32>} : memref<256x128xf32, #tpu.memory_space<vmem>>, vector<16x128xf32>,
    %c16_i32_54 = arith.constant 16 : i32
    %132 = arith.muli %arg1, %c16_i32_54 : i32
    %c3_i32 = arith.constant 3 : i32
    %133 = arith.addi %132, %c3_i32 : i32
    %134 = arith.sitofp %133 : i32 to f32
    %cst_55 = arith.constant 0.466666669 : f32
    %135 = arith.mulf %134, %cst_55 : f32
    %136 = math.floor %135 : f32
    %cst_56 = arith.constant 6.000000e+00 : f32
    %137 = arith.minimumf %136, %cst_56 : f32
    %138 = arith.fptosi %137 : f32 to i32
    %139 = arith.sitofp %138 : i32 to f32
    %140 = arith.subf %135, %139 : f32
    %141 = arith.index_cast %138 : i32 to index
    %c0_57 = arith.constant 0 : index
    %c0_58 = arith.constant 0 : index
    %142 = vector.load %arg22[%141, %c0_57, %c0_58] : memref<8x16x128xf32, #tpu.memory_space<vmem>>, vector<1x16x128xf32>
    %143 = vector.shape_cast %142 : vector<1x16x128xf32> to vector<16x128xf32>
    %cst_59 = arith.constant 1.000000e+00 : f32
    %144 = arith.subf %cst_59, %140 : f32
    %145 = vector.broadcast %144 : f32 to vector<16x128xf32>
    %146 = arith.mulf %143, %145 : vector<16x128xf32>
    %c1_i32_60 = arith.constant 1 : i32
    %147 = arith.addi %138, %c1_i32_60 : i32
    %148 = arith.index_cast %147 : i32 to index
    %c0_61 = arith.constant 0 : index
    %c0_62 = arith.constant 0 : index
    %149 = vector.load %arg22[%148, %c0_61, %c0_62] : memref<8x16x128xf32, #tpu.memory_space<vmem>>, vector<1x16x128xf32>
    %150 = vector.shape_cast %149 : vector<1x16x128xf32> to vector<16x128xf32>
    %151 = vector.broadcast %140 : f32 to vector<16x128xf32>
    %152 = arith.mulf %150, %151 : vector<16x128xf32>
    %153 = arith.addf %146, %152 : vector<16x128xf32>
    %cst_63 = arith.constant 2.000000e-01 : f32
    %154 = arith.mulf %134, %cst_63 : f32
    %155 = math.floor %154 : f32
    %cst_64 = arith.constant 2.000000e+00 : f32
    %156 = arith.minimumf %155, %cst_64 : f32
    %157 = arith.fptosi %156 : f32 to i32
    %158 = arith.sitofp %157 : i32 to f32
    %159 = arith.subf %154, %158 : f32
    %160 = arith.index_cast %157 : i32 to index
    %c0_65 = arith.constant 0 : index
    %c0_66 = arith.constant 0 : index
    %161 = vector.load %arg23[%160, %c0_65, %c0_66] : memref<4x16x128xf32, #tpu.memory_space<vmem>>, vector<1x16x128xf32>
    %162 = vector.shape_cast %161 : vector<1x16x128xf32> to vector<16x128xf32>
    %cst_67 = arith.constant 1.000000e+00 : f32
    %163 = arith.subf %cst_67, %159 : f32
    %164 = vector.broadcast %163 : f32 to vector<16x128xf32>
    %165 = arith.mulf %162, %164 : vector<16x128xf32>
    %c1_i32_68 = arith.constant 1 : i32
    %166 = arith.addi %157, %c1_i32_68 : i32
    %167 = arith.index_cast %166 : i32 to index
    %c0_69 = arith.constant 0 : index
    %c0_70 = arith.constant 0 : index
    %168 = vector.load %arg23[%167, %c0_69, %c0_70] : memref<4x16x128xf32, #tpu.memory_space<vmem>>, vector<1x16x128xf32>
    %169 = vector.shape_cast %168 : vector<1x16x128xf32> to vector<16x128xf32>
    %170 = vector.broadcast %159 : f32 to vector<16x128xf32>
    %171 = arith.mulf %169, %170 : vector<16x128xf32>
    %172 = arith.addf %165, %171 : vector<16x128xf32>
    %173 = arith.addf %153, %172 : vector<16x128xf32>
    %c48 = arith.constant 48 : index
    %c0_71 = arith.constant 0 : index
    %174 = vector.load %arg24[%c48, %c0_71] : memref<256x128xf32, #tpu.memory_space<vmem>>, vector<16x128xf32>
    tpu.vector_store %arg24[%c48, %c0_71], %173 {strides = array<i32>} : memref<256x128xf32, #tpu.memory_space<vmem>>, vector<16x128xf32>,
    %c16_i32_72 = arith.constant 16 : i32
    %175 = arith.muli %arg1, %c16_i32_72 : i32
    %c4_i32 = arith.constant 4 : i32
    %176 = arith.addi %175, %c4_i32 : i32
    %177 = arith.sitofp %176 : i32 to f32
    %cst_73 = arith.constant 0.466666669 : f32
    %178 = arith.mulf %177, %cst_73 : f32
    %179 = math.floor %178 : f32
    %cst_74 = arith.constant 6.000000e+00 : f32
    %180 = arith.minimumf %179, %cst_74 : f32
    %181 = arith.fptosi %180 : f32 to i32
    %182 = arith.sitofp %181 : i32 to f32
    %183 = arith.subf %178, %182 : f32
    %184 = arith.index_cast %181 : i32 to index
    %c0_75 = arith.constant 0 : index
    %c0_76 = arith.constant 0 : index
    %185 = vector.load %arg22[%184, %c0_75, %c0_76] : memref<8x16x128xf32, #tpu.memory_space<vmem>>, vector<1x16x128xf32>
    %186 = vector.shape_cast %185 : vector<1x16x128xf32> to vector<16x128xf32>
    %cst_77 = arith.constant 1.000000e+00 : f32
    %187 = arith.subf %cst_77, %183 : f32
    %188 = vector.broadcast %187 : f32 to vector<16x128xf32>
    %189 = arith.mulf %186, %188 : vector<16x128xf32>
    %c1_i32_78 = arith.constant 1 : i32
    %190 = arith.addi %181, %c1_i32_78 : i32
    %191 = arith.index_cast %190 : i32 to index
    %c0_79 = arith.constant 0 : index
    %c0_80 = arith.constant 0 : index
    %192 = vector.load %arg22[%191, %c0_79, %c0_80] : memref<8x16x128xf32, #tpu.memory_space<vmem>>, vector<1x16x128xf32>
    %193 = vector.shape_cast %192 : vector<1x16x128xf32> to vector<16x128xf32>
    %194 = vector.broadcast %183 : f32 to vector<16x128xf32>
    %195 = arith.mulf %193, %194 : vector<16x128xf32>
    %196 = arith.addf %189, %195 : vector<16x128xf32>
    %cst_81 = arith.constant 2.000000e-01 : f32
    %197 = arith.mulf %177, %cst_81 : f32
    %198 = math.floor %197 : f32
    %cst_82 = arith.constant 2.000000e+00 : f32
    %199 = arith.minimumf %198, %cst_82 : f32
    %200 = arith.fptosi %199 : f32 to i32
    %201 = arith.sitofp %200 : i32 to f32
    %202 = arith.subf %197, %201 : f32
    %203 = arith.index_cast %200 : i32 to index
    %c0_83 = arith.constant 0 : index
    %c0_84 = arith.constant 0 : index
    %204 = vector.load %arg23[%203, %c0_83, %c0_84] : memref<4x16x128xf32, #tpu.memory_space<vmem>>, vector<1x16x128xf32>
    %205 = vector.shape_cast %204 : vector<1x16x128xf32> to vector<16x128xf32>
    %cst_85 = arith.constant 1.000000e+00 : f32
    %206 = arith.subf %cst_85, %202 : f32
    %207 = vector.broadcast %206 : f32 to vector<16x128xf32>
    %208 = arith.mulf %205, %207 : vector<16x128xf32>
    %c1_i32_86 = arith.constant 1 : i32
    %209 = arith.addi %200, %c1_i32_86 : i32
    %210 = arith.index_cast %209 : i32 to index
    %c0_87 = arith.constant 0 : index
    %c0_88 = arith.constant 0 : index
    %211 = vector.load %arg23[%210, %c0_87, %c0_88] : memref<4x16x128xf32, #tpu.memory_space<vmem>>, vector<1x16x128xf32>
    %212 = vector.shape_cast %211 : vector<1x16x128xf32> to vector<16x128xf32>
    %213 = vector.broadcast %202 : f32 to vector<16x128xf32>
    %214 = arith.mulf %212, %213 : vector<16x128xf32>
    %215 = arith.addf %208, %214 : vector<16x128xf32>
    %216 = arith.addf %196, %215 : vector<16x128xf32>
    %c64 = arith.constant 64 : index
    %c0_89 = arith.constant 0 : index
    %217 = vector.load %arg24[%c64, %c0_89] : memref<256x128xf32, #tpu.memory_space<vmem>>, vector<16x128xf32>
    tpu.vector_store %arg24[%c64, %c0_89], %216 {strides = array<i32>} : memref<256x128xf32, #tpu.memory_space<vmem>>, vector<16x128xf32>,
    %c16_i32_90 = arith.constant 16 : i32
    %218 = arith.muli %arg1, %c16_i32_90 : i32
    %c5_i32 = arith.constant 5 : i32
    %219 = arith.addi %218, %c5_i32 : i32
    %220 = arith.sitofp %219 : i32 to f32
    %cst_91 = arith.constant 0.466666669 : f32
    %221 = arith.mulf %220, %cst_91 : f32
    %222 = math.floor %221 : f32
    %cst_92 = arith.constant 6.000000e+00 : f32
    %223 = arith.minimumf %222, %cst_92 : f32
    %224 = arith.fptosi %223 : f32 to i32
    %225 = arith.sitofp %224 : i32 to f32
    %226 = arith.subf %221, %225 : f32
    %227 = arith.index_cast %224 : i32 to index
    %c0_93 = arith.constant 0 : index
    %c0_94 = arith.constant 0 : index
    %228 = vector.load %arg22[%227, %c0_93, %c0_94] : memref<8x16x128xf32, #tpu.memory_space<vmem>>, vector<1x16x128xf32>
    %229 = vector.shape_cast %228 : vector<1x16x128xf32> to vector<16x128xf32>
    %cst_95 = arith.constant 1.000000e+00 : f32
    %230 = arith.subf %cst_95, %226 : f32
    %231 = vector.broadcast %230 : f32 to vector<16x128xf32>
    %232 = arith.mulf %229, %231 : vector<16x128xf32>
    %c1_i32_96 = arith.constant 1 : i32
    %233 = arith.addi %224, %c1_i32_96 : i32
    %234 = arith.index_cast %233 : i32 to index
    %c0_97 = arith.constant 0 : index
    %c0_98 = arith.constant 0 : index
    %235 = vector.load %arg22[%234, %c0_97, %c0_98] : memref<8x16x128xf32, #tpu.memory_space<vmem>>, vector<1x16x128xf32>
    %236 = vector.shape_cast %235 : vector<1x16x128xf32> to vector<16x128xf32>
    %237 = vector.broadcast %226 : f32 to vector<16x128xf32>
    %238 = arith.mulf %236, %237 : vector<16x128xf32>
    %239 = arith.addf %232, %238 : vector<16x128xf32>
    %cst_99 = arith.constant 2.000000e-01 : f32
    %240 = arith.mulf %220, %cst_99 : f32
    %241 = math.floor %240 : f32
    %cst_100 = arith.constant 2.000000e+00 : f32
    %242 = arith.minimumf %241, %cst_100 : f32
    %243 = arith.fptosi %242 : f32 to i32
    %244 = arith.sitofp %243 : i32 to f32
    %245 = arith.subf %240, %244 : f32
    %246 = arith.index_cast %243 : i32 to index
    %c0_101 = arith.constant 0 : index
    %c0_102 = arith.constant 0 : index
    %247 = vector.load %arg23[%246, %c0_101, %c0_102] : memref<4x16x128xf32, #tpu.memory_space<vmem>>, vector<1x16x128xf32>
    %248 = vector.shape_cast %247 : vector<1x16x128xf32> to vector<16x128xf32>
    %cst_103 = arith.constant 1.000000e+00 : f32
    %249 = arith.subf %cst_103, %245 : f32
    %250 = vector.broadcast %249 : f32 to vector<16x128xf32>
    %251 = arith.mulf %248, %250 : vector<16x128xf32>
    %c1_i32_104 = arith.constant 1 : i32
    %252 = arith.addi %243, %c1_i32_104 : i32
    %253 = arith.index_cast %252 : i32 to index
    %c0_105 = arith.constant 0 : index
    %c0_106 = arith.constant 0 : index
    %254 = vector.load %arg23[%253, %c0_105, %c0_106] : memref<4x16x128xf32, #tpu.memory_space<vmem>>, vector<1x16x128xf32>
    %255 = vector.shape_cast %254 : vector<1x16x128xf32> to vector<16x128xf32>
    %256 = vector.broadcast %245 : f32 to vector<16x128xf32>
    %257 = arith.mulf %255, %256 : vector<16x128xf32>
    %258 = arith.addf %251, %257 : vector<16x128xf32>
    %259 = arith.addf %239, %258 : vector<16x128xf32>
    %c80 = arith.constant 80 : index
    %c0_107 = arith.constant 0 : index
    %260 = vector.load %arg24[%c80, %c0_107] : memref<256x128xf32, #tpu.memory_space<vmem>>, vector<16x128xf32>
    tpu.vector_store %arg24[%c80, %c0_107], %259 {strides = array<i32>} : memref<256x128xf32, #tpu.memory_space<vmem>>, vector<16x128xf32>,
    %c16_i32_108 = arith.constant 16 : i32
    %261 = arith.muli %arg1, %c16_i32_108 : i32
    %c6_i32 = arith.constant 6 : i32
    %262 = arith.addi %261, %c6_i32 : i32
    %263 = arith.sitofp %262 : i32 to f32
    %cst_109 = arith.constant 0.466666669 : f32
    %264 = arith.mulf %263, %cst_109 : f32
    %265 = math.floor %264 : f32
    %cst_110 = arith.constant 6.000000e+00 : f32
    %266 = arith.minimumf %265, %cst_110 : f32
    %267 = arith.fptosi %266 : f32 to i32
    %268 = arith.sitofp %267 : i32 to f32
    %269 = arith.subf %264, %268 : f32
    %270 = arith.index_cast %267 : i32 to index
    %c0_111 = arith.constant 0 : index
    %c0_112 = arith.constant 0 : index
    %271 = vector.load %arg22[%270, %c0_111, %c0_112] : memref<8x16x128xf32, #tpu.memory_space<vmem>>, vector<1x16x128xf32>
    %272 = vector.shape_cast %271 : vector<1x16x128xf32> to vector<16x128xf32>
    %cst_113 = arith.constant 1.000000e+00 : f32
    %273 = arith.subf %cst_113, %269 : f32
    %274 = vector.broadcast %273 : f32 to vector<16x128xf32>
    %275 = arith.mulf %272, %274 : vector<16x128xf32>
    %c1_i32_114 = arith.constant 1 : i32
    %276 = arith.addi %267, %c1_i32_114 : i32
    %277 = arith.index_cast %276 : i32 to index
    %c0_115 = arith.constant 0 : index
    %c0_116 = arith.constant 0 : index
    %278 = vector.load %arg22[%277, %c0_115, %c0_116] : memref<8x16x128xf32, #tpu.memory_space<vmem>>, vector<1x16x128xf32>
    %279 = vector.shape_cast %278 : vector<1x16x128xf32> to vector<16x128xf32>
    %280 = vector.broadcast %269 : f32 to vector<16x128xf32>
    %281 = arith.mulf %279, %280 : vector<16x128xf32>
    %282 = arith.addf %275, %281 : vector<16x128xf32>
    %cst_117 = arith.constant 2.000000e-01 : f32
    %283 = arith.mulf %263, %cst_117 : f32
    %284 = math.floor %283 : f32
    %cst_118 = arith.constant 2.000000e+00 : f32
    %285 = arith.minimumf %284, %cst_118 : f32
    %286 = arith.fptosi %285 : f32 to i32
    %287 = arith.sitofp %286 : i32 to f32
    %288 = arith.subf %283, %287 : f32
    %289 = arith.index_cast %286 : i32 to index
    %c0_119 = arith.constant 0 : index
    %c0_120 = arith.constant 0 : index
    %290 = vector.load %arg23[%289, %c0_119, %c0_120] : memref<4x16x128xf32, #tpu.memory_space<vmem>>, vector<1x16x128xf32>
    %291 = vector.shape_cast %290 : vector<1x16x128xf32> to vector<16x128xf32>
    %cst_121 = arith.constant 1.000000e+00 : f32
    %292 = arith.subf %cst_121, %288 : f32
    %293 = vector.broadcast %292 : f32 to vector<16x128xf32>
    %294 = arith.mulf %291, %293 : vector<16x128xf32>
    %c1_i32_122 = arith.constant 1 : i32
    %295 = arith.addi %286, %c1_i32_122 : i32
    %296 = arith.index_cast %295 : i32 to index
    %c0_123 = arith.constant 0 : index
    %c0_124 = arith.constant 0 : index
    %297 = vector.load %arg23[%296, %c0_123, %c0_124] : memref<4x16x128xf32, #tpu.memory_space<vmem>>, vector<1x16x128xf32>
    %298 = vector.shape_cast %297 : vector<1x16x128xf32> to vector<16x128xf32>
    %299 = vector.broadcast %288 : f32 to vector<16x128xf32>
    %300 = arith.mulf %298, %299 : vector<16x128xf32>
    %301 = arith.addf %294, %300 : vector<16x128xf32>
    %302 = arith.addf %282, %301 : vector<16x128xf32>
    %c96 = arith.constant 96 : index
    %c0_125 = arith.constant 0 : index
    %303 = vector.load %arg24[%c96, %c0_125] : memref<256x128xf32, #tpu.memory_space<vmem>>, vector<16x128xf32>
    tpu.vector_store %arg24[%c96, %c0_125], %302 {strides = array<i32>} : memref<256x128xf32, #tpu.memory_space<vmem>>, vector<16x128xf32>,
    %c16_i32_126 = arith.constant 16 : i32
    %304 = arith.muli %arg1, %c16_i32_126 : i32
    %c7_i32 = arith.constant 7 : i32
    %305 = arith.addi %304, %c7_i32 : i32
    %306 = arith.sitofp %305 : i32 to f32
    %cst_127 = arith.constant 0.466666669 : f32
    %307 = arith.mulf %306, %cst_127 : f32
    %308 = math.floor %307 : f32
    %cst_128 = arith.constant 6.000000e+00 : f32
    %309 = arith.minimumf %308, %cst_128 : f32
    %310 = arith.fptosi %309 : f32 to i32
    %311 = arith.sitofp %310 : i32 to f32
    %312 = arith.subf %307, %311 : f32
    %313 = arith.index_cast %310 : i32 to index
    %c0_129 = arith.constant 0 : index
    %c0_130 = arith.constant 0 : index
    %314 = vector.load %arg22[%313, %c0_129, %c0_130] : memref<8x16x128xf32, #tpu.memory_space<vmem>>, vector<1x16x128xf32>
    %315 = vector.shape_cast %314 : vector<1x16x128xf32> to vector<16x128xf32>
    %cst_131 = arith.constant 1.000000e+00 : f32
    %316 = arith.subf %cst_131, %312 : f32
    %317 = vector.broadcast %316 : f32 to vector<16x128xf32>
    %318 = arith.mulf %315, %317 : vector<16x128xf32>
    %c1_i32_132 = arith.constant 1 : i32
    %319 = arith.addi %310, %c1_i32_132 : i32
    %320 = arith.index_cast %319 : i32 to index
    %c0_133 = arith.constant 0 : index
    %c0_134 = arith.constant 0 : index
    %321 = vector.load %arg22[%320, %c0_133, %c0_134] : memref<8x16x128xf32, #tpu.memory_space<vmem>>, vector<1x16x128xf32>
    %322 = vector.shape_cast %321 : vector<1x16x128xf32> to vector<16x128xf32>
    %323 = vector.broadcast %312 : f32 to vector<16x128xf32>
    %324 = arith.mulf %322, %323 : vector<16x128xf32>
    %325 = arith.addf %318, %324 : vector<16x128xf32>
    %cst_135 = arith.constant 2.000000e-01 : f32
    %326 = arith.mulf %306, %cst_135 : f32
    %327 = math.floor %326 : f32
    %cst_136 = arith.constant 2.000000e+00 : f32
    %328 = arith.minimumf %327, %cst_136 : f32
    %329 = arith.fptosi %328 : f32 to i32
    %330 = arith.sitofp %329 : i32 to f32
    %331 = arith.subf %326, %330 : f32
    %332 = arith.index_cast %329 : i32 to index
    %c0_137 = arith.constant 0 : index
    %c0_138 = arith.constant 0 : index
    %333 = vector.load %arg23[%332, %c0_137, %c0_138] : memref<4x16x128xf32, #tpu.memory_space<vmem>>, vector<1x16x128xf32>
    %334 = vector.shape_cast %333 : vector<1x16x128xf32> to vector<16x128xf32>
    %cst_139 = arith.constant 1.000000e+00 : f32
    %335 = arith.subf %cst_139, %331 : f32
    %336 = vector.broadcast %335 : f32 to vector<16x128xf32>
    %337 = arith.mulf %334, %336 : vector<16x128xf32>
    %c1_i32_140 = arith.constant 1 : i32
    %338 = arith.addi %329, %c1_i32_140 : i32
    %339 = arith.index_cast %338 : i32 to index
    %c0_141 = arith.constant 0 : index
    %c0_142 = arith.constant 0 : index
    %340 = vector.load %arg23[%339, %c0_141, %c0_142] : memref<4x16x128xf32, #tpu.memory_space<vmem>>, vector<1x16x128xf32>
    %341 = vector.shape_cast %340 : vector<1x16x128xf32> to vector<16x128xf32>
    %342 = vector.broadcast %331 : f32 to vector<16x128xf32>
    %343 = arith.mulf %341, %342 : vector<16x128xf32>
    %344 = arith.addf %337, %343 : vector<16x128xf32>
    %345 = arith.addf %325, %344 : vector<16x128xf32>
    %c112 = arith.constant 112 : index
    %c0_143 = arith.constant 0 : index
    %346 = vector.load %arg24[%c112, %c0_143] : memref<256x128xf32, #tpu.memory_space<vmem>>, vector<16x128xf32>
    tpu.vector_store %arg24[%c112, %c0_143], %345 {strides = array<i32>} : memref<256x128xf32, #tpu.memory_space<vmem>>, vector<16x128xf32>,
    %c16_i32_144 = arith.constant 16 : i32
    %347 = arith.muli %arg1, %c16_i32_144 : i32
    %c8_i32 = arith.constant 8 : i32
    %348 = arith.addi %347, %c8_i32 : i32
    %349 = arith.sitofp %348 : i32 to f32
    %cst_145 = arith.constant 0.466666669 : f32
    %350 = arith.mulf %349, %cst_145 : f32
    %351 = math.floor %350 : f32
    %cst_146 = arith.constant 6.000000e+00 : f32
    %352 = arith.minimumf %351, %cst_146 : f32
    %353 = arith.fptosi %352 : f32 to i32
    %354 = arith.sitofp %353 : i32 to f32
    %355 = arith.subf %350, %354 : f32
    %356 = arith.index_cast %353 : i32 to index
    %c0_147 = arith.constant 0 : index
    %c0_148 = arith.constant 0 : index
    %357 = vector.load %arg22[%356, %c0_147, %c0_148] : memref<8x16x128xf32, #tpu.memory_space<vmem>>, vector<1x16x128xf32>
    %358 = vector.shape_cast %357 : vector<1x16x128xf32> to vector<16x128xf32>
    %cst_149 = arith.constant 1.000000e+00 : f32
    %359 = arith.subf %cst_149, %355 : f32
    %360 = vector.broadcast %359 : f32 to vector<16x128xf32>
    %361 = arith.mulf %358, %360 : vector<16x128xf32>
    %c1_i32_150 = arith.constant 1 : i32
    %362 = arith.addi %353, %c1_i32_150 : i32
    %363 = arith.index_cast %362 : i32 to index
    %c0_151 = arith.constant 0 : index
    %c0_152 = arith.constant 0 : index
    %364 = vector.load %arg22[%363, %c0_151, %c0_152] : memref<8x16x128xf32, #tpu.memory_space<vmem>>, vector<1x16x128xf32>
    %365 = vector.shape_cast %364 : vector<1x16x128xf32> to vector<16x128xf32>
    %366 = vector.broadcast %355 : f32 to vector<16x128xf32>
    %367 = arith.mulf %365, %366 : vector<16x128xf32>
    %368 = arith.addf %361, %367 : vector<16x128xf32>
    %cst_153 = arith.constant 2.000000e-01 : f32
    %369 = arith.mulf %349, %cst_153 : f32
    %370 = math.floor %369 : f32
    %cst_154 = arith.constant 2.000000e+00 : f32
    %371 = arith.minimumf %370, %cst_154 : f32
    %372 = arith.fptosi %371 : f32 to i32
    %373 = arith.sitofp %372 : i32 to f32
    %374 = arith.subf %369, %373 : f32
    %375 = arith.index_cast %372 : i32 to index
    %c0_155 = arith.constant 0 : index
    %c0_156 = arith.constant 0 : index
    %376 = vector.load %arg23[%375, %c0_155, %c0_156] : memref<4x16x128xf32, #tpu.memory_space<vmem>>, vector<1x16x128xf32>
    %377 = vector.shape_cast %376 : vector<1x16x128xf32> to vector<16x128xf32>
    %cst_157 = arith.constant 1.000000e+00 : f32
    %378 = arith.subf %cst_157, %374 : f32
    %379 = vector.broadcast %378 : f32 to vector<16x128xf32>
    %380 = arith.mulf %377, %379 : vector<16x128xf32>
    %c1_i32_158 = arith.constant 1 : i32
    %381 = arith.addi %372, %c1_i32_158 : i32
    %382 = arith.index_cast %381 : i32 to index
    %c0_159 = arith.constant 0 : index
    %c0_160 = arith.constant 0 : index
    %383 = vector.load %arg23[%382, %c0_159, %c0_160] : memref<4x16x128xf32, #tpu.memory_space<vmem>>, vector<1x16x128xf32>
    %384 = vector.shape_cast %383 : vector<1x16x128xf32> to vector<16x128xf32>
    %385 = vector.broadcast %374 : f32 to vector<16x128xf32>
    %386 = arith.mulf %384, %385 : vector<16x128xf32>
    %387 = arith.addf %380, %386 : vector<16x128xf32>
    %388 = arith.addf %368, %387 : vector<16x128xf32>
    %c128 = arith.constant 128 : index
    %c0_161 = arith.constant 0 : index
    %389 = vector.load %arg24[%c128, %c0_161] : memref<256x128xf32, #tpu.memory_space<vmem>>, vector<16x128xf32>
    tpu.vector_store %arg24[%c128, %c0_161], %388 {strides = array<i32>} : memref<256x128xf32, #tpu.memory_space<vmem>>, vector<16x128xf32>,
    %c16_i32_162 = arith.constant 16 : i32
    %390 = arith.muli %arg1, %c16_i32_162 : i32
    %c9_i32 = arith.constant 9 : i32
    %391 = arith.addi %390, %c9_i32 : i32
    %392 = arith.sitofp %391 : i32 to f32
    %cst_163 = arith.constant 0.466666669 : f32
    %393 = arith.mulf %392, %cst_163 : f32
    %394 = math.floor %393 : f32
    %cst_164 = arith.constant 6.000000e+00 : f32
    %395 = arith.minimumf %394, %cst_164 : f32
    %396 = arith.fptosi %395 : f32 to i32
    %397 = arith.sitofp %396 : i32 to f32
    %398 = arith.subf %393, %397 : f32
    %399 = arith.index_cast %396 : i32 to index
    %c0_165 = arith.constant 0 : index
    %c0_166 = arith.constant 0 : index
    %400 = vector.load %arg22[%399, %c0_165, %c0_166] : memref<8x16x128xf32, #tpu.memory_space<vmem>>, vector<1x16x128xf32>
    %401 = vector.shape_cast %400 : vector<1x16x128xf32> to vector<16x128xf32>
    %cst_167 = arith.constant 1.000000e+00 : f32
    %402 = arith.subf %cst_167, %398 : f32
    %403 = vector.broadcast %402 : f32 to vector<16x128xf32>
    %404 = arith.mulf %401, %403 : vector<16x128xf32>
    %c1_i32_168 = arith.constant 1 : i32
    %405 = arith.addi %396, %c1_i32_168 : i32
    %406 = arith.index_cast %405 : i32 to index
    %c0_169 = arith.constant 0 : index
    %c0_170 = arith.constant 0 : index
    %407 = vector.load %arg22[%406, %c0_169, %c0_170] : memref<8x16x128xf32, #tpu.memory_space<vmem>>, vector<1x16x128xf32>
    %408 = vector.shape_cast %407 : vector<1x16x128xf32> to vector<16x128xf32>
    %409 = vector.broadcast %398 : f32 to vector<16x128xf32>
    %410 = arith.mulf %408, %409 : vector<16x128xf32>
    %411 = arith.addf %404, %410 : vector<16x128xf32>
    %cst_171 = arith.constant 2.000000e-01 : f32
    %412 = arith.mulf %392, %cst_171 : f32
    %413 = math.floor %412 : f32
    %cst_172 = arith.constant 2.000000e+00 : f32
    %414 = arith.minimumf %413, %cst_172 : f32
    %415 = arith.fptosi %414 : f32 to i32
    %416 = arith.sitofp %415 : i32 to f32
    %417 = arith.subf %412, %416 : f32
    %418 = arith.index_cast %415 : i32 to index
    %c0_173 = arith.constant 0 : index
    %c0_174 = arith.constant 0 : index
    %419 = vector.load %arg23[%418, %c0_173, %c0_174] : memref<4x16x128xf32, #tpu.memory_space<vmem>>, vector<1x16x128xf32>
    %420 = vector.shape_cast %419 : vector<1x16x128xf32> to vector<16x128xf32>
    %cst_175 = arith.constant 1.000000e+00 : f32
    %421 = arith.subf %cst_175, %417 : f32
    %422 = vector.broadcast %421 : f32 to vector<16x128xf32>
    %423 = arith.mulf %420, %422 : vector<16x128xf32>
    %c1_i32_176 = arith.constant 1 : i32
    %424 = arith.addi %415, %c1_i32_176 : i32
    %425 = arith.index_cast %424 : i32 to index
    %c0_177 = arith.constant 0 : index
    %c0_178 = arith.constant 0 : index
    %426 = vector.load %arg23[%425, %c0_177, %c0_178] : memref<4x16x128xf32, #tpu.memory_space<vmem>>, vector<1x16x128xf32>
    %427 = vector.shape_cast %426 : vector<1x16x128xf32> to vector<16x128xf32>
    %428 = vector.broadcast %417 : f32 to vector<16x128xf32>
    %429 = arith.mulf %427, %428 : vector<16x128xf32>
    %430 = arith.addf %423, %429 : vector<16x128xf32>
    %431 = arith.addf %411, %430 : vector<16x128xf32>
    %c144 = arith.constant 144 : index
    %c0_179 = arith.constant 0 : index
    %432 = vector.load %arg24[%c144, %c0_179] : memref<256x128xf32, #tpu.memory_space<vmem>>, vector<16x128xf32>
    tpu.vector_store %arg24[%c144, %c0_179], %431 {strides = array<i32>} : memref<256x128xf32, #tpu.memory_space<vmem>>, vector<16x128xf32>,
    %c16_i32_180 = arith.constant 16 : i32
    %433 = arith.muli %arg1, %c16_i32_180 : i32
    %c10_i32 = arith.constant 10 : i32
    %434 = arith.addi %433, %c10_i32 : i32
    %435 = arith.sitofp %434 : i32 to f32
    %cst_181 = arith.constant 0.466666669 : f32
    %436 = arith.mulf %435, %cst_181 : f32
    %437 = math.floor %436 : f32
    %cst_182 = arith.constant 6.000000e+00 : f32
    %438 = arith.minimumf %437, %cst_182 : f32
    %439 = arith.fptosi %438 : f32 to i32
    %440 = arith.sitofp %439 : i32 to f32
    %441 = arith.subf %436, %440 : f32
    %442 = arith.index_cast %439 : i32 to index
    %c0_183 = arith.constant 0 : index
    %c0_184 = arith.constant 0 : index
    %443 = vector.load %arg22[%442, %c0_183, %c0_184] : memref<8x16x128xf32, #tpu.memory_space<vmem>>, vector<1x16x128xf32>
    %444 = vector.shape_cast %443 : vector<1x16x128xf32> to vector<16x128xf32>
    %cst_185 = arith.constant 1.000000e+00 : f32
    %445 = arith.subf %cst_185, %441 : f32
    %446 = vector.broadcast %445 : f32 to vector<16x128xf32>
    %447 = arith.mulf %444, %446 : vector<16x128xf32>
    %c1_i32_186 = arith.constant 1 : i32
    %448 = arith.addi %439, %c1_i32_186 : i32
    %449 = arith.index_cast %448 : i32 to index
    %c0_187 = arith.constant 0 : index
    %c0_188 = arith.constant 0 : index
    %450 = vector.load %arg22[%449, %c0_187, %c0_188] : memref<8x16x128xf32, #tpu.memory_space<vmem>>, vector<1x16x128xf32>
    %451 = vector.shape_cast %450 : vector<1x16x128xf32> to vector<16x128xf32>
    %452 = vector.broadcast %441 : f32 to vector<16x128xf32>
    %453 = arith.mulf %451, %452 : vector<16x128xf32>
    %454 = arith.addf %447, %453 : vector<16x128xf32>
    %cst_189 = arith.constant 2.000000e-01 : f32
    %455 = arith.mulf %435, %cst_189 : f32
    %456 = math.floor %455 : f32
    %cst_190 = arith.constant 2.000000e+00 : f32
    %457 = arith.minimumf %456, %cst_190 : f32
    %458 = arith.fptosi %457 : f32 to i32
    %459 = arith.sitofp %458 : i32 to f32
    %460 = arith.subf %455, %459 : f32
    %461 = arith.index_cast %458 : i32 to index
    %c0_191 = arith.constant 0 : index
    %c0_192 = arith.constant 0 : index
    %462 = vector.load %arg23[%461, %c0_191, %c0_192] : memref<4x16x128xf32, #tpu.memory_space<vmem>>, vector<1x16x128xf32>
    %463 = vector.shape_cast %462 : vector<1x16x128xf32> to vector<16x128xf32>
    %cst_193 = arith.constant 1.000000e+00 : f32
    %464 = arith.subf %cst_193, %460 : f32
    %465 = vector.broadcast %464 : f32 to vector<16x128xf32>
    %466 = arith.mulf %463, %465 : vector<16x128xf32>
    %c1_i32_194 = arith.constant 1 : i32
    %467 = arith.addi %458, %c1_i32_194 : i32
    %468 = arith.index_cast %467 : i32 to index
    %c0_195 = arith.constant 0 : index
    %c0_196 = arith.constant 0 : index
    %469 = vector.load %arg23[%468, %c0_195, %c0_196] : memref<4x16x128xf32, #tpu.memory_space<vmem>>, vector<1x16x128xf32>
    %470 = vector.shape_cast %469 : vector<1x16x128xf32> to vector<16x128xf32>
    %471 = vector.broadcast %460 : f32 to vector<16x128xf32>
    %472 = arith.mulf %470, %471 : vector<16x128xf32>
    %473 = arith.addf %466, %472 : vector<16x128xf32>
    %474 = arith.addf %454, %473 : vector<16x128xf32>
    %c160 = arith.constant 160 : index
    %c0_197 = arith.constant 0 : index
    %475 = vector.load %arg24[%c160, %c0_197] : memref<256x128xf32, #tpu.memory_space<vmem>>, vector<16x128xf32>
    tpu.vector_store %arg24[%c160, %c0_197], %474 {strides = array<i32>} : memref<256x128xf32, #tpu.memory_space<vmem>>, vector<16x128xf32>,
    %c16_i32_198 = arith.constant 16 : i32
    %476 = arith.muli %arg1, %c16_i32_198 : i32
    %c11_i32 = arith.constant 11 : i32
    %477 = arith.addi %476, %c11_i32 : i32
    %478 = arith.sitofp %477 : i32 to f32
    %cst_199 = arith.constant 0.466666669 : f32
    %479 = arith.mulf %478, %cst_199 : f32
    %480 = math.floor %479 : f32
    %cst_200 = arith.constant 6.000000e+00 : f32
    %481 = arith.minimumf %480, %cst_200 : f32
    %482 = arith.fptosi %481 : f32 to i32
    %483 = arith.sitofp %482 : i32 to f32
    %484 = arith.subf %479, %483 : f32
    %485 = arith.index_cast %482 : i32 to index
    %c0_201 = arith.constant 0 : index
    %c0_202 = arith.constant 0 : index
    %486 = vector.load %arg22[%485, %c0_201, %c0_202] : memref<8x16x128xf32, #tpu.memory_space<vmem>>, vector<1x16x128xf32>
    %487 = vector.shape_cast %486 : vector<1x16x128xf32> to vector<16x128xf32>
    %cst_203 = arith.constant 1.000000e+00 : f32
    %488 = arith.subf %cst_203, %484 : f32
    %489 = vector.broadcast %488 : f32 to vector<16x128xf32>
    %490 = arith.mulf %487, %489 : vector<16x128xf32>
    %c1_i32_204 = arith.constant 1 : i32
    %491 = arith.addi %482, %c1_i32_204 : i32
    %492 = arith.index_cast %491 : i32 to index
    %c0_205 = arith.constant 0 : index
    %c0_206 = arith.constant 0 : index
    %493 = vector.load %arg22[%492, %c0_205, %c0_206] : memref<8x16x128xf32, #tpu.memory_space<vmem>>, vector<1x16x128xf32>
    %494 = vector.shape_cast %493 : vector<1x16x128xf32> to vector<16x128xf32>
    %495 = vector.broadcast %484 : f32 to vector<16x128xf32>
    %496 = arith.mulf %494, %495 : vector<16x128xf32>
    %497 = arith.addf %490, %496 : vector<16x128xf32>
    %cst_207 = arith.constant 2.000000e-01 : f32
    %498 = arith.mulf %478, %cst_207 : f32
    %499 = math.floor %498 : f32
    %cst_208 = arith.constant 2.000000e+00 : f32
    %500 = arith.minimumf %499, %cst_208 : f32
    %501 = arith.fptosi %500 : f32 to i32
    %502 = arith.sitofp %501 : i32 to f32
    %503 = arith.subf %498, %502 : f32
    %504 = arith.index_cast %501 : i32 to index
    %c0_209 = arith.constant 0 : index
    %c0_210 = arith.constant 0 : index
    %505 = vector.load %arg23[%504, %c0_209, %c0_210] : memref<4x16x128xf32, #tpu.memory_space<vmem>>, vector<1x16x128xf32>
    %506 = vector.shape_cast %505 : vector<1x16x128xf32> to vector<16x128xf32>
    %cst_211 = arith.constant 1.000000e+00 : f32
    %507 = arith.subf %cst_211, %503 : f32
    %508 = vector.broadcast %507 : f32 to vector<16x128xf32>
    %509 = arith.mulf %506, %508 : vector<16x128xf32>
    %c1_i32_212 = arith.constant 1 : i32
    %510 = arith.addi %501, %c1_i32_212 : i32
    %511 = arith.index_cast %510 : i32 to index
    %c0_213 = arith.constant 0 : index
    %c0_214 = arith.constant 0 : index
    %512 = vector.load %arg23[%511, %c0_213, %c0_214] : memref<4x16x128xf32, #tpu.memory_space<vmem>>, vector<1x16x128xf32>
    %513 = vector.shape_cast %512 : vector<1x16x128xf32> to vector<16x128xf32>
    %514 = vector.broadcast %503 : f32 to vector<16x128xf32>
    %515 = arith.mulf %513, %514 : vector<16x128xf32>
    %516 = arith.addf %509, %515 : vector<16x128xf32>
    %517 = arith.addf %497, %516 : vector<16x128xf32>
    %c176 = arith.constant 176 : index
    %c0_215 = arith.constant 0 : index
    %518 = vector.load %arg24[%c176, %c0_215] : memref<256x128xf32, #tpu.memory_space<vmem>>, vector<16x128xf32>
    tpu.vector_store %arg24[%c176, %c0_215], %517 {strides = array<i32>} : memref<256x128xf32, #tpu.memory_space<vmem>>, vector<16x128xf32>,
    %c16_i32_216 = arith.constant 16 : i32
    %519 = arith.muli %arg1, %c16_i32_216 : i32
    %c12_i32 = arith.constant 12 : i32
    %520 = arith.addi %519, %c12_i32 : i32
    %521 = arith.sitofp %520 : i32 to f32
    %cst_217 = arith.constant 0.466666669 : f32
    %522 = arith.mulf %521, %cst_217 : f32
    %523 = math.floor %522 : f32
    %cst_218 = arith.constant 6.000000e+00 : f32
    %524 = arith.minimumf %523, %cst_218 : f32
    %525 = arith.fptosi %524 : f32 to i32
    %526 = arith.sitofp %525 : i32 to f32
    %527 = arith.subf %522, %526 : f32
    %528 = arith.index_cast %525 : i32 to index
    %c0_219 = arith.constant 0 : index
    %c0_220 = arith.constant 0 : index
    %529 = vector.load %arg22[%528, %c0_219, %c0_220] : memref<8x16x128xf32, #tpu.memory_space<vmem>>, vector<1x16x128xf32>
    %530 = vector.shape_cast %529 : vector<1x16x128xf32> to vector<16x128xf32>
    %cst_221 = arith.constant 1.000000e+00 : f32
    %531 = arith.subf %cst_221, %527 : f32
    %532 = vector.broadcast %531 : f32 to vector<16x128xf32>
    %533 = arith.mulf %530, %532 : vector<16x128xf32>
    %c1_i32_222 = arith.constant 1 : i32
    %534 = arith.addi %525, %c1_i32_222 : i32
    %535 = arith.index_cast %534 : i32 to index
    %c0_223 = arith.constant 0 : index
    %c0_224 = arith.constant 0 : index
    %536 = vector.load %arg22[%535, %c0_223, %c0_224] : memref<8x16x128xf32, #tpu.memory_space<vmem>>, vector<1x16x128xf32>
    %537 = vector.shape_cast %536 : vector<1x16x128xf32> to vector<16x128xf32>
    %538 = vector.broadcast %527 : f32 to vector<16x128xf32>
    %539 = arith.mulf %537, %538 : vector<16x128xf32>
    %540 = arith.addf %533, %539 : vector<16x128xf32>
    %cst_225 = arith.constant 2.000000e-01 : f32
    %541 = arith.mulf %521, %cst_225 : f32
    %542 = math.floor %541 : f32
    %cst_226 = arith.constant 2.000000e+00 : f32
    %543 = arith.minimumf %542, %cst_226 : f32
    %544 = arith.fptosi %543 : f32 to i32
    %545 = arith.sitofp %544 : i32 to f32
    %546 = arith.subf %541, %545 : f32
    %547 = arith.index_cast %544 : i32 to index
    %c0_227 = arith.constant 0 : index
    %c0_228 = arith.constant 0 : index
    %548 = vector.load %arg23[%547, %c0_227, %c0_228] : memref<4x16x128xf32, #tpu.memory_space<vmem>>, vector<1x16x128xf32>
    %549 = vector.shape_cast %548 : vector<1x16x128xf32> to vector<16x128xf32>
    %cst_229 = arith.constant 1.000000e+00 : f32
    %550 = arith.subf %cst_229, %546 : f32
    %551 = vector.broadcast %550 : f32 to vector<16x128xf32>
    %552 = arith.mulf %549, %551 : vector<16x128xf32>
    %c1_i32_230 = arith.constant 1 : i32
    %553 = arith.addi %544, %c1_i32_230 : i32
    %554 = arith.index_cast %553 : i32 to index
    %c0_231 = arith.constant 0 : index
    %c0_232 = arith.constant 0 : index
    %555 = vector.load %arg23[%554, %c0_231, %c0_232] : memref<4x16x128xf32, #tpu.memory_space<vmem>>, vector<1x16x128xf32>
    %556 = vector.shape_cast %555 : vector<1x16x128xf32> to vector<16x128xf32>
    %557 = vector.broadcast %546 : f32 to vector<16x128xf32>
    %558 = arith.mulf %556, %557 : vector<16x128xf32>
    %559 = arith.addf %552, %558 : vector<16x128xf32>
    %560 = arith.addf %540, %559 : vector<16x128xf32>
    %c192 = arith.constant 192 : index
    %c0_233 = arith.constant 0 : index
    %561 = vector.load %arg24[%c192, %c0_233] : memref<256x128xf32, #tpu.memory_space<vmem>>, vector<16x128xf32>
    tpu.vector_store %arg24[%c192, %c0_233], %560 {strides = array<i32>} : memref<256x128xf32, #tpu.memory_space<vmem>>, vector<16x128xf32>,
    %c16_i32_234 = arith.constant 16 : i32
    %562 = arith.muli %arg1, %c16_i32_234 : i32
    %c13_i32 = arith.constant 13 : i32
    %563 = arith.addi %562, %c13_i32 : i32
    %564 = arith.sitofp %563 : i32 to f32
    %cst_235 = arith.constant 0.466666669 : f32
    %565 = arith.mulf %564, %cst_235 : f32
    %566 = math.floor %565 : f32
    %cst_236 = arith.constant 6.000000e+00 : f32
    %567 = arith.minimumf %566, %cst_236 : f32
    %568 = arith.fptosi %567 : f32 to i32
    %569 = arith.sitofp %568 : i32 to f32
    %570 = arith.subf %565, %569 : f32
    %571 = arith.index_cast %568 : i32 to index
    %c0_237 = arith.constant 0 : index
    %c0_238 = arith.constant 0 : index
    %572 = vector.load %arg22[%571, %c0_237, %c0_238] : memref<8x16x128xf32, #tpu.memory_space<vmem>>, vector<1x16x128xf32>
    %573 = vector.shape_cast %572 : vector<1x16x128xf32> to vector<16x128xf32>
    %cst_239 = arith.constant 1.000000e+00 : f32
    %574 = arith.subf %cst_239, %570 : f32
    %575 = vector.broadcast %574 : f32 to vector<16x128xf32>
    %576 = arith.mulf %573, %575 : vector<16x128xf32>
    %c1_i32_240 = arith.constant 1 : i32
    %577 = arith.addi %568, %c1_i32_240 : i32
    %578 = arith.index_cast %577 : i32 to index
    %c0_241 = arith.constant 0 : index
    %c0_242 = arith.constant 0 : index
    %579 = vector.load %arg22[%578, %c0_241, %c0_242] : memref<8x16x128xf32, #tpu.memory_space<vmem>>, vector<1x16x128xf32>
    %580 = vector.shape_cast %579 : vector<1x16x128xf32> to vector<16x128xf32>
    %581 = vector.broadcast %570 : f32 to vector<16x128xf32>
    %582 = arith.mulf %580, %581 : vector<16x128xf32>
    %583 = arith.addf %576, %582 : vector<16x128xf32>
    %cst_243 = arith.constant 2.000000e-01 : f32
    %584 = arith.mulf %564, %cst_243 : f32
    %585 = math.floor %584 : f32
    %cst_244 = arith.constant 2.000000e+00 : f32
    %586 = arith.minimumf %585, %cst_244 : f32
    %587 = arith.fptosi %586 : f32 to i32
    %588 = arith.sitofp %587 : i32 to f32
    %589 = arith.subf %584, %588 : f32
    %590 = arith.index_cast %587 : i32 to index
    %c0_245 = arith.constant 0 : index
    %c0_246 = arith.constant 0 : index
    %591 = vector.load %arg23[%590, %c0_245, %c0_246] : memref<4x16x128xf32, #tpu.memory_space<vmem>>, vector<1x16x128xf32>
    %592 = vector.shape_cast %591 : vector<1x16x128xf32> to vector<16x128xf32>
    %cst_247 = arith.constant 1.000000e+00 : f32
    %593 = arith.subf %cst_247, %589 : f32
    %594 = vector.broadcast %593 : f32 to vector<16x128xf32>
    %595 = arith.mulf %592, %594 : vector<16x128xf32>
    %c1_i32_248 = arith.constant 1 : i32
    %596 = arith.addi %587, %c1_i32_248 : i32
    %597 = arith.index_cast %596 : i32 to index
    %c0_249 = arith.constant 0 : index
    %c0_250 = arith.constant 0 : index
    %598 = vector.load %arg23[%597, %c0_249, %c0_250] : memref<4x16x128xf32, #tpu.memory_space<vmem>>, vector<1x16x128xf32>
    %599 = vector.shape_cast %598 : vector<1x16x128xf32> to vector<16x128xf32>
    %600 = vector.broadcast %589 : f32 to vector<16x128xf32>
    %601 = arith.mulf %599, %600 : vector<16x128xf32>
    %602 = arith.addf %595, %601 : vector<16x128xf32>
    %603 = arith.addf %583, %602 : vector<16x128xf32>
    %c208 = arith.constant 208 : index
    %c0_251 = arith.constant 0 : index
    %604 = vector.load %arg24[%c208, %c0_251] : memref<256x128xf32, #tpu.memory_space<vmem>>, vector<16x128xf32>
    tpu.vector_store %arg24[%c208, %c0_251], %603 {strides = array<i32>} : memref<256x128xf32, #tpu.memory_space<vmem>>, vector<16x128xf32>,
    %c16_i32_252 = arith.constant 16 : i32
    %605 = arith.muli %arg1, %c16_i32_252 : i32
    %c14_i32 = arith.constant 14 : i32
    %606 = arith.addi %605, %c14_i32 : i32
    %607 = arith.sitofp %606 : i32 to f32
    %cst_253 = arith.constant 0.466666669 : f32
    %608 = arith.mulf %607, %cst_253 : f32
    %609 = math.floor %608 : f32
    %cst_254 = arith.constant 6.000000e+00 : f32
    %610 = arith.minimumf %609, %cst_254 : f32
    %611 = arith.fptosi %610 : f32 to i32
    %612 = arith.sitofp %611 : i32 to f32
    %613 = arith.subf %608, %612 : f32
    %614 = arith.index_cast %611 : i32 to index
    %c0_255 = arith.constant 0 : index
    %c0_256 = arith.constant 0 : index
    %615 = vector.load %arg22[%614, %c0_255, %c0_256] : memref<8x16x128xf32, #tpu.memory_space<vmem>>, vector<1x16x128xf32>
    %616 = vector.shape_cast %615 : vector<1x16x128xf32> to vector<16x128xf32>
    %cst_257 = arith.constant 1.000000e+00 : f32
    %617 = arith.subf %cst_257, %613 : f32
    %618 = vector.broadcast %617 : f32 to vector<16x128xf32>
    %619 = arith.mulf %616, %618 : vector<16x128xf32>
    %c1_i32_258 = arith.constant 1 : i32
    %620 = arith.addi %611, %c1_i32_258 : i32
    %621 = arith.index_cast %620 : i32 to index
    %c0_259 = arith.constant 0 : index
    %c0_260 = arith.constant 0 : index
    %622 = vector.load %arg22[%621, %c0_259, %c0_260] : memref<8x16x128xf32, #tpu.memory_space<vmem>>, vector<1x16x128xf32>
    %623 = vector.shape_cast %622 : vector<1x16x128xf32> to vector<16x128xf32>
    %624 = vector.broadcast %613 : f32 to vector<16x128xf32>
    %625 = arith.mulf %623, %624 : vector<16x128xf32>
    %626 = arith.addf %619, %625 : vector<16x128xf32>
    %cst_261 = arith.constant 2.000000e-01 : f32
    %627 = arith.mulf %607, %cst_261 : f32
    %628 = math.floor %627 : f32
    %cst_262 = arith.constant 2.000000e+00 : f32
    %629 = arith.minimumf %628, %cst_262 : f32
    %630 = arith.fptosi %629 : f32 to i32
    %631 = arith.sitofp %630 : i32 to f32
    %632 = arith.subf %627, %631 : f32
    %633 = arith.index_cast %630 : i32 to index
    %c0_263 = arith.constant 0 : index
    %c0_264 = arith.constant 0 : index
    %634 = vector.load %arg23[%633, %c0_263, %c0_264] : memref<4x16x128xf32, #tpu.memory_space<vmem>>, vector<1x16x128xf32>
    %635 = vector.shape_cast %634 : vector<1x16x128xf32> to vector<16x128xf32>
    %cst_265 = arith.constant 1.000000e+00 : f32
    %636 = arith.subf %cst_265, %632 : f32
    %637 = vector.broadcast %636 : f32 to vector<16x128xf32>
    %638 = arith.mulf %635, %637 : vector<16x128xf32>
    %c1_i32_266 = arith.constant 1 : i32
    %639 = arith.addi %630, %c1_i32_266 : i32
    %640 = arith.index_cast %639 : i32 to index
    %c0_267 = arith.constant 0 : index
    %c0_268 = arith.constant 0 : index
    %641 = vector.load %arg23[%640, %c0_267, %c0_268] : memref<4x16x128xf32, #tpu.memory_space<vmem>>, vector<1x16x128xf32>
    %642 = vector.shape_cast %641 : vector<1x16x128xf32> to vector<16x128xf32>
    %643 = vector.broadcast %632 : f32 to vector<16x128xf32>
    %644 = arith.mulf %642, %643 : vector<16x128xf32>
    %645 = arith.addf %638, %644 : vector<16x128xf32>
    %646 = arith.addf %626, %645 : vector<16x128xf32>
    %c224 = arith.constant 224 : index
    %c0_269 = arith.constant 0 : index
    %647 = vector.load %arg24[%c224, %c0_269] : memref<256x128xf32, #tpu.memory_space<vmem>>, vector<16x128xf32>
    tpu.vector_store %arg24[%c224, %c0_269], %646 {strides = array<i32>} : memref<256x128xf32, #tpu.memory_space<vmem>>, vector<16x128xf32>,
    %c16_i32_270 = arith.constant 16 : i32
    %648 = arith.muli %arg1, %c16_i32_270 : i32
    %c15_i32 = arith.constant 15 : i32
    %649 = arith.addi %648, %c15_i32 : i32
    %650 = arith.sitofp %649 : i32 to f32
    %cst_271 = arith.constant 0.466666669 : f32
    %651 = arith.mulf %650, %cst_271 : f32
    %652 = math.floor %651 : f32
    %cst_272 = arith.constant 6.000000e+00 : f32
    %653 = arith.minimumf %652, %cst_272 : f32
    %654 = arith.fptosi %653 : f32 to i32
    %655 = arith.sitofp %654 : i32 to f32
    %656 = arith.subf %651, %655 : f32
    %657 = arith.index_cast %654 : i32 to index
    %c0_273 = arith.constant 0 : index
    %c0_274 = arith.constant 0 : index
    %658 = vector.load %arg22[%657, %c0_273, %c0_274] : memref<8x16x128xf32, #tpu.memory_space<vmem>>, vector<1x16x128xf32>
    %659 = vector.shape_cast %658 : vector<1x16x128xf32> to vector<16x128xf32>
    %cst_275 = arith.constant 1.000000e+00 : f32
    %660 = arith.subf %cst_275, %656 : f32
    %661 = vector.broadcast %660 : f32 to vector<16x128xf32>
    %662 = arith.mulf %659, %661 : vector<16x128xf32>
    %c1_i32_276 = arith.constant 1 : i32
    %663 = arith.addi %654, %c1_i32_276 : i32
    %664 = arith.index_cast %663 : i32 to index
    %c0_277 = arith.constant 0 : index
    %c0_278 = arith.constant 0 : index
    %665 = vector.load %arg22[%664, %c0_277, %c0_278] : memref<8x16x128xf32, #tpu.memory_space<vmem>>, vector<1x16x128xf32>
    %666 = vector.shape_cast %665 : vector<1x16x128xf32> to vector<16x128xf32>
    %667 = vector.broadcast %656 : f32 to vector<16x128xf32>
    %668 = arith.mulf %666, %667 : vector<16x128xf32>
    %669 = arith.addf %662, %668 : vector<16x128xf32>
    %cst_279 = arith.constant 2.000000e-01 : f32
    %670 = arith.mulf %650, %cst_279 : f32
    %671 = math.floor %670 : f32
    %cst_280 = arith.constant 2.000000e+00 : f32
    %672 = arith.minimumf %671, %cst_280 : f32
    %673 = arith.fptosi %672 : f32 to i32
    %674 = arith.sitofp %673 : i32 to f32
    %675 = arith.subf %670, %674 : f32
    %676 = arith.index_cast %673 : i32 to index
    %c0_281 = arith.constant 0 : index
    %c0_282 = arith.constant 0 : index
    %677 = vector.load %arg23[%676, %c0_281, %c0_282] : memref<4x16x128xf32, #tpu.memory_space<vmem>>, vector<1x16x128xf32>
    %678 = vector.shape_cast %677 : vector<1x16x128xf32> to vector<16x128xf32>
    %cst_283 = arith.constant 1.000000e+00 : f32
    %679 = arith.subf %cst_283, %675 : f32
    %680 = vector.broadcast %679 : f32 to vector<16x128xf32>
    %681 = arith.mulf %678, %680 : vector<16x128xf32>
    %c1_i32_284 = arith.constant 1 : i32
    %682 = arith.addi %673, %c1_i32_284 : i32
    %683 = arith.index_cast %682 : i32 to index
    %c0_285 = arith.constant 0 : index
    %c0_286 = arith.constant 0 : index
    %684 = vector.load %arg23[%683, %c0_285, %c0_286] : memref<4x16x128xf32, #tpu.memory_space<vmem>>, vector<1x16x128xf32>
    %685 = vector.shape_cast %684 : vector<1x16x128xf32> to vector<16x128xf32>
    %686 = vector.broadcast %675 : f32 to vector<16x128xf32>
    %687 = arith.mulf %685, %686 : vector<16x128xf32>
    %688 = arith.addf %681, %687 : vector<16x128xf32>
    %689 = arith.addf %669, %688 : vector<16x128xf32>
    %c240 = arith.constant 240 : index
    %c0_287 = arith.constant 0 : index
    %690 = vector.load %arg24[%c240, %c0_287] : memref<256x128xf32, #tpu.memory_space<vmem>>, vector<16x128xf32>
    tpu.vector_store %arg24[%c240, %c0_287], %689 {strides = array<i32>} : memref<256x128xf32, #tpu.memory_space<vmem>>, vector<16x128xf32>,
    %c0_288 = arith.constant 0 : index
    %c0_289 = arith.constant 0 : index
    %c0_290 = arith.constant 0 : index
    %691 = vector.load %arg2[%c0_288, %c0_289, %c0_290] : memref<1x256x128xbf16, #tpu.memory_space<vmem>>, vector<1x256x128xbf16>
    %692 = vector.shape_cast %691 : vector<1x256x128xbf16> to vector<256x128xbf16>
    %c0_291 = arith.constant 0 : index
    %c0_292 = arith.constant 0 : index
    %693 = vector.load %arg5[%c0_291, %c0_292] : memref<128x64xbf16, #tpu.memory_space<vmem>>, vector<128x64xbf16>
    %cst_293 = arith.constant dense<0.000000e+00> : vector<256x64xf32>
    %694 = tpu.matmul %692, %693, %cst_293 {dimension_numbers = #tpu.dot_dimension_numbers<[1], [0], [0], [1], [0, 0, 1, 1], [], []>} : vector<256x128xbf16>, vector<128x64xbf16>, vector<256x64xf32> -> vector<256x64xf32>
    %c0_294 = arith.constant 0 : index
    %c0_295 = arith.constant 0 : index
    %695 = vector.load %arg6[%c0_294, %c0_295] : memref<1x64xf32, #tpu.memory_space<vmem>>, vector<1x64xf32>
    %696 = vector.broadcast %695 : vector<1x64xf32> to vector<256x64xf32>
    %697 = arith.mulf %694, %696 : vector<256x64xf32>
    %c0_296 = arith.constant 0 : index
    %c0_297 = arith.constant 0 : index
    %698 = vector.load %arg7[%c0_296, %c0_297] : memref<1x64xf32, #tpu.memory_space<vmem>>, vector<1x64xf32>
    %699 = vector.broadcast %698 : vector<1x64xf32> to vector<256x64xf32>
    %700 = arith.addf %697, %699 : vector<256x64xf32>
    %cst_298 = arith.constant 0.000000e+00 : f32
    %701 = vector.broadcast %cst_298 : f32 to vector<256x64xf32>
    %702 = arith.maximumf %700, %701 : vector<256x64xf32>
    %703 = arith.truncf %702 : vector<256x64xf32> to vector<256x64xbf16>
    %c0_299 = arith.constant 0 : index
    %c0_300 = arith.constant 0 : index
    %704 = vector.load %arg14[%c0_299, %c0_300] : memref<64x128xbf16, #tpu.memory_space<vmem>>, vector<64x128xbf16>
    %cst_301 = arith.constant dense<0.000000e+00> : vector<256x128xf32>
    %705 = tpu.matmul %703, %704, %cst_301 {dimension_numbers = #tpu.dot_dimension_numbers<[1], [0], [0], [1], [0, 0, 1, 1], [], []>} : vector<256x64xbf16>, vector<64x128xbf16>, vector<256x128xf32> -> vector<256x128xf32>
    %c0_302 = arith.constant 0 : index
    %c0_303 = arith.constant 0 : index
    %706 = vector.load %arg24[%c0_302, %c0_303] : memref<256x128xf32, #tpu.memory_space<vmem>>, vector<256x128xf32>
    %707 = arith.addf %705, %706 : vector<256x128xf32>
    %c0_304 = arith.constant 0 : index
    %c0_305 = arith.constant 0 : index
    %708 = vector.load %arg17[%c0_304, %c0_305] : memref<1x128xf32, #tpu.memory_space<vmem>>, vector<1x128xf32>
    %709 = vector.broadcast %708 : vector<1x128xf32> to vector<256x128xf32>
    %710 = arith.mulf %707, %709 : vector<256x128xf32>
    %c0_306 = arith.constant 0 : index
    %c0_307 = arith.constant 0 : index
    %711 = vector.load %arg18[%c0_306, %c0_307] : memref<1x128xf32, #tpu.memory_space<vmem>>, vector<1x128xf32>
    %712 = vector.broadcast %711 : vector<1x128xf32> to vector<256x128xf32>
    %713 = arith.addf %710, %712 : vector<256x128xf32>
    %cst_308 = arith.constant 0.000000e+00 : f32
    %714 = vector.broadcast %cst_308 : f32 to vector<256x128xf32>
    %715 = arith.maximumf %713, %714 : vector<256x128xf32>
    %c0_309 = arith.constant 0 : index
    %c0_310 = arith.constant 0 : index
    %c0_311 = arith.constant 0 : index
    %716 = vector.load %arg21[%c0_309, %c0_310, %c0_311] : memref<1x256x128xf32, #tpu.memory_space<vmem>>, vector<1x256x128xf32>
    %717 = vector.shape_cast %716 : vector<1x256x128xf32> to vector<256x128xf32>
    %718 = vector.shape_cast %715 : vector<256x128xf32> to vector<1x256x128xf32>
    tpu.vector_store %arg21[%c0_309, %c0_310, %c0_311], %718 {strides = array<i32>} : memref<1x256x128xf32, #tpu.memory_space<vmem>>, vector<1x256x128xf32>,
    return
  }
  func.func @transform_0(%arg0: i32, %arg1: i32) -> (i32, i32, i32) {
    %c0_i32 = arith.constant 0 : i32
    %c0_i32_0 = arith.constant 0 : i32
    return %arg0, %arg1, %c0_i32 : i32, i32, i32
  }
  func.func @transform_1(%arg0: i32, %arg1: i32) -> (i32, i32, i32) {
    %c0_i32 = arith.constant 0 : i32
    %c0_i32_0 = arith.constant 0 : i32
    %c0_i32_1 = arith.constant 0 : i32
    return %arg0, %c0_i32, %c0_i32_0 : i32, i32, i32
  }
  func.func @transform_2(%arg0: i32, %arg1: i32) -> (i32, i32, i32) {
    %c0_i32 = arith.constant 0 : i32
    %c0_i32_0 = arith.constant 0 : i32
    %c0_i32_1 = arith.constant 0 : i32
    return %arg0, %c0_i32, %c0_i32_0 : i32, i32, i32
  }
  func.func @transform_3(%arg0: i32, %arg1: i32) -> (i32, i32) {
    %c0_i32 = arith.constant 0 : i32
    %c0_i32_0 = arith.constant 0 : i32
    %c0_i32_1 = arith.constant 0 : i32
    return %c0_i32, %c0_i32_0 : i32, i32
  }
  func.func @transform_4(%arg0: i32, %arg1: i32) -> (i32, i32) {
    %c0_i32 = arith.constant 0 : i32
    %c0_i32_0 = arith.constant 0 : i32
    %c0_i32_1 = arith.constant 0 : i32
    return %c0_i32, %c0_i32_0 : i32, i32
  }
  func.func @transform_5(%arg0: i32, %arg1: i32) -> (i32, i32) {
    %c0_i32 = arith.constant 0 : i32
    %c0_i32_0 = arith.constant 0 : i32
    %c0_i32_1 = arith.constant 0 : i32
    return %c0_i32, %c0_i32_0 : i32, i32
  }
  func.func @transform_6(%arg0: i32, %arg1: i32) -> (i32, i32) {
    %c0_i32 = arith.constant 0 : i32
    %c0_i32_0 = arith.constant 0 : i32
    %c0_i32_1 = arith.constant 0 : i32
    return %c0_i32, %c0_i32_0 : i32, i32
  }
  func.func @transform_7(%arg0: i32, %arg1: i32) -> (i32, i32) {
    %c0_i32 = arith.constant 0 : i32
    %c0_i32_0 = arith.constant 0 : i32
    %c0_i32_1 = arith.constant 0 : i32
    return %c0_i32, %c0_i32_0 : i32, i32
  }
  func.func @transform_8(%arg0: i32, %arg1: i32) -> (i32, i32) {
    %c0_i32 = arith.constant 0 : i32
    %c0_i32_0 = arith.constant 0 : i32
    %c0_i32_1 = arith.constant 0 : i32
    return %c0_i32, %c0_i32_0 : i32, i32
  }
  func.func @transform_9(%arg0: i32, %arg1: i32) -> (i32, i32) {
    %c0_i32 = arith.constant 0 : i32
    %c0_i32_0 = arith.constant 0 : i32
    %c0_i32_1 = arith.constant 0 : i32
    return %c0_i32, %c0_i32_0 : i32, i32
  }
  func.func @transform_10(%arg0: i32, %arg1: i32) -> (i32, i32) {
    %c0_i32 = arith.constant 0 : i32
    %c0_i32_0 = arith.constant 0 : i32
    %c0_i32_1 = arith.constant 0 : i32
    return %c0_i32, %c0_i32_0 : i32, i32
  }
  func.func @transform_11(%arg0: i32, %arg1: i32) -> (i32, i32) {
    %c0_i32 = arith.constant 0 : i32
    %c0_i32_0 = arith.constant 0 : i32
    %c0_i32_1 = arith.constant 0 : i32
    return %c0_i32, %c0_i32_0 : i32, i32
  }
  func.func @transform_12(%arg0: i32, %arg1: i32) -> (i32, i32) {
    %c0_i32 = arith.constant 0 : i32
    %c0_i32_0 = arith.constant 0 : i32
    %c0_i32_1 = arith.constant 0 : i32
    return %c0_i32, %c0_i32_0 : i32, i32
  }
  func.func @transform_13(%arg0: i32, %arg1: i32) -> (i32, i32) {
    %c0_i32 = arith.constant 0 : i32
    %c0_i32_0 = arith.constant 0 : i32
    %c0_i32_1 = arith.constant 0 : i32
    return %c0_i32, %c0_i32_0 : i32, i32
  }
  func.func @transform_14(%arg0: i32, %arg1: i32) -> (i32, i32) {
    %c0_i32 = arith.constant 0 : i32
    %c0_i32_0 = arith.constant 0 : i32
    %c0_i32_1 = arith.constant 0 : i32
    return %c0_i32, %c0_i32_0 : i32, i32
  }
  func.func @transform_15(%arg0: i32, %arg1: i32) -> (i32, i32) {
    %c0_i32 = arith.constant 0 : i32
    %c0_i32_0 = arith.constant 0 : i32
    %c0_i32_1 = arith.constant 0 : i32
    return %c0_i32, %c0_i32_0 : i32, i32
  }
  func.func @transform_16(%arg0: i32, %arg1: i32) -> (i32, i32) {
    %c0_i32 = arith.constant 0 : i32
    %c0_i32_0 = arith.constant 0 : i32
    %c0_i32_1 = arith.constant 0 : i32
    return %c0_i32, %c0_i32_0 : i32, i32
  }
  func.func @transform_17(%arg0: i32, %arg1: i32) -> (i32, i32) {
    %c0_i32 = arith.constant 0 : i32
    %c0_i32_0 = arith.constant 0 : i32
    %c0_i32_1 = arith.constant 0 : i32
    return %c0_i32, %c0_i32_0 : i32, i32
  }
  func.func @transform_18(%arg0: i32, %arg1: i32) -> (i32, i32) {
    %c0_i32 = arith.constant 0 : i32
    %c0_i32_0 = arith.constant 0 : i32
    %c0_i32_1 = arith.constant 0 : i32
    return %c0_i32, %c0_i32_0 : i32, i32
  }
  func.func @transform_19(%arg0: i32, %arg1: i32) -> (i32, i32, i32) {
    %c0_i32 = arith.constant 0 : i32
    %c0_i32_0 = arith.constant 0 : i32
    return %arg0, %arg1, %c0_i32 : i32, i32, i32
  }
}

</mosaic_0001>

<llo_original>
// kernel: _lambda_.1
$region0: #{_lambda_.1}
  #allocation0 [shape = 'u32[]', space=smem, size = 0x4, offset = 0x4, fixed_abs, tag = 'smem constant byte address 0x4 - core index']
  #allocation1 [shape = 'u32[144,128]{1,0:T(1,128)}', space=vmem, size = 0x12000, scoped, tag = 'internal scratch']
  #allocation2 [shape = 'f32[8,16,128]{2,1,0:T(8,128)}', space=vmem, size = 0x10000, scoped, tag = 'scratch operand']
  #allocation3 [shape = 'f32[4,16,128]{2,1,0:T(8,128)}', space=vmem, size = 0x8000, scoped, tag = 'scratch operand']
  #allocation4 [shape = 'f32[256,128]{1,0:T(8,128)}', space=vmem, size = 0x20000, scoped, tag = 'scratch operand']
  %s0 = inlined_call_operand.vmem [shape: bf16[2,256,128], index: 0, kind: input, shape index: {}]
  %s1 = inlined_call_operand.vmem [shape: bf16[2,64,256], index: 1, kind: input, shape index: {}]
  %s2 = inlined_call_operand.vmem [shape: bf16[2,16,512], index: 2, kind: input, shape index: {}]
  %s3 = inlined_call_operand.vmem [shape: bf16[128,64], index: 3, kind: input, shape index: {}]
  %s4 = inlined_call_operand.vmem [shape: f32[1,64], index: 4, kind: input, shape index: {}]
  %s5 = inlined_call_operand.vmem [shape: f32[1,64], index: 5, kind: input, shape index: {}]
  %s6 = inlined_call_operand.vmem [shape: bf16[256,64], index: 6, kind: input, shape index: {}]
  %s7 = inlined_call_operand.vmem [shape: f32[1,64], index: 7, kind: input, shape index: {}]
  %s8 = inlined_call_operand.vmem [shape: f32[1,64], index: 8, kind: input, shape index: {}]
  %s9 = inlined_call_operand.vmem [shape: bf16[512,64], index: 9, kind: input, shape index: {}]
  %s10 = inlined_call_operand.vmem [shape: f32[1,64], index: 10, kind: input, shape index: {}]
  %s11 = inlined_call_operand.vmem [shape: f32[1,64], index: 11, kind: input, shape index: {}]
  %s12 = inlined_call_operand.vmem [shape: bf16[64,128], index: 12, kind: input, shape index: {}]
  %s13 = inlined_call_operand.vmem [shape: bf16[64,128], index: 13, kind: input, shape index: {}]
  %s14 = inlined_call_operand.vmem [shape: bf16[64,128], index: 14, kind: input, shape index: {}]
  %s15 = inlined_call_operand.vmem [shape: f32[1,128], index: 15, kind: input, shape index: {}]
  %s16 = inlined_call_operand.vmem [shape: f32[1,128], index: 16, kind: input, shape index: {}]
  %s17 = inlined_call_operand.vmem [shape: bf16[16,8], index: 17, kind: input, shape index: {}]
  %s18 = inlined_call_operand.vmem [shape: bf16[16,4], index: 18, kind: input, shape index: {}]
  %s19 = inlined_call_operand.hbm [shape: f32[2,256,128], index: 19, kind: output, shape index: {}]
  %s20 = sld [smem:[#allocation0]]
  $region113: #{_lambda_.1} parent=0
    _
  %s22 = ssub.s32 1, %s20
  %s23 = scalar_select 0, %s22, %s20
  $region1: #{_lambda_.1} parent=0
    #allocation5 [shape = 'u8[262144]{0}', space=vmem, size = 0x40000, scoped, tag = 'output window, operand 0']
    #allocation6 [shape = 's32[2]{0}', space=sflag, size = 0x8, scoped, tag = 'scoped memory for _lambda_.1']
    %24 = vsyncpa [#allocation6], 0
    %s25 = scalar_lea.sflag [#allocation6], 1
    %26 = vsyncpa %s25, 0
    loop: start=0, step=1, limit=4
    $region2: #{_lambda_.1} parent=1 // loop_pre_header
      _
    $region3: #{_lambda_.1} parent=1 // loop_header
      %s28 = sphi 0, %s32
      %p29 = scmp.ge.s32.totalorder %s28, 4
      %s35 = sphi 0, %s47
      %s36 = sphi 0, %s43
      %s37 = sphi 0, %s35
      %s38 = sphi 0, %s36
      %s39 = sphi 0, %s37
      %s40 = sphi 0, %s38
      %s52 = sphi 0, %s54
      %s55 = sphi 0, %s52
      %s56 = sphi 0, %s55
      %s72 = sphi 0, %s56
      %s78 = sphi 0, %s80
      %s81 = sphi 0, %s78
      %s82 = sphi 0, %s81
      %s98 = sphi 0, %s82
      %s104 = sphi 0, %s106
      %s107 = sphi 0, %s104
      %s108 = sphi 0, %s107
      %s124 = sphi 0, %s108
      %s128 = sphi 0, %s128
      %s130 = sphi 0, %s128
      %s131 = sphi 0, %s130
      %s145 = sphi 0, %s131
      %s149 = sphi 0, %s149
      %s151 = sphi 0, %s149
      %s152 = sphi 0, %s151
      %s166 = sphi 0, %s152
      %s170 = sphi 0, %s170
      %s172 = sphi 0, %s170
      %s173 = sphi 0, %s172
      %s187 = sphi 0, %s173
      %s191 = sphi 0, %s191
      %s193 = sphi 0, %s191
      %s194 = sphi 0, %s193
      %s208 = sphi 0, %s194
      %s212 = sphi 0, %s212
      %s214 = sphi 0, %s212
      %s215 = sphi 0, %s214
      %s229 = sphi 0, %s215
      %s233 = sphi 0, %s233
      %s235 = sphi 0, %s233
      %s236 = sphi 0, %s235
      %s250 = sphi 0, %s236
      %s254 = sphi 0, %s254
      %s256 = sphi 0, %s254
      %s257 = sphi 0, %s256
      %s271 = sphi 0, %s257
      %s275 = sphi 0, %s275
      %s277 = sphi 0, %s275
      %s278 = sphi 0, %s277
      %s292 = sphi 0, %s278
      %s296 = sphi 0, %s296
      %s298 = sphi 0, %s296
      %s299 = sphi 0, %s298
      %s313 = sphi 0, %s299
      %s317 = sphi 0, %s317
      %s319 = sphi 0, %s317
      %s320 = sphi 0, %s319
      %s334 = sphi 0, %s320
      %s338 = sphi 0, %s338
      %s340 = sphi 0, %s338
      %s341 = sphi 0, %s340
      %s355 = sphi 0, %s341
      %s359 = sphi 0, %s359
      %s361 = sphi 0, %s359
      %s362 = sphi 0, %s361
      %s376 = sphi 0, %s362
      %s380 = sphi 0, %s380
      %s382 = sphi 0, %s380
      %s383 = sphi 0, %s382
      %s397 = sphi 0, %s383
      %s401 = sphi 0, %s401
      %s403 = sphi 0, %s401
      %s404 = sphi 0, %s403
      %s418 = sphi 0, %s404
      %s422 = sphi 0, %s422
      %s424 = sphi 0, %s422
      %s425 = sphi 0, %s424
      %s439 = sphi 0, %s425
      %s443 = sphi 0, %s443
      %s445 = sphi 0, %s443
      %s446 = sphi 0, %s445
      %s460 = sphi 0, %s446
      %s468 = sphi 0, %s470
      %s471 = sphi 0, %s468
      %s472 = sphi 0, %s471
      %s488 = sphi 0, %s472
    $region4: #{_lambda_.1} parent=1 // loop_header_branch
      %31 = sbr.rel (%p29) target = $region8
    $region5: #{_lambda_.1} parent=1 // loop_body
      %s33 = ssub.s32 %s28, 1
      %s34 = ssub.s32 %s28, 2
      %s41 = sadd.s32 1, %s36
      %p42 = scmp.ge.s32.totalorder %s41, 1
      %s43 = scalar_select %p42, 0, %s41
      %s44 = sadd.s32 1, %s35
      %s45 = scalar_select %p42, %s44, %s35
      %p46 = scmp.ge.s32.totalorder %s45, 2
      %s47 = scalar_select %p46, 0, %s45
      %s48 = ssub.s32 %s35, %s47
      %s49 = ssub.s32 %s36, %s43
      %s50 = sor.u32 %s48, %s49
      %p51 = scmp.eq.s32.totalorder %s50, 0
      %s53 = sadd.s32 %s52, 1
      %s54 = scalar_select %p51, %s52, %s53
      %p57 = pneg %p51
      %p58 = scmp.eq.s32.totalorder %s28, 1
      %p59 = por %p57, %p58
      %p60 = scmp.ne.s32.totalorder %s52, %s55
      %p61 = scmp.eq.s32.totalorder %s28, 0
      %p62 = por %p60, %p61
      %p63 = scmp.ne.s32.totalorder %s52, %s55
      %p64 = scmp.eq.s32.totalorder %s33, 1
      %p65 = por %p63, %p64
      %p66 = scmp.ne.s32.totalorder %s55, %s56
      %p67 = scmp.eq.s32.totalorder %s33, 0
      %p68 = por %p66, %p67
      %p69 = scmp.ne.s32.totalorder %s55, %s56
      %p70 = scmp.eq.s32.totalorder %s34, 1
      %p71 = por %p69, %p70
      %p73 = scmp.ne.s32.totalorder %s56, %s72
      %p74 = scmp.eq.s32.totalorder %s34, 0
      %p75 = por %p73, %p74
      %s76 = ssub.s32 %s35, %s47
      %p77 = scmp.eq.s32.totalorder %s76, 0
      %s79 = sadd.s32 %s78, 1
      %s80 = scalar_select %p77, %s78, %s79
      %p83 = pneg %p77
      %p84 = scmp.eq.s32.totalorder %s28, 1
      %p85 = por %p83, %p84
      %p86 = scmp.ne.s32.totalorder %s78, %s81
      %p87 = scmp.eq.s32.totalorder %s28, 0
      %p88 = por %p86, %p87
      %p89 = scmp.ne.s32.totalorder %s78, %s81
      %p90 = scmp.eq.s32.totalorder %s33, 1
      %p91 = por %p89, %p90
      %p92 = scmp.ne.s32.totalorder %s81, %s82
      %p93 = scmp.eq.s32.totalorder %s33, 0
      %p94 = por %p92, %p93
      %p95 = scmp.ne.s32.totalorder %s81, %s82
      %p96 = scmp.eq.s32.totalorder %s34, 1
      %p97 = por %p95, %p96
      %p99 = scmp.ne.s32.totalorder %s82, %s98
      %p100 = scmp.eq.s32.totalorder %s34, 0
      %p101 = por %p99, %p100
      %s102 = ssub.s32 %s35, %s47
      %p103 = scmp.eq.s32.totalorder %s102, 0
      %s105 = sadd.s32 %s104, 1
      %s106 = scalar_select %p103, %s104, %s105
      %p109 = pneg %p103
      %p110 = scmp.eq.s32.totalorder %s28, 1
      %p111 = por %p109, %p110
      %p112 = scmp.ne.s32.totalorder %s104, %s107
      %p113 = scmp.eq.s32.totalorder %s28, 0
      %p114 = por %p112, %p113
      %p115 = scmp.ne.s32.totalorder %s104, %s107
      %p116 = scmp.eq.s32.totalorder %s33, 1
      %p117 = por %p115, %p116
      %p118 = scmp.ne.s32.totalorder %s107, %s108
      %p119 = scmp.eq.s32.totalorder %s33, 0
      %p120 = por %p118, %p119
      %p121 = scmp.ne.s32.totalorder %s107, %s108
      %p122 = scmp.eq.s32.totalorder %s34, 1
      %p123 = por %p121, %p122
      %p125 = scmp.ne.s32.totalorder %s108, %s124
      %p126 = scmp.eq.s32.totalorder %s34, 0
      %p127 = por %p125, %p126
      %s129 = sadd.s32 %s128, 1
      %p132 = scmp.eq.s32.totalorder %s28, 1
      %p133 = scmp.ne.s32.totalorder %s128, %s130
      %p134 = scmp.eq.s32.totalorder %s28, 0
      %p135 = por %p133, %p134
      %p136 = scmp.ne.s32.totalorder %s128, %s130
      %p137 = scmp.eq.s32.totalorder %s33, 1
      %p138 = por %p136, %p137
      %p139 = scmp.ne.s32.totalorder %s130, %s131
      %p140 = scmp.eq.s32.totalorder %s33, 0
      %p141 = por %p139, %p140
      %p142 = scmp.ne.s32.totalorder %s130, %s131
      %p143 = scmp.eq.s32.totalorder %s34, 1
      %p144 = por %p142, %p143
      %p146 = scmp.ne.s32.totalorder %s131, %s145
      %p147 = scmp.eq.s32.totalorder %s34, 0
      %p148 = por %p146, %p147
      %s150 = sadd.s32 %s149, 1
      %p153 = scmp.eq.s32.totalorder %s28, 1
      %p154 = scmp.ne.s32.totalorder %s149, %s151
      %p155 = scmp.eq.s32.totalorder %s28, 0
      %p156 = por %p154, %p155
      %p157 = scmp.ne.s32.totalorder %s149, %s151
      %p158 = scmp.eq.s32.totalorder %s33, 1
      %p159 = por %p157, %p158
      %p160 = scmp.ne.s32.totalorder %s151, %s152
      %p161 = scmp.eq.s32.totalorder %s33, 0
      %p162 = por %p160, %p161
      %p163 = scmp.ne.s32.totalorder %s151, %s152
      %p164 = scmp.eq.s32.totalorder %s34, 1
      %p165 = por %p163, %p164
      %p167 = scmp.ne.s32.totalorder %s152, %s166
      %p168 = scmp.eq.s32.totalorder %s34, 0
      %p169 = por %p167, %p168
      %s171 = sadd.s32 %s170, 1
      %p174 = scmp.eq.s32.totalorder %s28, 1
      %p175 = scmp.ne.s32.totalorder %s170, %s172
      %p176 = scmp.eq.s32.totalorder %s28, 0
      %p177 = por %p175, %p176
      %p178 = scmp.ne.s32.totalorder %s170, %s172
      %p179 = scmp.eq.s32.totalorder %s33, 1
      %p180 = por %p178, %p179
      %p181 = scmp.ne.s32.totalorder %s172, %s173
      %p182 = scmp.eq.s32.totalorder %s33, 0
      %p183 = por %p181, %p182
      %p184 = scmp.ne.s32.totalorder %s172, %s173
      %p185 = scmp.eq.s32.totalorder %s34, 1
      %p186 = por %p184, %p185
      %p188 = scmp.ne.s32.totalorder %s173, %s187
      %p189 = scmp.eq.s32.totalorder %s34, 0
      %p190 = por %p188, %p189
      %s192 = sadd.s32 %s191, 1
      %p195 = scmp.eq.s32.totalorder %s28, 1
      %p196 = scmp.ne.s32.totalorder %s191, %s193
      %p197 = scmp.eq.s32.totalorder %s28, 0
      %p198 = por %p196, %p197
      %p199 = scmp.ne.s32.totalorder %s191, %s193
      %p200 = scmp.eq.s32.totalorder %s33, 1
      %p201 = por %p199, %p200
      %p202 = scmp.ne.s32.totalorder %s193, %s194
      %p203 = scmp.eq.s32.totalorder %s33, 0
      %p204 = por %p202, %p203
      %p205 = scmp.ne.s32.totalorder %s193, %s194
      %p206 = scmp.eq.s32.totalorder %s34, 1
      %p207 = por %p205, %p206
      %p209 = scmp.ne.s32.totalorder %s194, %s208
      %p210 = scmp.eq.s32.totalorder %s34, 0
      %p211 = por %p209, %p210
      %s213 = sadd.s32 %s212, 1
      %p216 = scmp.eq.s32.totalorder %s28, 1
      %p217 = scmp.ne.s32.totalorder %s212, %s214
      %p218 = scmp.eq.s32.totalorder %s28, 0
      %p219 = por %p217, %p218
      %p220 = scmp.ne.s32.totalorder %s212, %s214
      %p221 = scmp.eq.s32.totalorder %s33, 1
      %p222 = por %p220, %p221
      %p223 = scmp.ne.s32.totalorder %s214, %s215
      %p224 = scmp.eq.s32.totalorder %s33, 0
      %p225 = por %p223, %p224
      %p226 = scmp.ne.s32.totalorder %s214, %s215
      %p227 = scmp.eq.s32.totalorder %s34, 1
      %p228 = por %p226, %p227
      %p230 = scmp.ne.s32.totalorder %s215, %s229
      %p231 = scmp.eq.s32.totalorder %s34, 0
      %p232 = por %p230, %p231
      %s234 = sadd.s32 %s233, 1
      %p237 = scmp.eq.s32.totalorder %s28, 1
      %p238 = scmp.ne.s32.totalorder %s233, %s235
      %p239 = scmp.eq.s32.totalorder %s28, 0
      %p240 = por %p238, %p239
      %p241 = scmp.ne.s32.totalorder %s233, %s235
      %p242 = scmp.eq.s32.totalorder %s33, 1
      %p243 = por %p241, %p242
      %p244 = scmp.ne.s32.totalorder %s235, %s236
      %p245 = scmp.eq.s32.totalorder %s33, 0
      %p246 = por %p244, %p245
      %p247 = scmp.ne.s32.totalorder %s235, %s236
      %p248 = scmp.eq.s32.totalorder %s34, 1
      %p249 = por %p247, %p248
      %p251 = scmp.ne.s32.totalorder %s236, %s250
      %p252 = scmp.eq.s32.totalorder %s34, 0
      %p253 = por %p251, %p252
      %s255 = sadd.s32 %s254, 1
      %p258 = scmp.eq.s32.totalorder %s28, 1
      %p259 = scmp.ne.s32.totalorder %s254, %s256
      %p260 = scmp.eq.s32.totalorder %s28, 0
      %p261 = por %p259, %p260
      %p262 = scmp.ne.s32.totalorder %s254, %s256
      %p263 = scmp.eq.s32.totalorder %s33, 1
      %p264 = por %p262, %p263
      %p265 = scmp.ne.s32.totalorder %s256, %s257
      %p266 = scmp.eq.s32.totalorder %s33, 0
      %p267 = por %p265, %p266
      %p268 = scmp.ne.s32.totalorder %s256, %s257
      %p269 = scmp.eq.s32.totalorder %s34, 1
      %p270 = por %p268, %p269
      %p272 = scmp.ne.s32.totalorder %s257, %s271
      %p273 = scmp.eq.s32.totalorder %s34, 0
      %p274 = por %p272, %p273
      %s276 = sadd.s32 %s275, 1
      %p279 = scmp.eq.s32.totalorder %s28, 1
      %p280 = scmp.ne.s32.totalorder %s275, %s277
      %p281 = scmp.eq.s32.totalorder %s28, 0
      %p282 = por %p280, %p281
      %p283 = scmp.ne.s32.totalorder %s275, %s277
      %p284 = scmp.eq.s32.totalorder %s33, 1
      %p285 = por %p283, %p284
      %p286 = scmp.ne.s32.totalorder %s277, %s278
      %p287 = scmp.eq.s32.totalorder %s33, 0
      %p288 = por %p286, %p287
      %p289 = scmp.ne.s32.totalorder %s277, %s278
      %p290 = scmp.eq.s32.totalorder %s34, 1
      %p291 = por %p289, %p290
      %p293 = scmp.ne.s32.totalorder %s278, %s292
      %p294 = scmp.eq.s32.totalorder %s34, 0
      %p295 = por %p293, %p294
      %s297 = sadd.s32 %s296, 1
      %p300 = scmp.eq.s32.totalorder %s28, 1
      %p301 = scmp.ne.s32.totalorder %s296, %s298
      %p302 = scmp.eq.s32.totalorder %s28, 0
      %p303 = por %p301, %p302
      %p304 = scmp.ne.s32.totalorder %s296, %s298
      %p305 = scmp.eq.s32.totalorder %s33, 1
      %p306 = por %p304, %p305
      %p307 = scmp.ne.s32.totalorder %s298, %s299
      %p308 = scmp.eq.s32.totalorder %s33, 0
      %p309 = por %p307, %p308
      %p310 = scmp.ne.s32.totalorder %s298, %s299
      %p311 = scmp.eq.s32.totalorder %s34, 1
      %p312 = por %p310, %p311
      %p314 = scmp.ne.s32.totalorder %s299, %s313
      %p315 = scmp.eq.s32.totalorder %s34, 0
      %p316 = por %p314, %p315
      %s318 = sadd.s32 %s317, 1
      %p321 = scmp.eq.s32.totalorder %s28, 1
      %p322 = scmp.ne.s32.totalorder %s317, %s319
      %p323 = scmp.eq.s32.totalorder %s28, 0
      %p324 = por %p322, %p323
      %p325 = scmp.ne.s32.totalorder %s317, %s319
      %p326 = scmp.eq.s32.totalorder %s33, 1
      %p327 = por %p325, %p326
      %p328 = scmp.ne.s32.totalorder %s319, %s320
      %p329 = scmp.eq.s32.totalorder %s33, 0
      %p330 = por %p328, %p329
      %p331 = scmp.ne.s32.totalorder %s319, %s320
      %p332 = scmp.eq.s32.totalorder %s34, 1
      %p333 = por %p331, %p332
      %p335 = scmp.ne.s32.totalorder %s320, %s334
      %p336 = scmp.eq.s32.totalorder %s34, 0
      %p337 = por %p335, %p336
      %s339 = sadd.s32 %s338, 1
      %p342 = scmp.eq.s32.totalorder %s28, 1
      %p343 = scmp.ne.s32.totalorder %s338, %s340
      %p344 = scmp.eq.s32.totalorder %s28, 0
      %p345 = por %p343, %p344
      %p346 = scmp.ne.s32.totalorder %s338, %s340
      %p347 = scmp.eq.s32.totalorder %s33, 1
      %p348 = por %p346, %p347
      %p349 = scmp.ne.s32.totalorder %s340, %s341
      %p350 = scmp.eq.s32.totalorder %s33, 0
      %p351 = por %p349, %p350
      %p352 = scmp.ne.s32.totalorder %s340, %s341
      %p353 = scmp.eq.s32.totalorder %s34, 1
      %p354 = por %p352, %p353
      %p356 = scmp.ne.s32.totalorder %s341, %s355
      %p357 = scmp.eq.s32.totalorder %s34, 0
      %p358 = por %p356, %p357
      %s360 = sadd.s32 %s359, 1
      %p363 = scmp.eq.s32.totalorder %s28, 1
      %p364 = scmp.ne.s32.totalorder %s359, %s361
      %p365 = scmp.eq.s32.totalorder %s28, 0
      %p366 = por %p364, %p365
      %p367 = scmp.ne.s32.totalorder %s359, %s361
      %p368 = scmp.eq.s32.totalorder %s33, 1
      %p369 = por %p367, %p368
      %p370 = scmp.ne.s32.totalorder %s361, %s362
      %p371 = scmp.eq.s32.totalorder %s33, 0
      %p372 = por %p370, %p371
      %p373 = scmp.ne.s32.totalorder %s361, %s362
      %p374 = scmp.eq.s32.totalorder %s34, 1
      %p375 = por %p373, %p374
      %p377 = scmp.ne.s32.totalorder %s362, %s376
      %p378 = scmp.eq.s32.totalorder %s34, 0
      %p379 = por %p377, %p378
      %s381 = sadd.s32 %s380, 1
      %p384 = scmp.eq.s32.totalorder %s28, 1
      %p385 = scmp.ne.s32.totalorder %s380, %s382
      %p386 = scmp.eq.s32.totalorder %s28, 0
      %p387 = por %p385, %p386
      %p388 = scmp.ne.s32.totalorder %s380, %s382
      %p389 = scmp.eq.s32.totalorder %s33, 1
      %p390 = por %p388, %p389
      %p391 = scmp.ne.s32.totalorder %s382, %s383
      %p392 = scmp.eq.s32.totalorder %s33, 0
      %p393 = por %p391, %p392
      %p394 = scmp.ne.s32.totalorder %s382, %s383
      %p395 = scmp.eq.s32.totalorder %s34, 1
      %p396 = por %p394, %p395
      %p398 = scmp.ne.s32.totalorder %s383, %s397
      %p399 = scmp.eq.s32.totalorder %s34, 0
      %p400 = por %p398, %p399
      %s402 = sadd.s32 %s401, 1
      %p405 = scmp.eq.s32.totalorder %s28, 1
      %p406 = scmp.ne.s32.totalorder %s401, %s403
      %p407 = scmp.eq.s32.totalorder %s28, 0
      %p408 = por %p406, %p407
      %p409 = scmp.ne.s32.totalorder %s401, %s403
      %p410 = scmp.eq.s32.totalorder %s33, 1
      %p411 = por %p409, %p410
      %p412 = scmp.ne.s32.totalorder %s403, %s404
      %p413 = scmp.eq.s32.totalorder %s33, 0
      %p414 = por %p412, %p413
      %p415 = scmp.ne.s32.totalorder %s403, %s404
      %p416 = scmp.eq.s32.totalorder %s34, 1
      %p417 = por %p415, %p416
      %p419 = scmp.ne.s32.totalorder %s404, %s418
      %p420 = scmp.eq.s32.totalorder %s34, 0
      %p421 = por %p419, %p420
      %s423 = sadd.s32 %s422, 1
      %p426 = scmp.eq.s32.totalorder %s28, 1
      %p427 = scmp.ne.s32.totalorder %s422, %s424
      %p428 = scmp.eq.s32.totalorder %s28, 0
      %p429 = por %p427, %p428
      %p430 = scmp.ne.s32.totalorder %s422, %s424
      %p431 = scmp.eq.s32.totalorder %s33, 1
      %p432 = por %p430, %p431
      %p433 = scmp.ne.s32.totalorder %s424, %s425
      %p434 = scmp.eq.s32.totalorder %s33, 0
      %p435 = por %p433, %p434
      %p436 = scmp.ne.s32.totalorder %s424, %s425
      %p437 = scmp.eq.s32.totalorder %s34, 1
      %p438 = por %p436, %p437
      %p440 = scmp.ne.s32.totalorder %s425, %s439
      %p441 = scmp.eq.s32.totalorder %s34, 0
      %p442 = por %p440, %p441
      %s444 = sadd.s32 %s443, 1
      %p447 = scmp.eq.s32.totalorder %s28, 1
      %p448 = scmp.ne.s32.totalorder %s443, %s445
      %p449 = scmp.eq.s32.totalorder %s28, 0
      %p450 = por %p448, %p449
      %p451 = scmp.ne.s32.totalorder %s443, %s445
      %p452 = scmp.eq.s32.totalorder %s33, 1
      %p453 = por %p451, %p452
      %p454 = scmp.ne.s32.totalorder %s445, %s446
      %p455 = scmp.eq.s32.totalorder %s33, 0
      %p456 = por %p454, %p455
      %p457 = scmp.ne.s32.totalorder %s445, %s446
      %p458 = scmp.eq.s32.totalorder %s34, 1
      %p459 = por %p457, %p458
      %p461 = scmp.ne.s32.totalorder %s446, %s460
      %p462 = scmp.eq.s32.totalorder %s34, 0
      %p463 = por %p461, %p462
      %s464 = ssub.s32 %s35, %s47
      %s465 = ssub.s32 %s36, %s43
      %s466 = sor.u32 %s464, %s465
      %p467 = scmp.eq.s32.totalorder %s466, 0
      %s469 = sadd.s32 %s468, 1
      %s470 = scalar_select %p467, %s468, %s469
      %p473 = pneg %p467
      %p474 = scmp.eq.s32.totalorder %s28, 1
      %p475 = por %p473, %p474
      %p476 = scmp.ne.s32.totalorder %s468, %s471
      %p477 = scmp.eq.s32.totalorder %s28, 0
      %p478 = por %p476, %p477
      %p479 = scmp.ne.s32.totalorder %s468, %s471
      %p480 = scmp.eq.s32.totalorder %s33, 1
      %p481 = por %p479, %p480
      %p482 = scmp.ne.s32.totalorder %s471, %s472
      %p483 = scmp.eq.s32.totalorder %s33, 0
      %p484 = por %p482, %p483
      %p485 = scmp.ne.s32.totalorder %s471, %s472
      %p486 = scmp.eq.s32.totalorder %s34, 1
      %p487 = por %p485, %p486
      %p489 = scmp.ne.s32.totalorder %s472, %s488
      %p490 = scmp.eq.s32.totalorder %s34, 0
      %p491 = por %p489, %p490
      %p492 = scmp.le.s32.totalorder 1, %s28
      %p493 = scmp.lt.s32.totalorder %s28, 3
      %p494 = pnand %p492, %p493
      %p495 = pneg %p494
      // Predicated region
      $region9: #{_lambda_.1} parent=5 // pred_check
        _
      $region10: #{_lambda_.1} parent=5 // pred_check_branch
        %497 = sbr.rel (%p494) target = $region12
      $region11: #{_lambda_.1} parent=5 // pred_region
        %s498 = ssub.s32 %s28, 1
        // Predicated region
        $region13: #{_lambda_.1} parent=11 // pred_check
          %p499 = pneg %p141
        $region14: #{_lambda_.1} parent=11 // pred_check_branch
          %501 = sbr.rel (%p499) target = $region16
        $region15: #{_lambda_.1} parent=11 // pred_region
          _
        $region16: #{_lambda_.1} parent=11 // pred_fallthru
          _
        // Predicated region
        $region17: #{_lambda_.1} parent=11 // pred_check
          %p502 = pneg %p162
        $region18: #{_lambda_.1} parent=11 // pred_check_branch
          %504 = sbr.rel (%p502) target = $region20
        $region19: #{_lambda_.1} parent=11 // pred_region
          _
        $region20: #{_lambda_.1} parent=11 // pred_fallthru
          _
        // Predicated region
        $region21: #{_lambda_.1} parent=11 // pred_check
          %p505 = pneg %p183
        $region22: #{_lambda_.1} parent=11 // pred_check_branch
          %507 = sbr.rel (%p505) target = $region24
        $region23: #{_lambda_.1} parent=11 // pred_region
          _
        $region24: #{_lambda_.1} parent=11 // pred_fallthru
          _
        // Predicated region
        $region25: #{_lambda_.1} parent=11 // pred_check
          %p508 = pneg %p204
        $region26: #{_lambda_.1} parent=11 // pred_check_branch
          %510 = sbr.rel (%p508) target = $region28
        $region27: #{_lambda_.1} parent=11 // pred_region
          _
        $region28: #{_lambda_.1} parent=11 // pred_fallthru
          _
        // Predicated region
        $region29: #{_lambda_.1} parent=11 // pred_check
          %p511 = pneg %p225
        $region30: #{_lambda_.1} parent=11 // pred_check_branch
          %513 = sbr.rel (%p511) target = $region32
        $region31: #{_lambda_.1} parent=11 // pred_region
          _
        $region32: #{_lambda_.1} parent=11 // pred_fallthru
          _
        // Predicated region
        $region33: #{_lambda_.1} parent=11 // pred_check
          %p514 = pneg %p246
        $region34: #{_lambda_.1} parent=11 // pred_check_branch
          %516 = sbr.rel (%p514) target = $region36
        $region35: #{_lambda_.1} parent=11 // pred_region
          _
        $region36: #{_lambda_.1} parent=11 // pred_fallthru
          _
        // Predicated region
        $region37: #{_lambda_.1} parent=11 // pred_check
          %p517 = pneg %p267
        $region38: #{_lambda_.1} parent=11 // pred_check_branch
          %519 = sbr.rel (%p517) target = $region40
        $region39: #{_lambda_.1} parent=11 // pred_region
          _
        $region40: #{_lambda_.1} parent=11 // pred_fallthru
          _
        // Predicated region
        $region41: #{_lambda_.1} parent=11 // pred_check
          %p520 = pneg %p288
        $region42: #{_lambda_.1} parent=11 // pred_check_branch
          %522 = sbr.rel (%p520) target = $region44
        $region43: #{_lambda_.1} parent=11 // pred_region
          _
        $region44: #{_lambda_.1} parent=11 // pred_fallthru
          _
        // Predicated region
        $region45: #{_lambda_.1} parent=11 // pred_check
          %p523 = pneg %p309
        $region46: #{_lambda_.1} parent=11 // pred_check_branch
          %525 = sbr.rel (%p523) target = $region48
        $region47: #{_lambda_.1} parent=11 // pred_region
          _
        $region48: #{_lambda_.1} parent=11 // pred_fallthru
          _
        // Predicated region
        $region49: #{_lambda_.1} parent=11 // pred_check
          %p526 = pneg %p330
        $region50: #{_lambda_.1} parent=11 // pred_check_branch
          %528 = sbr.rel (%p526) target = $region52
        $region51: #{_lambda_.1} parent=11 // pred_region
          _
        $region52: #{_lambda_.1} parent=11 // pred_fallthru
          _
        // Predicated region
        $region53: #{_lambda_.1} parent=11 // pred_check
          %p529 = pneg %p351
        $region54: #{_lambda_.1} parent=11 // pred_check_branch
          %531 = sbr.rel (%p529) target = $region56
        $region55: #{_lambda_.1} parent=11 // pred_region
          _
        $region56: #{_lambda_.1} parent=11 // pred_fallthru
          _
        // Predicated region
        $region57: #{_lambda_.1} parent=11 // pred_check
          %p532 = pneg %p372
        $region58: #{_lambda_.1} parent=11 // pred_check_branch
          %534 = sbr.rel (%p532) target = $region60
        $region59: #{_lambda_.1} parent=11 // pred_region
          _
        $region60: #{_lambda_.1} parent=11 // pred_fallthru
          _
        // Predicated region
        $region61: #{_lambda_.1} parent=11 // pred_check
          %p535 = pneg %p393
        $region62: #{_lambda_.1} parent=11 // pred_check_branch
          %537 = sbr.rel (%p535) target = $region64
        $region63: #{_lambda_.1} parent=11 // pred_region
          _
        $region64: #{_lambda_.1} parent=11 // pred_fallthru
          _
        // Predicated region
        $region65: #{_lambda_.1} parent=11 // pred_check
          %p538 = pneg %p414
        $region66: #{_lambda_.1} parent=11 // pred_check_branch
          %540 = sbr.rel (%p538) target = $region68
        $region67: #{_lambda_.1} parent=11 // pred_region
          _
        $region68: #{_lambda_.1} parent=11 // pred_fallthru
          _
        // Predicated region
        $region69: #{_lambda_.1} parent=11 // pred_check
          %p541 = pneg %p435
        $region70: #{_lambda_.1} parent=11 // pred_check_branch
          %543 = sbr.rel (%p541) target = $region72
        $region71: #{_lambda_.1} parent=11 // pred_region
          _
        $region72: #{_lambda_.1} parent=11 // pred_fallthru
          _
        // Predicated region
        $region73: #{_lambda_.1} parent=11 // pred_check
          %p544 = pneg %p456
        $region74: #{_lambda_.1} parent=11 // pred_check_branch
          %546 = sbr.rel (%p544) target = $region76
        $region75: #{_lambda_.1} parent=11 // pred_region
          _
        $region76: #{_lambda_.1} parent=11 // pred_fallthru
          _
      $region12: #{_lambda_.1} parent=5 // pred_fallthru
        _
      %p547 = scmp.lt.s32.totalorder %s28, 2
      // Predicated region
      $region77: #{_lambda_.1} parent=5 // pred_check
        %p548 = pneg %p547
      $region78: #{_lambda_.1} parent=5 // pred_check_branch
        %550 = sbr.rel (%p548) target = $region80
      $region79: #{_lambda_.1} parent=5 // pred_region
        // Predicated region
        $region81: #{_lambda_.1} parent=79 // pred_check
          %p551 = pneg %p62
        $region82: #{_lambda_.1} parent=79 // pred_check_branch
          %553 = sbr.rel (%p551) target = $region84
        $region83: #{_lambda_.1} parent=79 // pred_region
          %s554 = smul.u32 32, %s36
          %p555 = scmp.lt.s32.totalorder %s35, 1
          %s556 = scalar_select %p555, %s35, 1
          %p557 = scmp.lt.s32.totalorder %s554, 31
          %s558 = scalar_select %p557, %s554, 31
          %s559 = smul.addr %s556, 32
          %s560 = sadd.s32 %s558, %s559
          %s561 = smul.addr %s560, 4
          %s562 = scalar_lea.vmem %s0, %s561
          %s563 = smul.u32 32, %s36
        $region84: #{_lambda_.1} parent=79 // pred_fallthru
          _
        // Predicated region
        $region85: #{_lambda_.1} parent=79 // pred_check
          %p564 = pneg %p88
        $region86: #{_lambda_.1} parent=79 // pred_check_branch
          %566 = sbr.rel (%p564) target = $region88
        $region87: #{_lambda_.1} parent=79 // pred_region
          %p567 = scmp.lt.s32.totalorder %s35, 1
          %s568 = scalar_select %p567, %s35, 1
          %s569 = smul.addr %s568, 16
          %s570 = smul.addr %s569, 4
          %s571 = scalar_lea.vmem %s1, %s570
        $region88: #{_lambda_.1} parent=79 // pred_fallthru
          _
        // Predicated region
        $region89: #{_lambda_.1} parent=79 // pred_check
          %p572 = pneg %p114
        $region90: #{_lambda_.1} parent=79 // pred_check_branch
          %574 = sbr.rel (%p572) target = $region92
        $region91: #{_lambda_.1} parent=79 // pred_region
          %p575 = scmp.lt.s32.totalorder %s35, 1
          %s576 = scalar_select %p575, %s35, 1
          %s577 = smul.addr %s576, 8
          %s578 = smul.addr %s577, 4
          %s579 = scalar_lea.vmem %s2, %s578
        $region92: #{_lambda_.1} parent=79 // pred_fallthru
          _
      $region80: #{_lambda_.1} parent=5 // pred_fallthru
        _
      %p580 = scmp.le.s32.totalorder 1, %s28
      %p581 = scmp.lt.s32.totalorder %s28, 3
      %p582 = pnand %p580, %p581
      %p583 = pneg %p582
      // Predicated region
      $region93: #{_lambda_.1} parent=5 // pred_check
        _
      $region94: #{_lambda_.1} parent=5 // pred_check_branch
        %585 = sbr.rel (%p582) target = $region96
      $region95: #{_lambda_.1} parent=5 // pred_region
        %s586 = ssub.s32 %s28, 1
        %s587 = smul.u32 32, %s38
        %p588 = scmp.lt.s32.totalorder %s37, 1
        %s589 = scalar_select %p588, %s37, 1
        %p590 = scmp.lt.s32.totalorder %s587, 31
        %s591 = scalar_select %p590, %s587, 31
        %s592 = smul.addr %s589, 32
        %s593 = sadd.s32 %s591, %s592
        %s594 = smul.addr %s593, 4
        %s595 = scalar_lea.vmem %s0, %s594
        %p596 = pneg %p68
        %p597 = pneg %p65
        %p598 = scmp.lt.s32.totalorder %s37, 1
        %s599 = scalar_select %p598, %s37, 1
        %s600 = smul.addr %s599, 16
        %s601 = smul.addr %s600, 4
        %s602 = scalar_lea.vmem %s1, %s601
        %p603 = pneg %p94
        %p604 = pneg %p91
        %p605 = scmp.lt.s32.totalorder %s37, 1
        %s606 = scalar_select %p605, %s37, 1
        %s607 = smul.addr %s606, 8
        %s608 = smul.addr %s607, 4
        %s609 = scalar_lea.vmem %s2, %s608
        %p610 = pneg %p120
        %p611 = pneg %p117
        %p612 = pneg %p141
        %p613 = pneg %p138
        %p614 = pneg %p162
        %p615 = pneg %p159
        %p616 = pneg %p183
        %p617 = pneg %p180
        %p618 = pneg %p204
        %p619 = pneg %p201
        %p620 = pneg %p225
        %p621 = pneg %p222
        %p622 = pneg %p246
        %p623 = pneg %p243
        %p624 = pneg %p267
        %p625 = pneg %p264
        %p626 = pneg %p288
        %p627 = pneg %p285
        %p628 = pneg %p309
        %p629 = pneg %p306
        %p630 = pneg %p330
        %p631 = pneg %p327
        %p632 = pneg %p351
        %p633 = pneg %p348
        %p634 = pneg %p372
        %p635 = pneg %p369
        %p636 = pneg %p393
        %p637 = pneg %p390
        %p638 = pneg %p414
        %p639 = pneg %p411
        %p640 = pneg %p435
        %p641 = pneg %p432
        %p642 = pneg %p456
        %p643 = pneg %p453
        %p644 = pneg %p484
        %p645 = pneg %p481
        %s646 = sand.u32 %s471, 1
        %s647 = scalar_lea.sflag [#allocation6], %s646
        %s648 = sand.u32 %s471, 1
        %s649 = smul.addr %s648, 256
        %s650 = scalar_lea.vmem [#allocation5], %s649
        %s651 = smul.u32 32, %s38
        %p652 = scmp.lt.s32.totalorder %s37, 1
        %s653 = scalar_select %p652, %s37, 1
        %p654 = scmp.lt.s32.totalorder %s651, 31
        %s655 = scalar_select %p654, %s651, 31
        %s656 = smul.addr %s653, 32
        %s657 = sadd.s32 %s655, %s656
        %s658 = smul.addr %s657, 4
        %s659 = scalar_lea.vmem %s0, %s658
        %s660 = smul.u32 32, %s38
        %p661 = scmp.lt.s32.totalorder %s37, 1
        %s662 = scalar_select %p661, %s37, 1
        %s663 = smul.addr %s662, 16
        %s664 = smul.addr %s663, 4
        %s665 = scalar_lea.vmem %s1, %s664
        %p666 = scmp.lt.s32.totalorder %s37, 1
        %s667 = scalar_select %p666, %s37, 1
        %s668 = smul.addr %s667, 8
        %s669 = smul.addr %s668, 4
        %s670 = scalar_lea.vmem %s2, %s669
        %s671 = smul.u32 32, %s38
        %p673 = scmp.eq.s32.totalorder %s38, 0
        // Predicated region
        $region97: #{_lambda_.1} parent=95 // pred_check
          %p674 = pneg %p673
        $region98: #{_lambda_.1} parent=95 // pred_check_branch
          %676 = sbr.rel (%p674) target = $region100
        $region99: #{_lambda_.1} parent=95 // pred_region
          %v677 = vld [vmem:[%s665] sm:$0xff]
          %v678 = vld [vmem:[%s665 + $0x8] sm:$0xff]
          %v679 = vld [vmem:[%s665 + $0x10] sm:$0xff]
          %v680 = vld [vmem:[%s665 + $0x18] sm:$0xff]
          %v681 = vld [vmem:[%s665 + $0x20] sm:$0xff]
          %v682 = vld [vmem:[%s665 + $0x28] sm:$0xff]
          %v683 = vld [vmem:[%s665 + $0x30] sm:$0xff]
          %v684 = vld [vmem:[%s665 + $0x38] sm:$0xff]
          %v685 = vld [vmem:[%s6] sm:$0xf]
          %v686 = vld [vmem:[%s6 + $0x4] sm:$0xf]
          %v687 = vld [vmem:[%s6 + $0x8] sm:$0xf]
          %v688 = vld [vmem:[%s6 + $0xc] sm:$0xf]
          %v689 = vld [vmem:[%s6 + $0x10] sm:$0xf]
          %v690 = vld [vmem:[%s6 + $0x14] sm:$0xf]
          %v691 = vld [vmem:[%s6 + $0x18] sm:$0xf]
          %v692 = vld [vmem:[%s6 + $0x1c] sm:$0xf]
          %v693 = vld [vmem:[%s6 + $0x20] sm:$0xf]
          %v694 = vld [vmem:[%s6 + $0x24] sm:$0xf]
          %v695 = vld [vmem:[%s6 + $0x28] sm:$0xf]
          %v696 = vld [vmem:[%s6 + $0x2c] sm:$0xf]
          %v697 = vld [vmem:[%s6 + $0x30] sm:$0xf]
          %v698 = vld [vmem:[%s6 + $0x34] sm:$0xf]
          %v699 = vld [vmem:[%s6 + $0x38] sm:$0xf]
          %v700 = vld [vmem:[%s6 + $0x3c] sm:$0xf]
          %v701 = vld [vmem:[%s6 + $0x40] sm:$0xf]
          %v702 = vld [vmem:[%s6 + $0x44] sm:$0xf]
          %v703 = vld [vmem:[%s6 + $0x48] sm:$0xf]
          %v704 = vld [vmem:[%s6 + $0x4c] sm:$0xf]
          %v705 = vld [vmem:[%s6 + $0x50] sm:$0xf]
          %v706 = vld [vmem:[%s6 + $0x54] sm:$0xf]
          %v707 = vld [vmem:[%s6 + $0x58] sm:$0xf]
          %v708 = vld [vmem:[%s6 + $0x5c] sm:$0xf]
          %v709 = vld [vmem:[%s6 + $0x60] sm:$0xf]
          %v710 = vld [vmem:[%s6 + $0x64] sm:$0xf]
          %v711 = vld [vmem:[%s6 + $0x68] sm:$0xf]
          %v712 = vld [vmem:[%s6 + $0x6c] sm:$0xf]
          %v713 = vld [vmem:[%s6 + $0x70] sm:$0xf]
          %v714 = vld [vmem:[%s6 + $0x74] sm:$0xf]
          %v715 = vld [vmem:[%s6 + $0x78] sm:$0xf]
          %v716 = vld [vmem:[%s6 + $0x7c] sm:$0xf]
          %v725 = vunpack.c.l.b16 %v677
          %v726 = vunpack.c.h.b16 %v677
          %v727 = vunpack.c.l.b16 %v678
          %v728 = vunpack.c.h.b16 %v678
          %v729 = vunpack.c.l.b16 %v679
          %v730 = vunpack.c.h.b16 %v679
          %v731 = vunpack.c.l.b16 %v680
          %v732 = vunpack.c.h.b16 %v680
          %v733 = vunpack.c.l.b16 %v681
          %v734 = vunpack.c.h.b16 %v681
          %v735 = vunpack.c.l.b16 %v682
          %v736 = vunpack.c.h.b16 %v682
          %v737 = vunpack.c.l.b16 %v683
          %v738 = vunpack.c.h.b16 %v683
          %v739 = vunpack.c.l.b16 %v684
          %v740 = vunpack.c.h.b16 %v684
          %v741 = vpack.c.b16 %v727, %v725
          %v742 = vpack.c.b16 %v728, %v726
          %v743 = vpack.c.b16 %v731, %v729
          %v744 = vpack.c.b16 %v732, %v730
          %v745 = vpack.c.b16 %v735, %v733
          %v746 = vpack.c.b16 %v736, %v734
          %v747 = vpack.c.b16 %v739, %v737
          %v748 = vpack.c.b16 %v740, %v738
          %v789 = vunpack.c.l.b16 %v685
          %v790 = vunpack.c.l.b16 %v686
          %v791 = vunpack.c.l.b16 %v687
          %v792 = vunpack.c.l.b16 %v688
          %v793 = vunpack.c.l.b16 %v689
          %v794 = vunpack.c.l.b16 %v690
          %v795 = vunpack.c.l.b16 %v691
          %v796 = vunpack.c.l.b16 %v692
          %v797 = vunpack.c.l.b16 %v693
          %v798 = vunpack.c.l.b16 %v694
          %v799 = vunpack.c.l.b16 %v695
          %v800 = vunpack.c.l.b16 %v696
          %v801 = vunpack.c.l.b16 %v697
          %v802 = vunpack.c.l.b16 %v698
          %v803 = vunpack.c.l.b16 %v699
          %v804 = vunpack.c.l.b16 %v700
          %v805 = vunpack.c.l.b16 %v701
          %v806 = vunpack.c.l.b16 %v702
          %v807 = vunpack.c.l.b16 %v703
          %v808 = vunpack.c.l.b16 %v704
          %v809 = vunpack.c.l.b16 %v705
          %v810 = vunpack.c.l.b16 %v706
          %v811 = vunpack.c.l.b16 %v707
          %v812 = vunpack.c.l.b16 %v708
          %v813 = vunpack.c.l.b16 %v709
          %v814 = vunpack.c.l.b16 %v710
          %v815 = vunpack.c.l.b16 %v711
          %v816 = vunpack.c.l.b16 %v712
          %v817 = vunpack.c.l.b16 %v713
          %v818 = vunpack.c.l.b16 %v714
          %v819 = vunpack.c.l.b16 %v715
          %v820 = vunpack.c.l.b16 %v716
          %v821 = vpack.c.b16 %v790, %v789
          %v822 = vpack.c.b16 %v792, %v791
          %v823 = vpack.c.b16 %v794, %v793
          %v824 = vpack.c.b16 %v796, %v795
          %v825 = vpack.c.b16 %v798, %v797
          %v826 = vpack.c.b16 %v800, %v799
          %v827 = vpack.c.b16 %v802, %v801
          %v828 = vpack.c.b16 %v804, %v803
          %v829 = vpack.c.b16 %v806, %v805
          %v830 = vpack.c.b16 %v808, %v807
          %v831 = vpack.c.b16 %v810, %v809
          %v832 = vpack.c.b16 %v812, %v811
          %v833 = vpack.c.b16 %v814, %v813
          %v834 = vpack.c.b16 %v816, %v815
          %v835 = vpack.c.b16 %v818, %v817
          %v836 = vpack.c.b16 %v820, %v819
          %853 = vmatprep.subr.bf16.mxu0 0
          %854 = vmatpush1.bf16.msra.mxu0 %v821
          %855 = vmatprep.subr.bf16.mxu0 0
          %856 = vmatpush1.bf16.msra.mxu0 %v822
          %857 = vmatprep.subr.bf16.mxu0 0
          %858 = vmatpush1.bf16.msra.mxu0 %v823
          %859 = vmatprep.subr.bf16.mxu0 0
          %860 = vmatpush1.bf16.msra.mxu0 %v824
          %861 = vmatprep.subr.bf16.mxu0 0
          %862 = vmatpush1.bf16.msra.mxu0 %v825
          %863 = vmatprep.subr.bf16.mxu0 0
          %864 = vmatpush1.bf16.msra.mxu0 %v826
          %865 = vmatprep.subr.bf16.mxu0 0
          %866 = vmatpush1.bf16.msra.mxu0 %v827
          %867 = vmatprep.subr.bf16.mxu0 0
          %868 = vmatpush1.bf16.msra.mxu0 %v828
          %869 = vmatprep.subr.bf16.mxu0 0
          %870 = vmatpush1.bf16.msra.mxu0 %v829
          %871 = vmatprep.subr.bf16.mxu0 0
          %872 = vmatpush1.bf16.msra.mxu0 %v830
          %873 = vmatprep.subr.bf16.mxu0 0
          %874 = vmatpush1.bf16.msra.mxu0 %v831
          %875 = vmatprep.subr.bf16.mxu0 0
          %876 = vmatpush1.bf16.msra.mxu0 %v832
          %877 = vmatprep.subr.bf16.mxu0 0
          %878 = vmatpush1.bf16.msra.mxu0 %v833
          %879 = vmatprep.subr.bf16.mxu0 0
          %880 = vmatpush1.bf16.msra.mxu0 %v834
          %881 = vmatprep.subr.bf16.mxu0 0
          %882 = vmatpush1.bf16.msra.mxu0 %v835
          %883 = vmatprep.subr.bf16.mxu0 0
          %884 = vmatpush1.bf16.msra.mxu0 %v836
          %885 = vmatprep.mubr.bf16.mxu0 %v742
          %886 = vmatmul.mubr.bf16.gmra.mrb[0].mxu0 %v741
          %v887 = vpop.f32.mrb[0].mxu0
          %v888 = vadd.f32 0.0, %v887
          %v889 = vpop.f32.mrb[0].mxu0
          %v890 = vpop.f32.mrb[0].mxu0
          %v891 = vadd.f32 0.0, %v890
          %v892 = vpop.f32.mrb[0].mxu0
          %893 = vmatprep.mubr.bf16.mxu0 %v744
          %894 = vmatmul.mubr.bf16.gmra.mrb[0].mxu0 %v743
          %v895 = vpop.f32.mrb[0].mxu0
          %v896 = vadd.f32 0.0, %v895
          %v897 = vpop.f32.mrb[0].mxu0
          %v898 = vpop.f32.mrb[0].mxu0
          %v899 = vadd.f32 0.0, %v898
          %v900 = vpop.f32.mrb[0].mxu0
          %901 = vmatprep.mubr.bf16.mxu0 %v746
          %902 = vmatmul.mubr.bf16.gmra.mrb[0].mxu0 %v745
          %v903 = vpop.f32.mrb[0].mxu0
          %v904 = vadd.f32 0.0, %v903
          %v905 = vpop.f32.mrb[0].mxu0
          %v906 = vpop.f32.mrb[0].mxu0
          %v907 = vadd.f32 0.0, %v906
          %v908 = vpop.f32.mrb[0].mxu0
          %909 = vmatprep.mubr.bf16.mxu0 %v748
          %910 = vmatmul.mubr.bf16.gmra.mrb[0].mxu0 %v747
          %v911 = vpop.f32.mrb[0].mxu0
          %v912 = vadd.f32 0.0, %v911
          %v913 = vpop.f32.mrb[0].mxu0
          %v914 = vpop.f32.mrb[0].mxu0
          %v915 = vadd.f32 0.0, %v914
          %v916 = vpop.f32.mrb[0].mxu0
          %917 = vdwg.mxu0
          %v918 = vld [vmem:[%s7] sm:$0x1]
          %v920 = vlaneseq
          %v921 = vshrl.u32 %v920, 7
          %v922 = vsub.s32 0, %v921
          %v923 = vrot.slane %v918, %v922
          %v925 = vmul.f32 %v888, %v923
          %v926 = vmul.f32 %v891, %v923
          %v927 = vmul.f32 %v896, %v923
          %v928 = vmul.f32 %v899, %v923
          %v929 = vmul.f32 %v904, %v923
          %v930 = vmul.f32 %v907, %v923
          %v931 = vmul.f32 %v912, %v923
          %v932 = vmul.f32 %v915, %v923
          %v933 = vld [vmem:[%s8] sm:$0x1]
          %v935 = vlaneseq
          %v936 = vshrl.u32 %v935, 7
          %v937 = vsub.s32 0, %v936
          %v938 = vrot.slane %v933, %v937
          %v940 = vadd.f32 %v925, %v938
          %v941 = vadd.f32 %v926, %v938
          %v942 = vadd.f32 %v927, %v938
          %v943 = vadd.f32 %v928, %v938
          %v944 = vadd.f32 %v929, %v938
          %v945 = vadd.f32 %v930, %v938
          %v946 = vadd.f32 %v931, %v938
          %v947 = vadd.f32 %v932, %v938
          %v948 = vmax.f32 %v940, 0.0
          %v949 = vmax.f32 %v941, 0.0
          %v950 = vmax.f32 %v942, 0.0
          %v951 = vmax.f32 %v943, 0.0
          %v952 = vmax.f32 %v944, 0.0
          %v953 = vmax.f32 %v945, 0.0
          %v954 = vmax.f32 %v946, 0.0
          %v955 = vmax.f32 %v947, 0.0
          %v956 = vpack.c.bf16 %v949, %v948
          %v957 = vpack.c.bf16 %v951, %v950
          %v958 = vpack.c.bf16 %v953, %v952
          %v959 = vpack.c.bf16 %v955, %v954
          %v960 = vld [vmem:[%s13] sm:$0xf]
          %v961 = vld [vmem:[%s13 + $0x4] sm:$0xf]
          %v962 = vld [vmem:[%s13 + $0x8] sm:$0xf]
          %v963 = vld [vmem:[%s13 + $0xc] sm:$0xf]
          %v964 = vld [vmem:[%s13 + $0x10] sm:$0xf]
          %v965 = vld [vmem:[%s13 + $0x14] sm:$0xf]
          %v966 = vld [vmem:[%s13 + $0x18] sm:$0xf]
          %v967 = vld [vmem:[%s13 + $0x1c] sm:$0xf]
          %v976 = vunpack.c.l.b16 %v960
          %v977 = vunpack.c.l.b16 %v961
          %v978 = vunpack.c.l.b16 %v962
          %v979 = vunpack.c.l.b16 %v963
          %v980 = vunpack.c.l.b16 %v964
          %v981 = vunpack.c.l.b16 %v965
          %v982 = vunpack.c.l.b16 %v966
          %v983 = vunpack.c.l.b16 %v967
          %v984 = vpack.c.b16 %v977, %v976
          %v985 = vpack.c.b16 %v979, %v978
          %v986 = vpack.c.b16 %v981, %v980
          %v987 = vpack.c.b16 %v983, %v982
          %vm992 = vcmask 523264
          %v994 = vsel %vm992, %v956, 0
          %v997 = vsel %vm992, %v957, 0
          %v1000 = vsel %vm992, %v958, 0
          %v1003 = vsel %vm992, %v959, 0
          %1005 = vmatprep.subr.bf16.mxu0 0
          %1006 = vmatpush1.bf16.msra.mxu0 %v984
          %1007 = vmatprep.subr.bf16.mxu0 0
          %1008 = vmatpush1.bf16.msra.mxu0 %v985
          %1009 = vmatprep.subr.bf16.mxu0 0
          %1010 = vmatpush1.bf16.msra.mxu0 %v986
          %1011 = vmatprep.subr.bf16.mxu0 0
          %1012 = vmatpush1.bf16.msra.mxu0 %v987
          %1013 = vmatprep.subr.bf16.mxu0 0
          %1014 = vmatpush1.bf16.msra.mxu0 0
          %1015 = vmatprep.subr.bf16.mxu0 0
          %1016 = vmatpush1.bf16.msra.mxu0 0
          %1017 = vmatprep.subr.bf16.mxu0 0
          %1018 = vmatpush1.bf16.msra.mxu0 0
          %1019 = vmatprep.subr.bf16.mxu0 0
          %1020 = vmatpush1.bf16.msra.mxu0 0
          %1021 = vmatprep.subr.bf16.mxu0 0
          %1022 = vmatpush1.bf16.msra.mxu0 0
          %1023 = vmatprep.subr.bf16.mxu0 0
          %1024 = vmatpush1.bf16.msra.mxu0 0
          %1025 = vmatprep.subr.bf16.mxu0 0
          %1026 = vmatpush1.bf16.msra.mxu0 0
          %1027 = vmatprep.subr.bf16.mxu0 0
          %1028 = vmatpush1.bf16.msra.mxu0 0
          %1029 = vmatprep.subr.bf16.mxu0 0
          %1030 = vmatpush1.bf16.msra.mxu0 0
          %1031 = vmatprep.subr.bf16.mxu0 0
          %1032 = vmatpush1.bf16.msra.mxu0 0
          %1033 = vmatprep.subr.bf16.mxu0 0
          %1034 = vmatpush1.bf16.msra.mxu0 0
          %1035 = vmatprep.subr.bf16.mxu0 0
          %1036 = vmatpush1.bf16.msra.mxu0 0
          %1037 = vmatprep.mubr.bf16.mxu0 0
          %1038 = vmatmul.mubr.bf16.gmra.mrb[0].mxu0 %v994
          %v1039 = vpop.f32.mrb[0].mxu0
          %v1040 = vadd.f32 0.0, %v1039
          %v1041 = vpop.f32.mrb[0].mxu0
          %v1042 = vpop.f32.mrb[0].mxu0
          %v1043 = vadd.f32 0.0, %v1042
          %v1044 = vpop.f32.mrb[0].mxu0
          %1045 = vmatprep.mubr.bf16.mxu0 0
          %1046 = vmatmul.mubr.bf16.gmra.mrb[0].mxu0 %v997
          %v1047 = vpop.f32.mrb[0].mxu0
          %v1048 = vadd.f32 0.0, %v1047
          %v1049 = vpop.f32.mrb[0].mxu0
          %v1050 = vpop.f32.mrb[0].mxu0
          %v1051 = vadd.f32 0.0, %v1050
          %v1052 = vpop.f32.mrb[0].mxu0
          %1053 = vmatprep.mubr.bf16.mxu0 0
          %1054 = vmatmul.mubr.bf16.gmra.mrb[0].mxu0 %v1000
          %v1055 = vpop.f32.mrb[0].mxu0
          %v1056 = vadd.f32 0.0, %v1055
          %v1057 = vpop.f32.mrb[0].mxu0
          %v1058 = vpop.f32.mrb[0].mxu0
          %v1059 = vadd.f32 0.0, %v1058
          %v1060 = vpop.f32.mrb[0].mxu0
          %1061 = vmatprep.mubr.bf16.mxu0 0
          %1062 = vmatmul.mubr.bf16.gmra.mrb[0].mxu0 %v1003
          %v1063 = vpop.f32.mrb[0].mxu0
          %v1064 = vadd.f32 0.0, %v1063
          %v1065 = vpop.f32.mrb[0].mxu0
          %v1066 = vpop.f32.mrb[0].mxu0
          %v1067 = vadd.f32 0.0, %v1066
          %v1068 = vpop.f32.mrb[0].mxu0
          %1069 = vdwg.mxu0
          %v1070 = vpack.c.bf16 %v1043, %v1040
          %v1071 = vpack.c.bf16 %v1051, %v1048
          %v1072 = vpack.c.bf16 %v1059, %v1056
          %v1073 = vpack.c.bf16 %v1067, %v1064
          %v1074 = vld [vmem:[%s17] sm:$0xf]
          %v1075 = vld [vmem:[%s17 + $0x4] sm:$0xf]
          %v1078 = vunpack.c.l.b16 %v1074
          %v1079 = vunpack.c.l.b16 %v1075
          %v1080 = vpack.c.b16 %v1079, %v1078
          %vm1081 = vcmask 64512
          %v1083 = vsel %vm1081, %v1080, 0
          %vm1085 = vcmask 1043456
          %v1087 = vsel %vm1085, %v1070, 0
          %1089 = vmatprep.subr.bf16.mxu0 0
          %1090 = vmatpush1.bf16.msra.mxu0 %v1087
          %1091 = vmatprep.subr.bf16.mxu0 0
          %1092 = vmatpush1.bf16.msra.mxu0 0
          %1093 = vmatprep.subr.bf16.mxu0 0
          %1094 = vmatpush1.bf16.msra.mxu0 0
          %1095 = vmatprep.subr.bf16.mxu0 0
          %1096 = vmatpush1.bf16.msra.mxu0 0
          %1097 = vmatprep.subr.bf16.mxu0 0
          %1098 = vmatpush1.bf16.msra.mxu0 0
          %1099 = vmatprep.subr.bf16.mxu0 0
          %1100 = vmatpush1.bf16.msra.mxu0 0
          %1101 = vmatprep.subr.bf16.mxu0 0
          %1102 = vmatpush1.bf16.msra.mxu0 0
          %1103 = vmatprep.subr.bf16.mxu0 0
          %1104 = vmatpush1.bf16.msra.mxu0 0
          %1105 = vmatprep.subr.bf16.mxu0 0
          %1106 = vmatpush1.bf16.msra.mxu0 0
          %1107 = vmatprep.subr.bf16.mxu0 0
          %1108 = vmatpush1.bf16.msra.mxu0 0
          %1109 = vmatprep.subr.bf16.mxu0 0
          %1110 = vmatpush1.bf16.msra.mxu0 0
          %1111 = vmatprep.subr.bf16.mxu0 0
          %1112 = vmatpush1.bf16.msra.mxu0 0
          %1113 = vmatprep.subr.bf16.mxu0 0
          %1114 = vmatpush1.bf16.msra.mxu0 0
          %1115 = vmatprep.subr.bf16.mxu0 0
          %1116 = vmatpush1.bf16.msra.mxu0 0
          %1117 = vmatprep.subr.bf16.mxu0 0
          %1118 = vmatpush1.bf16.msra.mxu0 0
          %1119 = vmatprep.subr.bf16.mxu0 0
          %1120 = vmatpush1.bf16.msra.mxu0 0
          %1121 = vmatprep.mubr.bf16.mxu0 0
          %1122 = vmatmul.mubr.bf16.gmra.mrb[0].mxu0 %v1083
          %v1123 = vpop.f32.mrb[0].mxu0
          %v1124 = vadd.f32 0.0, %v1123
          %v1125 = vpop.f32.mrb[0].mxu0
          %v1126 = vpop.f32.mrb[0].mxu0
          %v1127 = vadd.f32 0.0, %v1126
          %v1128 = vpop.f32.mrb[0].mxu0
          %1129 = vdwg.mxu0
          %1130 = vst [vmem:[#allocation2] sm:$0xff] %v1124
          %1131 = vst [vmem:[#allocation2 + $0x8] sm:$0xff] %v1127
          %v1133 = vrot.slane %v1070, 4
          %v1135 = vsel %vm1085, %v1133, 0
          %1137 = vmatprep.subr.bf16.mxu0 0
          %1138 = vmatpush1.bf16.msra.mxu0 %v1135
          %1139 = vmatprep.subr.bf16.mxu0 0
          %1140 = vmatpush1.bf16.msra.mxu0 0
          %1141 = vmatprep.subr.bf16.mxu0 0
          %1142 = vmatpush1.bf16.msra.mxu0 0
          %1143 = vmatprep.subr.bf16.mxu0 0
          %1144 = vmatpush1.bf16.msra.mxu0 0
          %1145 = vmatprep.subr.bf16.mxu0 0
          %1146 = vmatpush1.bf16.msra.mxu0 0
          %1147 = vmatprep.subr.bf16.mxu0 0
          %1148 = vmatpush1.bf16.msra.mxu0 0
          %1149 = vmatprep.subr.bf16.mxu0 0
          %1150 = vmatpush1.bf16.msra.mxu0 0
          %1151 = vmatprep.subr.bf16.mxu0 0
          %1152 = vmatpush1.bf16.msra.mxu0 0
          %1153 = vmatprep.subr.bf16.mxu0 0
          %1154 = vmatpush1.bf16.msra.mxu0 0
          %1155 = vmatprep.subr.bf16.mxu0 0
          %1156 = vmatpush1.bf16.msra.mxu0 0
          %1157 = vmatprep.subr.bf16.mxu0 0
          %1158 = vmatpush1.bf16.msra.mxu0 0
          %1159 = vmatprep.subr.bf16.mxu0 0
          %1160 = vmatpush1.bf16.msra.mxu0 0
          %1161 = vmatprep.subr.bf16.mxu0 0
          %1162 = vmatpush1.bf16.msra.mxu0 0
          %1163 = vmatprep.subr.bf16.mxu0 0
          %1164 = vmatpush1.bf16.msra.mxu0 0
          %1165 = vmatprep.subr.bf16.mxu0 0
          %1166 = vmatpush1.bf16.msra.mxu0 0
          %1167 = vmatprep.subr.bf16.mxu0 0
          %1168 = vmatpush1.bf16.msra.mxu0 0
          %1169 = vmatprep.mubr.bf16.mxu0 0
          %1170 = vmatmul.mubr.bf16.gmra.mrb[0].mxu0 %v1083
          %v1171 = vpop.f32.mrb[0].mxu0
          %v1172 = vadd.f32 0.0, %v1171
          %v1173 = vpop.f32.mrb[0].mxu0
          %v1174 = vpop.f32.mrb[0].mxu0
          %v1175 = vadd.f32 0.0, %v1174
          %v1176 = vpop.f32.mrb[0].mxu0
          %1177 = vdwg.mxu0
          %s1178 = scalar_lea.vmem [#allocation2], 16
          %1179 = vst [vmem:[%s1178] sm:$0xff] %v1172
          %1180 = vst [vmem:[%s1178 + $0x8] sm:$0xff] %v1175
          %v1182 = vsel %vm1085, %v1071, 0
          %1184 = vmatprep.subr.bf16.mxu0 0
          %1185 = vmatpush1.bf16.msra.mxu0 %v1182
          %1186 = vmatprep.subr.bf16.mxu0 0
          %1187 = vmatpush1.bf16.msra.mxu0 0
          %1188 = vmatprep.subr.bf16.mxu0 0
          %1189 = vmatpush1.bf16.msra.mxu0 0
          %1190 = vmatprep.subr.bf16.mxu0 0
          %1191 = vmatpush1.bf16.msra.mxu0 0
          %1192 = vmatprep.subr.bf16.mxu0 0
          %1193 = vmatpush1.bf16.msra.mxu0 0
          %1194 = vmatprep.subr.bf16.mxu0 0
          %1195 = vmatpush1.bf16.msra.mxu0 0
          %1196 = vmatprep.subr.bf16.mxu0 0
          %1197 = vmatpush1.bf16.msra.mxu0 0
          %1198 = vmatprep.subr.bf16.mxu0 0
          %1199 = vmatpush1.bf16.msra.mxu0 0
          %1200 = vmatprep.subr.bf16.mxu0 0
          %1201 = vmatpush1.bf16.msra.mxu0 0
          %1202 = vmatprep.subr.bf16.mxu0 0
          %1203 = vmatpush1.bf16.msra.mxu0 0
          %1204 = vmatprep.subr.bf16.mxu0 0
          %1205 = vmatpush1.bf16.msra.mxu0 0
          %1206 = vmatprep.subr.bf16.mxu0 0
          %1207 = vmatpush1.bf16.msra.mxu0 0
          %1208 = vmatprep.subr.bf16.mxu0 0
          %1209 = vmatpush1.bf16.msra.mxu0 0
          %1210 = vmatprep.subr.bf16.mxu0 0
          %1211 = vmatpush1.bf16.msra.mxu0 0
          %1212 = vmatprep.subr.bf16.mxu0 0
          %1213 = vmatpush1.bf16.msra.mxu0 0
          %1214 = vmatprep.subr.bf16.mxu0 0
          %1215 = vmatpush1.bf16.msra.mxu0 0
          %1216 = vmatprep.mubr.bf16.mxu0 0
          %1217 = vmatmul.mubr.bf16.gmra.mrb[0].mxu0 %v1083
          %v1218 = vpop.f32.mrb[0].mxu0
          %v1219 = vadd.f32 0.0, %v1218
          %v1220 = vpop.f32.mrb[0].mxu0
          %v1221 = vpop.f32.mrb[0].mxu0
          %v1222 = vadd.f32 0.0, %v1221
          %v1223 = vpop.f32.mrb[0].mxu0
          %1224 = vdwg.mxu0
          %s1225 = scalar_lea.vmem [#allocation2], 32
          %1226 = vst [vmem:[%s1225] sm:$0xff] %v1219
          %1227 = vst [vmem:[%s1225 + $0x8] sm:$0xff] %v1222
          %v1229 = vrot.slane %v1071, 4
          %v1231 = vsel %vm1085, %v1229, 0
          %1233 = vmatprep.subr.bf16.mxu0 0
          %1234 = vmatpush1.bf16.msra.mxu0 %v1231
          %1235 = vmatprep.subr.bf16.mxu0 0
          %1236 = vmatpush1.bf16.msra.mxu0 0
          %1237 = vmatprep.subr.bf16.mxu0 0
          %1238 = vmatpush1.bf16.msra.mxu0 0
          %1239 = vmatprep.subr.bf16.mxu0 0
          %1240 = vmatpush1.bf16.msra.mxu0 0
          %1241 = vmatprep.subr.bf16.mxu0 0
          %1242 = vmatpush1.bf16.msra.mxu0 0
          %1243 = vmatprep.subr.bf16.mxu0 0
          %1244 = vmatpush1.bf16.msra.mxu0 0
          %1245 = vmatprep.subr.bf16.mxu0 0
          %1246 = vmatpush1.bf16.msra.mxu0 0
          %1247 = vmatprep.subr.bf16.mxu0 0
          %1248 = vmatpush1.bf16.msra.mxu0 0
          %1249 = vmatprep.subr.bf16.mxu0 0
          %1250 = vmatpush1.bf16.msra.mxu0 0
          %1251 = vmatprep.subr.bf16.mxu0 0
          %1252 = vmatpush1.bf16.msra.mxu0 0
          %1253 = vmatprep.subr.bf16.mxu0 0
          %1254 = vmatpush1.bf16.msra.mxu0 0
          %1255 = vmatprep.subr.bf16.mxu0 0
          %1256 = vmatpush1.bf16.msra.mxu0 0
          %1257 = vmatprep.subr.bf16.mxu0 0
          %1258 = vmatpush1.bf16.msra.mxu0 0
          %1259 = vmatprep.subr.bf16.mxu0 0
          %1260 = vmatpush1.bf16.msra.mxu0 0
          %1261 = vmatprep.subr.bf16.mxu0 0
          %1262 = vmatpush1.bf16.msra.mxu0 0
          %1263 = vmatprep.subr.bf16.mxu0 0
          %1264 = vmatpush1.bf16.msra.mxu0 0
          %1265 = vmatprep.mubr.bf16.mxu0 0
          %1266 = vmatmul.mubr.bf16.gmra.mrb[0].mxu0 %v1083
          %v1267 = vpop.f32.mrb[0].mxu0
          %v1268 = vadd.f32 0.0, %v1267
          %v1269 = vpop.f32.mrb[0].mxu0
          %v1270 = vpop.f32.mrb[0].mxu0
          %v1271 = vadd.f32 0.0, %v1270
          %v1272 = vpop.f32.mrb[0].mxu0
          %1273 = vdwg.mxu0
          %s1274 = scalar_lea.vmem [#allocation2], 48
          %1275 = vst [vmem:[%s1274] sm:$0xff] %v1268
          %1276 = vst [vmem:[%s1274 + $0x8] sm:$0xff] %v1271
          %v1278 = vsel %vm1085, %v1072, 0
          %1280 = vmatprep.subr.bf16.mxu0 0
          %1281 = vmatpush1.bf16.msra.mxu0 %v1278
          %1282 = vmatprep.subr.bf16.mxu0 0
          %1283 = vmatpush1.bf16.msra.mxu0 0
          %1284 = vmatprep.subr.bf16.mxu0 0
          %1285 = vmatpush1.bf16.msra.mxu0 0
          %1286 = vmatprep.subr.bf16.mxu0 0
          %1287 = vmatpush1.bf16.msra.mxu0 0
          %1288 = vmatprep.subr.bf16.mxu0 0
          %1289 = vmatpush1.bf16.msra.mxu0 0
          %1290 = vmatprep.subr.bf16.mxu0 0
          %1291 = vmatpush1.bf16.msra.mxu0 0
          %1292 = vmatprep.subr.bf16.mxu0 0
          %1293 = vmatpush1.bf16.msra.mxu0 0
          %1294 = vmatprep.subr.bf16.mxu0 0
          %1295 = vmatpush1.bf16.msra.mxu0 0
          %1296 = vmatprep.subr.bf16.mxu0 0
          %1297 = vmatpush1.bf16.msra.mxu0 0
          %1298 = vmatprep.subr.bf16.mxu0 0
          %1299 = vmatpush1.bf16.msra.mxu0 0
          %1300 = vmatprep.subr.bf16.mxu0 0
          %1301 = vmatpush1.bf16.msra.mxu0 0
          %1302 = vmatprep.subr.bf16.mxu0 0
          %1303 = vmatpush1.bf16.msra.mxu0 0
          %1304 = vmatprep.subr.bf16.mxu0 0
          %1305 = vmatpush1.bf16.msra.mxu0 0
          %1306 = vmatprep.subr.bf16.mxu0 0
          %1307 = vmatpush1.bf16.msra.mxu0 0
          %1308 = vmatprep.subr.bf16.mxu0 0
          %1309 = vmatpush1.bf16.msra.mxu0 0
          %1310 = vmatprep.subr.bf16.mxu0 0
          %1311 = vmatpush1.bf16.msra.mxu0 0
          %1312 = vmatprep.mubr.bf16.mxu0 0
          %1313 = vmatmul.mubr.bf16.gmra.mrb[0].mxu0 %v1083
          %v1314 = vpop.f32.mrb[0].mxu0
          %v1315 = vadd.f32 0.0, %v1314
          %v1316 = vpop.f32.mrb[0].mxu0
          %v1317 = vpop.f32.mrb[0].mxu0
          %v1318 = vadd.f32 0.0, %v1317
          %v1319 = vpop.f32.mrb[0].mxu0
          %1320 = vdwg.mxu0
          %s1321 = scalar_lea.vmem [#allocation2], 64
          %1322 = vst [vmem:[%s1321] sm:$0xff] %v1315
          %1323 = vst [vmem:[%s1321 + $0x8] sm:$0xff] %v1318
          %v1325 = vrot.slane %v1072, 4
          %v1327 = vsel %vm1085, %v1325, 0
          %1329 = vmatprep.subr.bf16.mxu0 0
          %1330 = vmatpush1.bf16.msra.mxu0 %v1327
          %1331 = vmatprep.subr.bf16.mxu0 0
          %1332 = vmatpush1.bf16.msra.mxu0 0
          %1333 = vmatprep.subr.bf16.mxu0 0
          %1334 = vmatpush1.bf16.msra.mxu0 0
          %1335 = vmatprep.subr.bf16.mxu0 0
          %1336 = vmatpush1.bf16.msra.mxu0 0
          %1337 = vmatprep.subr.bf16.mxu0 0
          %1338 = vmatpush1.bf16.msra.mxu0 0
          %1339 = vmatprep.subr.bf16.mxu0 0
          %1340 = vmatpush1.bf16.msra.mxu0 0
          %1341 = vmatprep.subr.bf16.mxu0 0
          %1342 = vmatpush1.bf16.msra.mxu0 0
          %1343 = vmatprep.subr.bf16.mxu0 0
          %1344 = vmatpush1.bf16.msra.mxu0 0
          %1345 = vmatprep.subr.bf16.mxu0 0
          %1346 = vmatpush1.bf16.msra.mxu0 0
          %1347 = vmatprep.subr.bf16.mxu0 0
          %1348 = vmatpush1.bf16.msra.mxu0 0
          %1349 = vmatprep.subr.bf16.mxu0 0
          %1350 = vmatpush1.bf16.msra.mxu0 0
          %1351 = vmatprep.subr.bf16.mxu0 0
          %1352 = vmatpush1.bf16.msra.mxu0 0
          %1353 = vmatprep.subr.bf16.mxu0 0
          %1354 = vmatpush1.bf16.msra.mxu0 0
          %1355 = vmatprep.subr.bf16.mxu0 0
          %1356 = vmatpush1.bf16.msra.mxu0 0
          %1357 = vmatprep.subr.bf16.mxu0 0
          %1358 = vmatpush1.bf16.msra.mxu0 0
          %1359 = vmatprep.subr.bf16.mxu0 0
          %1360 = vmatpush1.bf16.msra.mxu0 0
          %1361 = vmatprep.mubr.bf16.mxu0 0
          %1362 = vmatmul.mubr.bf16.gmra.mrb[0].mxu0 %v1083
          %v1363 = vpop.f32.mrb[0].mxu0
          %v1364 = vadd.f32 0.0, %v1363
          %v1365 = vpop.f32.mrb[0].mxu0
          %v1366 = vpop.f32.mrb[0].mxu0
          %v1367 = vadd.f32 0.0, %v1366
          %v1368 = vpop.f32.mrb[0].mxu0
          %1369 = vdwg.mxu0
          %s1370 = scalar_lea.vmem [#allocation2], 80
          %1371 = vst [vmem:[%s1370] sm:$0xff] %v1364
          %1372 = vst [vmem:[%s1370 + $0x8] sm:$0xff] %v1367
          %v1374 = vsel %vm1085, %v1073, 0
          %1376 = vmatprep.subr.bf16.mxu0 0
          %1377 = vmatpush1.bf16.msra.mxu0 %v1374
          %1378 = vmatprep.subr.bf16.mxu0 0
          %1379 = vmatpush1.bf16.msra.mxu0 0
          %1380 = vmatprep.subr.bf16.mxu0 0
          %1381 = vmatpush1.bf16.msra.mxu0 0
          %1382 = vmatprep.subr.bf16.mxu0 0
          %1383 = vmatpush1.bf16.msra.mxu0 0
          %1384 = vmatprep.subr.bf16.mxu0 0
          %1385 = vmatpush1.bf16.msra.mxu0 0
          %1386 = vmatprep.subr.bf16.mxu0 0
          %1387 = vmatpush1.bf16.msra.mxu0 0
          %1388 = vmatprep.subr.bf16.mxu0 0
          %1389 = vmatpush1.bf16.msra.mxu0 0
          %1390 = vmatprep.subr.bf16.mxu0 0
          %1391 = vmatpush1.bf16.msra.mxu0 0
          %1392 = vmatprep.subr.bf16.mxu0 0
          %1393 = vmatpush1.bf16.msra.mxu0 0
          %1394 = vmatprep.subr.bf16.mxu0 0
          %1395 = vmatpush1.bf16.msra.mxu0 0
          %1396 = vmatprep.subr.bf16.mxu0 0
          %1397 = vmatpush1.bf16.msra.mxu0 0
          %1398 = vmatprep.subr.bf16.mxu0 0
          %1399 = vmatpush1.bf16.msra.mxu0 0
          %1400 = vmatprep.subr.bf16.mxu0 0
          %1401 = vmatpush1.bf16.msra.mxu0 0
          %1402 = vmatprep.subr.bf16.mxu0 0
          %1403 = vmatpush1.bf16.msra.mxu0 0
          %1404 = vmatprep.subr.bf16.mxu0 0
          %1405 = vmatpush1.bf16.msra.mxu0 0
          %1406 = vmatprep.subr.bf16.mxu0 0
          %1407 = vmatpush1.bf16.msra.mxu0 0
          %1408 = vmatprep.mubr.bf16.mxu0 0
          %1409 = vmatmul.mubr.bf16.gmra.mrb[0].mxu0 %v1083
          %v1410 = vpop.f32.mrb[0].mxu0
          %v1411 = vadd.f32 0.0, %v1410
          %v1412 = vpop.f32.mrb[0].mxu0
          %v1413 = vpop.f32.mrb[0].mxu0
          %v1414 = vadd.f32 0.0, %v1413
          %v1415 = vpop.f32.mrb[0].mxu0
          %1416 = vdwg.mxu0
          %s1417 = scalar_lea.vmem [#allocation2], 96
          %1418 = vst [vmem:[%s1417] sm:$0xff] %v1411
          %1419 = vst [vmem:[%s1417 + $0x8] sm:$0xff] %v1414
          %v1421 = vrot.slane %v1073, 4
          %v1423 = vsel %vm1085, %v1421, 0
          %1425 = vmatprep.subr.bf16.mxu0 0
          %1426 = vmatpush1.bf16.msra.mxu0 %v1423
          %1427 = vmatprep.subr.bf16.mxu0 0
          %1428 = vmatpush1.bf16.msra.mxu0 0
          %1429 = vmatprep.subr.bf16.mxu0 0
          %1430 = vmatpush1.bf16.msra.mxu0 0
          %1431 = vmatprep.subr.bf16.mxu0 0
          %1432 = vmatpush1.bf16.msra.mxu0 0
          %1433 = vmatprep.subr.bf16.mxu0 0
          %1434 = vmatpush1.bf16.msra.mxu0 0
          %1435 = vmatprep.subr.bf16.mxu0 0
          %1436 = vmatpush1.bf16.msra.mxu0 0
          %1437 = vmatprep.subr.bf16.mxu0 0
          %1438 = vmatpush1.bf16.msra.mxu0 0
          %1439 = vmatprep.subr.bf16.mxu0 0
          %1440 = vmatpush1.bf16.msra.mxu0 0
          %1441 = vmatprep.subr.bf16.mxu0 0
          %1442 = vmatpush1.bf16.msra.mxu0 0
          %1443 = vmatprep.subr.bf16.mxu0 0
          %1444 = vmatpush1.bf16.msra.mxu0 0
          %1445 = vmatprep.subr.bf16.mxu0 0
          %1446 = vmatpush1.bf16.msra.mxu0 0
          %1447 = vmatprep.subr.bf16.mxu0 0
          %1448 = vmatpush1.bf16.msra.mxu0 0
          %1449 = vmatprep.subr.bf16.mxu0 0
          %1450 = vmatpush1.bf16.msra.mxu0 0
          %1451 = vmatprep.subr.bf16.mxu0 0
          %1452 = vmatpush1.bf16.msra.mxu0 0
          %1453 = vmatprep.subr.bf16.mxu0 0
          %1454 = vmatpush1.bf16.msra.mxu0 0
          %1455 = vmatprep.subr.bf16.mxu0 0
          %1456 = vmatpush1.bf16.msra.mxu0 0
          %1457 = vmatprep.mubr.bf16.mxu0 0
          %1458 = vmatmul.mubr.bf16.gmra.mrb[0].mxu0 %v1083
          %v1459 = vpop.f32.mrb[0].mxu0
          %v1460 = vadd.f32 0.0, %v1459
          %v1461 = vpop.f32.mrb[0].mxu0
          %v1462 = vpop.f32.mrb[0].mxu0
          %v1463 = vadd.f32 0.0, %v1462
          %v1464 = vpop.f32.mrb[0].mxu0
          %1465 = vdwg.mxu0
          %s1466 = scalar_lea.vmem [#allocation2], 112
          %1467 = vst [vmem:[%s1466] sm:$0xff] %v1460
          %1468 = vst [vmem:[%s1466 + $0x8] sm:$0xff] %v1463
          %v1469 = vld [vmem:[%s670] sm:$0xff]
          %v1470 = vld [vmem:[%s670 + $0x8] sm:$0xff]
          %v1471 = vld [vmem:[%s670 + $0x10] sm:$0xff]
          %v1472 = vld [vmem:[%s670 + $0x18] sm:$0xff]
          %v1473 = vld [vmem:[%s9] sm:$0xf]
          %v1474 = vld [vmem:[%s9 + $0x4] sm:$0xf]
          %v1475 = vld [vmem:[%s9 + $0x8] sm:$0xf]
          %v1476 = vld [vmem:[%s9 + $0xc] sm:$0xf]
          %v1477 = vld [vmem:[%s9 + $0x10] sm:$0xf]
          %v1478 = vld [vmem:[%s9 + $0x14] sm:$0xf]
          %v1479 = vld [vmem:[%s9 + $0x18] sm:$0xf]
          %v1480 = vld [vmem:[%s9 + $0x1c] sm:$0xf]
          %v1481 = vld [vmem:[%s9 + $0x20] sm:$0xf]
          %v1482 = vld [vmem:[%s9 + $0x24] sm:$0xf]
          %v1483 = vld [vmem:[%s9 + $0x28] sm:$0xf]
          %v1484 = vld [vmem:[%s9 + $0x2c] sm:$0xf]
          %v1485 = vld [vmem:[%s9 + $0x30] sm:$0xf]
          %v1486 = vld [vmem:[%s9 + $0x34] sm:$0xf]
          %v1487 = vld [vmem:[%s9 + $0x38] sm:$0xf]
          %v1488 = vld [vmem:[%s9 + $0x3c] sm:$0xf]
          %v1489 = vld [vmem:[%s9 + $0x40] sm:$0xf]
          %v1490 = vld [vmem:[%s9 + $0x44] sm:$0xf]
          %v1491 = vld [vmem:[%s9 + $0x48] sm:$0xf]
          %v1492 = vld [vmem:[%s9 + $0x4c] sm:$0xf]
          %v1493 = vld [vmem:[%s9 + $0x50] sm:$0xf]
          %v1494 = vld [vmem:[%s9 + $0x54] sm:$0xf]
          %v1495 = vld [vmem:[%s9 + $0x58] sm:$0xf]
          %v1496 = vld [vmem:[%s9 + $0x5c] sm:$0xf]
          %v1497 = vld [vmem:[%s9 + $0x60] sm:$0xf]
          %v1498 = vld [vmem:[%s9 + $0x64] sm:$0xf]
          %v1499 = vld [vmem:[%s9 + $0x68] sm:$0xf]
          %v1500 = vld [vmem:[%s9 + $0x6c] sm:$0xf]
          %v1501 = vld [vmem:[%s9 + $0x70] sm:$0xf]
          %v1502 = vld [vmem:[%s9 + $0x74] sm:$0xf]
          %v1503 = vld [vmem:[%s9 + $0x78] sm:$0xf]
          %v1504 = vld [vmem:[%s9 + $0x7c] sm:$0xf]
          %v1505 = vld [vmem:[%s9 + $0x80] sm:$0xf]
          %v1506 = vld [vmem:[%s9 + $0x84] sm:$0xf]
          %v1507 = vld [vmem:[%s9 + $0x88] sm:$0xf]
          %v1508 = vld [vmem:[%s9 + $0x8c] sm:$0xf]
          %v1509 = vld [vmem:[%s9 + $0x90] sm:$0xf]
          %v1510 = vld [vmem:[%s9 + $0x94] sm:$0xf]
          %v1511 = vld [vmem:[%s9 + $0x98] sm:$0xf]
          %v1512 = vld [vmem:[%s9 + $0x9c] sm:$0xf]
          %v1513 = vld [vmem:[%s9 + $0xa0] sm:$0xf]
          %v1514 = vld [vmem:[%s9 + $0xa4] sm:$0xf]
          %v1515 = vld [vmem:[%s9 + $0xa8] sm:$0xf]
          %v1516 = vld [vmem:[%s9 + $0xac] sm:$0xf]
          %v1517 = vld [vmem:[%s9 + $0xb0] sm:$0xf]
          %v1518 = vld [vmem:[%s9 + $0xb4] sm:$0xf]
          %v1519 = vld [vmem:[%s9 + $0xb8] sm:$0xf]
          %v1520 = vld [vmem:[%s9 + $0xbc] sm:$0xf]
          %v1521 = vld [vmem:[%s9 + $0xc0] sm:$0xf]
          %v1522 = vld [vmem:[%s9 + $0xc4] sm:$0xf]
          %v1523 = vld [vmem:[%s9 + $0xc8] sm:$0xf]
          %v1524 = vld [vmem:[%s9 + $0xcc] sm:$0xf]
          %v1525 = vld [vmem:[%s9 + $0xd0] sm:$0xf]
          %v1526 = vld [vmem:[%s9 + $0xd4] sm:$0xf]
          %v1527 = vld [vmem:[%s9 + $0xd8] sm:$0xf]
          %v1528 = vld [vmem:[%s9 + $0xdc] sm:$0xf]
          %v1529 = vld [vmem:[%s9 + $0xe0] sm:$0xf]
          %v1530 = vld [vmem:[%s9 + $0xe4] sm:$0xf]
          %v1531 = vld [vmem:[%s9 + $0xe8] sm:$0xf]
          %v1532 = vld [vmem:[%s9 + $0xec] sm:$0xf]
          %v1533 = vld [vmem:[%s9 + $0xf0] sm:$0xf]
          %v1534 = vld [vmem:[%s9 + $0xf4] sm:$0xf]
          %v1535 = vld [vmem:[%s9 + $0xf8] sm:$0xf]
          %v1536 = vld [vmem:[%s9 + $0xfc] sm:$0xf]
          %v1541 = vunpack.c.l.b16 %v1469
          %v1542 = vunpack.c.h.b16 %v1469
          %v1543 = vunpack.c.l.b16 %v1470
          %v1544 = vunpack.c.h.b16 %v1470
          %v1545 = vunpack.c.l.b16 %v1471
          %v1546 = vunpack.c.h.b16 %v1471
          %v1547 = vunpack.c.l.b16 %v1472
          %v1548 = vunpack.c.h.b16 %v1472
          %v1549 = vpack.c.b16 %v1545, %v1541
          %v1550 = vpack.c.b16 %v1546, %v1542
          %v1551 = vpack.c.b16 %v1547, %v1543
          %v1552 = vpack.c.b16 %v1548, %v1544
          %v1621 = vunpack.c.l.b16 %v1473
          %v1622 = vunpack.c.l.b16 %v1474
          %v1623 = vunpack.c.l.b16 %v1475
          %v1624 = vunpack.c.l.b16 %v1476
          %v1625 = vunpack.c.l.b16 %v1477
          %v1626 = vunpack.c.l.b16 %v1478
          %v1627 = vunpack.c.l.b16 %v1479
          %v1628 = vunpack.c.l.b16 %v1480
          %v1629 = vunpack.c.l.b16 %v1481
          %v1630 = vunpack.c.l.b16 %v1482
          %v1631 = vunpack.c.l.b16 %v1483
          %v1632 = vunpack.c.l.b16 %v1484
          %v1633 = vunpack.c.l.b16 %v1485
          %v1634 = vunpack.c.l.b16 %v1486
          %v1635 = vunpack.c.l.b16 %v1487
          %v1636 = vunpack.c.l.b16 %v1488
          %v1637 = vunpack.c.l.b16 %v1489
          %v1638 = vunpack.c.l.b16 %v1490
          %v1639 = vunpack.c.l.b16 %v1491
          %v1640 = vunpack.c.l.b16 %v1492
          %v1641 = vunpack.c.l.b16 %v1493
          %v1642 = vunpack.c.l.b16 %v1494
          %v1643 = vunpack.c.l.b16 %v1495
          %v1644 = vunpack.c.l.b16 %v1496
          %v1645 = vunpack.c.l.b16 %v1497
          %v1646 = vunpack.c.l.b16 %v1498
          %v1647 = vunpack.c.l.b16 %v1499
          %v1648 = vunpack.c.l.b16 %v1500
          %v1649 = vunpack.c.l.b16 %v1501
          %v1650 = vunpack.c.l.b16 %v1502
          %v1651 = vunpack.c.l.b16 %v1503
          %v1652 = vunpack.c.l.b16 %v1504
          %v1653 = vunpack.c.l.b16 %v1505
          %v1654 = vunpack.c.l.b16 %v1506
          %v1655 = vunpack.c.l.b16 %v1507
          %v1656 = vunpack.c.l.b16 %v1508
          %v1657 = vunpack.c.l.b16 %v1509
          %v1658 = vunpack.c.l.b16 %v1510
          %v1659 = vunpack.c.l.b16 %v1511
          %v1660 = vunpack.c.l.b16 %v1512
          %v1661 = vunpack.c.l.b16 %v1513
          %v1662 = vunpack.c.l.b16 %v1514
          %v1663 = vunpack.c.l.b16 %v1515
          %v1664 = vunpack.c.l.b16 %v1516
          %v1665 = vunpack.c.l.b16 %v1517
          %v1666 = vunpack.c.l.b16 %v1518
          %v1667 = vunpack.c.l.b16 %v1519
          %v1668 = vunpack.c.l.b16 %v1520
          %v1669 = vunpack.c.l.b16 %v1521
          %v1670 = vunpack.c.l.b16 %v1522
          %v1671 = vunpack.c.l.b16 %v1523
          %v1672 = vunpack.c.l.b16 %v1524
          %v1673 = vunpack.c.l.b16 %v1525
          %v1674 = vunpack.c.l.b16 %v1526
          %v1675 = vunpack.c.l.b16 %v1527
          %v1676 = vunpack.c.l.b16 %v1528
          %v1677 = vunpack.c.l.b16 %v1529
          %v1678 = vunpack.c.l.b16 %v1530
          %v1679 = vunpack.c.l.b16 %v1531
          %v1680 = vunpack.c.l.b16 %v1532
          %v1681 = vunpack.c.l.b16 %v1533
          %v1682 = vunpack.c.l.b16 %v1534
          %v1683 = vunpack.c.l.b16 %v1535
          %v1684 = vunpack.c.l.b16 %v1536
          %v1685 = vpack.c.b16 %v1622, %v1621
          %v1686 = vpack.c.b16 %v1624, %v1623
          %v1687 = vpack.c.b16 %v1626, %v1625
          %v1688 = vpack.c.b16 %v1628, %v1627
          %v1689 = vpack.c.b16 %v1630, %v1629
          %v1690 = vpack.c.b16 %v1632, %v1631
          %v1691 = vpack.c.b16 %v1634, %v1633
          %v1692 = vpack.c.b16 %v1636, %v1635
          %v1693 = vpack.c.b16 %v1638, %v1637
          %v1694 = vpack.c.b16 %v1640, %v1639
          %v1695 = vpack.c.b16 %v1642, %v1641
          %v1696 = vpack.c.b16 %v1644, %v1643
          %v1697 = vpack.c.b16 %v1646, %v1645
          %v1698 = vpack.c.b16 %v1648, %v1647
          %v1699 = vpack.c.b16 %v1650, %v1649
          %v1700 = vpack.c.b16 %v1652, %v1651
          %v1701 = vpack.c.b16 %v1654, %v1653
          %v1702 = vpack.c.b16 %v1656, %v1655
          %v1703 = vpack.c.b16 %v1658, %v1657
          %v1704 = vpack.c.b16 %v1660, %v1659
          %v1705 = vpack.c.b16 %v1662, %v1661
          %v1706 = vpack.c.b16 %v1664, %v1663
          %v1707 = vpack.c.b16 %v1666, %v1665
          %v1708 = vpack.c.b16 %v1668, %v1667
          %v1709 = vpack.c.b16 %v1670, %v1669
          %v1710 = vpack.c.b16 %v1672, %v1671
          %v1711 = vpack.c.b16 %v1674, %v1673
          %v1712 = vpack.c.b16 %v1676, %v1675
          %v1713 = vpack.c.b16 %v1678, %v1677
          %v1714 = vpack.c.b16 %v1680, %v1679
          %v1715 = vpack.c.b16 %v1682, %v1681
          %v1716 = vpack.c.b16 %v1684, %v1683
          %1749 = vmatprep.subr.bf16.mxu0 0
          %1750 = vmatpush1.bf16.msra.mxu0 %v1685
          %1751 = vmatprep.subr.bf16.mxu0 0
          %1752 = vmatpush1.bf16.msra.mxu0 %v1686
          %1753 = vmatprep.subr.bf16.mxu0 0
          %1754 = vmatpush1.bf16.msra.mxu0 %v1687
          %1755 = vmatprep.subr.bf16.mxu0 0
          %1756 = vmatpush1.bf16.msra.mxu0 %v1688
          %1757 = vmatprep.subr.bf16.mxu0 0
          %1758 = vmatpush1.bf16.msra.mxu0 %v1689
          %1759 = vmatprep.subr.bf16.mxu0 0
          %1760 = vmatpush1.bf16.msra.mxu0 %v1690
          %1761 = vmatprep.subr.bf16.mxu0 0
          %1762 = vmatpush1.bf16.msra.mxu0 %v1691
          %1763 = vmatprep.subr.bf16.mxu0 0
          %1764 = vmatpush1.bf16.msra.mxu0 %v1692
          %1765 = vmatprep.subr.bf16.mxu0 0
          %1766 = vmatpush1.bf16.msra.mxu0 %v1693
          %1767 = vmatprep.subr.bf16.mxu0 0
          %1768 = vmatpush1.bf16.msra.mxu0 %v1694
          %1769 = vmatprep.subr.bf16.mxu0 0
          %1770 = vmatpush1.bf16.msra.mxu0 %v1695
          %1771 = vmatprep.subr.bf16.mxu0 0
          %1772 = vmatpush1.bf16.msra.mxu0 %v1696
          %1773 = vmatprep.subr.bf16.mxu0 0
          %1774 = vmatpush1.bf16.msra.mxu0 %v1697
          %1775 = vmatprep.subr.bf16.mxu0 0
          %1776 = vmatpush1.bf16.msra.mxu0 %v1698
          %1777 = vmatprep.subr.bf16.mxu0 0
          %1778 = vmatpush1.bf16.msra.mxu0 %v1699
          %1779 = vmatprep.subr.bf16.mxu0 0
          %1780 = vmatpush1.bf16.msra.mxu0 %v1700
          %1781 = vmatprep.mubr.bf16.mxu0 %v1550
          %1782 = vmatmul.mubr.bf16.gmra.mrb[0].mxu0 %v1549
          %v1783 = vpop.f32.mrb[0].mxu0
          %v1784 = vadd.f32 0.0, %v1783
          %v1785 = vpop.f32.mrb[0].mxu0
          %v1786 = vpop.f32.mrb[0].mxu0
          %v1787 = vadd.f32 0.0, %v1786
          %v1788 = vpop.f32.mrb[0].mxu0
          %1789 = vdwg.mxu0
          %1790 = vmatprep.subr.bf16.mxu0 0
          %1791 = vmatpush1.bf16.msra.mxu0 %v1701
          %1792 = vmatprep.subr.bf16.mxu0 0
          %1793 = vmatpush1.bf16.msra.mxu0 %v1702
          %1794 = vmatprep.subr.bf16.mxu0 0
          %1795 = vmatpush1.bf16.msra.mxu0 %v1703
          %1796 = vmatprep.subr.bf16.mxu0 0
          %1797 = vmatpush1.bf16.msra.mxu0 %v1704
          %1798 = vmatprep.subr.bf16.mxu0 0
          %1799 = vmatpush1.bf16.msra.mxu0 %v1705
          %1800 = vmatprep.subr.bf16.mxu0 0
          %1801 = vmatpush1.bf16.msra.mxu0 %v1706
          %1802 = vmatprep.subr.bf16.mxu0 0
          %1803 = vmatpush1.bf16.msra.mxu0 %v1707
          %1804 = vmatprep.subr.bf16.mxu0 0
          %1805 = vmatpush1.bf16.msra.mxu0 %v1708
          %1806 = vmatprep.subr.bf16.mxu0 0
          %1807 = vmatpush1.bf16.msra.mxu0 %v1709
          %1808 = vmatprep.subr.bf16.mxu0 0
          %1809 = vmatpush1.bf16.msra.mxu0 %v1710
          %1810 = vmatprep.subr.bf16.mxu0 0
          %1811 = vmatpush1.bf16.msra.mxu0 %v1711
          %1812 = vmatprep.subr.bf16.mxu0 0
          %1813 = vmatpush1.bf16.msra.mxu0 %v1712
          %1814 = vmatprep.subr.bf16.mxu0 0
          %1815 = vmatpush1.bf16.msra.mxu0 %v1713
          %1816 = vmatprep.subr.bf16.mxu0 0
          %1817 = vmatpush1.bf16.msra.mxu0 %v1714
          %1818 = vmatprep.subr.bf16.mxu0 0
          %1819 = vmatpush1.bf16.msra.mxu0 %v1715
          %1820 = vmatprep.subr.bf16.mxu0 0
          %1821 = vmatpush1.bf16.msra.mxu0 %v1716
          %1822 = vmatprep.mubr.bf16.mxu0 %v1552
          %1823 = vmatmul.mubr.bf16.gmra.mrb[0].mxu0 %v1551
          %v1824 = vpop.f32.mrb[0].mxu0
          %v1825 = vadd.f32 %v1784, %v1824
          %v1826 = vpop.f32.mrb[0].mxu0
          %v1827 = vpop.f32.mrb[0].mxu0
          %v1828 = vadd.f32 %v1787, %v1827
          %v1829 = vpop.f32.mrb[0].mxu0
          %1830 = vdwg.mxu0
          %v1831 = vld [vmem:[%s10] sm:$0x1]
          %v1833 = vlaneseq
          %v1834 = vshrl.u32 %v1833, 7
          %v1835 = vsub.s32 0, %v1834
          %v1836 = vrot.slane %v1831, %v1835
          %v1838 = vmul.f32 %v1825, %v1836
          %v1839 = vmul.f32 %v1828, %v1836
          %v1840 = vld [vmem:[%s11] sm:$0x1]
          %v1842 = vlaneseq
          %v1843 = vshrl.u32 %v1842, 7
          %v1844 = vsub.s32 0, %v1843
          %v1845 = vrot.slane %v1840, %v1844
          %v1847 = vadd.f32 %v1838, %v1845
          %v1848 = vadd.f32 %v1839, %v1845
          %v1849 = vmax.f32 %v1847, 0.0
          %v1850 = vmax.f32 %v1848, 0.0
          %v1851 = vpack.c.bf16 %v1850, %v1849
          %v1852 = vld [vmem:[%s14] sm:$0xf]
          %v1853 = vld [vmem:[%s14 + $0x4] sm:$0xf]
          %v1854 = vld [vmem:[%s14 + $0x8] sm:$0xf]
          %v1855 = vld [vmem:[%s14 + $0xc] sm:$0xf]
          %v1856 = vld [vmem:[%s14 + $0x10] sm:$0xf]
          %v1857 = vld [vmem:[%s14 + $0x14] sm:$0xf]
          %v1858 = vld [vmem:[%s14 + $0x18] sm:$0xf]
          %v1859 = vld [vmem:[%s14 + $0x1c] sm:$0xf]
          %v1868 = vunpack.c.l.b16 %v1852
          %v1869 = vunpack.c.l.b16 %v1853
          %v1870 = vunpack.c.l.b16 %v1854
          %v1871 = vunpack.c.l.b16 %v1855
          %v1872 = vunpack.c.l.b16 %v1856
          %v1873 = vunpack.c.l.b16 %v1857
          %v1874 = vunpack.c.l.b16 %v1858
          %v1875 = vunpack.c.l.b16 %v1859
          %v1876 = vpack.c.b16 %v1869, %v1868
          %v1877 = vpack.c.b16 %v1871, %v1870
          %v1878 = vpack.c.b16 %v1873, %v1872
          %v1879 = vpack.c.b16 %v1875, %v1874
          %v1885 = vsel %vm992, %v1851, 0
          %1887 = vmatprep.subr.bf16.mxu0 0
          %1888 = vmatpush1.bf16.msra.mxu0 %v1876
          %1889 = vmatprep.subr.bf16.mxu0 0
          %1890 = vmatpush1.bf16.msra.mxu0 %v1877
          %1891 = vmatprep.subr.bf16.mxu0 0
          %1892 = vmatpush1.bf16.msra.mxu0 %v1878
          %1893 = vmatprep.subr.bf16.mxu0 0
          %1894 = vmatpush1.bf16.msra.mxu0 %v1879
          %1895 = vmatprep.subr.bf16.mxu0 0
          %1896 = vmatpush1.bf16.msra.mxu0 0
          %1897 = vmatprep.subr.bf16.mxu0 0
          %1898 = vmatpush1.bf16.msra.mxu0 0
          %1899 = vmatprep.subr.bf16.mxu0 0
          %1900 = vmatpush1.bf16.msra.mxu0 0
          %1901 = vmatprep.subr.bf16.mxu0 0
          %1902 = vmatpush1.bf16.msra.mxu0 0
          %1903 = vmatprep.subr.bf16.mxu0 0
          %1904 = vmatpush1.bf16.msra.mxu0 0
          %1905 = vmatprep.subr.bf16.mxu0 0
          %1906 = vmatpush1.bf16.msra.mxu0 0
          %1907 = vmatprep.subr.bf16.mxu0 0
          %1908 = vmatpush1.bf16.msra.mxu0 0
          %1909 = vmatprep.subr.bf16.mxu0 0
          %1910 = vmatpush1.bf16.msra.mxu0 0
          %1911 = vmatprep.subr.bf16.mxu0 0
          %1912 = vmatpush1.bf16.msra.mxu0 0
          %1913 = vmatprep.subr.bf16.mxu0 0
          %1914 = vmatpush1.bf16.msra.mxu0 0
          %1915 = vmatprep.subr.bf16.mxu0 0
          %1916 = vmatpush1.bf16.msra.mxu0 0
          %1917 = vmatprep.subr.bf16.mxu0 0
          %1918 = vmatpush1.bf16.msra.mxu0 0
          %1919 = vmatprep.mubr.bf16.mxu0 0
          %1920 = vmatmul.mubr.bf16.gmra.mrb[0].mxu0 %v1885
          %v1921 = vpop.f32.mrb[0].mxu0
          %v1922 = vadd.f32 0.0, %v1921
          %v1923 = vpop.f32.mrb[0].mxu0
          %v1924 = vpop.f32.mrb[0].mxu0
          %v1925 = vadd.f32 0.0, %v1924
          %v1926 = vpop.f32.mrb[0].mxu0
          %1927 = vdwg.mxu0
          %v1928 = vpack.c.bf16 %v1925, %v1922
          %v1929 = vld [vmem:[%s18] sm:$0xf]
          %v1930 = vld [vmem:[%s18 + $0x4] sm:$0xf]
          %v1933 = vunpack.c.l.b16 %v1929
          %v1934 = vunpack.c.l.b16 %v1930
          %v1935 = vpack.c.b16 %v1934, %v1933
          %vm1936 = vcmask 31744
          %v1938 = vsel %vm1936, %v1935, 0
          %vm1940 = vcmask 1041408
          %v1942 = vsel %vm1940, %v1928, 0
          %1944 = vmatprep.subr.bf16.mxu0 0
          %1945 = vmatpush1.bf16.msra.mxu0 %v1942
          %1946 = vmatprep.subr.bf16.mxu0 0
          %1947 = vmatpush1.bf16.msra.mxu0 0
          %1948 = vmatprep.subr.bf16.mxu0 0
          %1949 = vmatpush1.bf16.msra.mxu0 0
          %1950 = vmatprep.subr.bf16.mxu0 0
          %1951 = vmatpush1.bf16.msra.mxu0 0
          %1952 = vmatprep.subr.bf16.mxu0 0
          %1953 = vmatpush1.bf16.msra.mxu0 0
          %1954 = vmatprep.subr.bf16.mxu0 0
          %1955 = vmatpush1.bf16.msra.mxu0 0
          %1956 = vmatprep.subr.bf16.mxu0 0
          %1957 = vmatpush1.bf16.msra.mxu0 0
          %1958 = vmatprep.subr.bf16.mxu0 0
          %1959 = vmatpush1.bf16.msra.mxu0 0
          %1960 = vmatprep.subr.bf16.mxu0 0
          %1961 = vmatpush1.bf16.msra.mxu0 0
          %1962 = vmatprep.subr.bf16.mxu0 0
          %1963 = vmatpush1.bf16.msra.mxu0 0
          %1964 = vmatprep.subr.bf16.mxu0 0
          %1965 = vmatpush1.bf16.msra.mxu0 0
          %1966 = vmatprep.subr.bf16.mxu0 0
          %1967 = vmatpush1.bf16.msra.mxu0 0
          %1968 = vmatprep.subr.bf16.mxu0 0
          %1969 = vmatpush1.bf16.msra.mxu0 0
          %1970 = vmatprep.subr.bf16.mxu0 0
          %1971 = vmatpush1.bf16.msra.mxu0 0
          %1972 = vmatprep.subr.bf16.mxu0 0
          %1973 = vmatpush1.bf16.msra.mxu0 0
          %1974 = vmatprep.subr.bf16.mxu0 0
          %1975 = vmatpush1.bf16.msra.mxu0 0
          %1976 = vmatprep.mubr.bf16.mxu0 0
          %1977 = vmatmul.mubr.bf16.gmra.mrb[0].mxu0 %v1938
          %v1978 = vpop.f32.mrb[0].mxu0
          %v1979 = vadd.f32 0.0, %v1978
          %v1980 = vpop.f32.mrb[0].mxu0
          %v1981 = vpop.f32.mrb[0].mxu0
          %v1982 = vadd.f32 0.0, %v1981
          %v1983 = vpop.f32.mrb[0].mxu0
          %1984 = vdwg.mxu0
          %1985 = vst [vmem:[#allocation3] sm:$0xff] %v1979
          %1986 = vst [vmem:[#allocation3 + $0x8] sm:$0xff] %v1982
          %v1988 = vrot.slane %v1928, 2
          %v1990 = vsel %vm1940, %v1988, 0
          %1992 = vmatprep.subr.bf16.mxu0 0
          %1993 = vmatpush1.bf16.msra.mxu0 %v1990
          %1994 = vmatprep.subr.bf16.mxu0 0
          %1995 = vmatpush1.bf16.msra.mxu0 0
          %1996 = vmatprep.subr.bf16.mxu0 0
          %1997 = vmatpush1.bf16.msra.mxu0 0
          %1998 = vmatprep.subr.bf16.mxu0 0
          %1999 = vmatpush1.bf16.msra.mxu0 0
          %2000 = vmatprep.subr.bf16.mxu0 0
          %2001 = vmatpush1.bf16.msra.mxu0 0
          %2002 = vmatprep.subr.bf16.mxu0 0
          %2003 = vmatpush1.bf16.msra.mxu0 0
          %2004 = vmatprep.subr.bf16.mxu0 0
          %2005 = vmatpush1.bf16.msra.mxu0 0
          %2006 = vmatprep.subr.bf16.mxu0 0
          %2007 = vmatpush1.bf16.msra.mxu0 0
          %2008 = vmatprep.subr.bf16.mxu0 0
          %2009 = vmatpush1.bf16.msra.mxu0 0
          %2010 = vmatprep.subr.bf16.mxu0 0
          %2011 = vmatpush1.bf16.msra.mxu0 0
          %2012 = vmatprep.subr.bf16.mxu0 0
          %2013 = vmatpush1.bf16.msra.mxu0 0
          %2014 = vmatprep.subr.bf16.mxu0 0
          %2015 = vmatpush1.bf16.msra.mxu0 0
          %2016 = vmatprep.subr.bf16.mxu0 0
          %2017 = vmatpush1.bf16.msra.mxu0 0
          %2018 = vmatprep.subr.bf16.mxu0 0
          %2019 = vmatpush1.bf16.msra.mxu0 0
          %2020 = vmatprep.subr.bf16.mxu0 0
          %2021 = vmatpush1.bf16.msra.mxu0 0
          %2022 = vmatprep.subr.bf16.mxu0 0
          %2023 = vmatpush1.bf16.msra.mxu0 0
          %2024 = vmatprep.mubr.bf16.mxu0 0
          %2025 = vmatmul.mubr.bf16.gmra.mrb[0].mxu0 %v1938
          %v2026 = vpop.f32.mrb[0].mxu0
          %v2027 = vadd.f32 0.0, %v2026
          %v2028 = vpop.f32.mrb[0].mxu0
          %v2029 = vpop.f32.mrb[0].mxu0
          %v2030 = vadd.f32 0.0, %v2029
          %v2031 = vpop.f32.mrb[0].mxu0
          %2032 = vdwg.mxu0
          %s2033 = scalar_lea.vmem [#allocation3], 16
          %2034 = vst [vmem:[%s2033] sm:$0xff] %v2027
          %2035 = vst [vmem:[%s2033 + $0x8] sm:$0xff] %v2030
          %v2036 = vrot.slane %v1928, 4
          %v2038 = vsel %vm1940, %v2036, 0
          %2040 = vmatprep.subr.bf16.mxu0 0
          %2041 = vmatpush1.bf16.msra.mxu0 %v2038
          %2042 = vmatprep.subr.bf16.mxu0 0
          %2043 = vmatpush1.bf16.msra.mxu0 0
          %2044 = vmatprep.subr.bf16.mxu0 0
          %2045 = vmatpush1.bf16.msra.mxu0 0
          %2046 = vmatprep.subr.bf16.mxu0 0
          %2047 = vmatpush1.bf16.msra.mxu0 0
          %2048 = vmatprep.subr.bf16.mxu0 0
          %2049 = vmatpush1.bf16.msra.mxu0 0
          %2050 = vmatprep.subr.bf16.mxu0 0
          %2051 = vmatpush1.bf16.msra.mxu0 0
          %2052 = vmatprep.subr.bf16.mxu0 0
          %2053 = vmatpush1.bf16.msra.mxu0 0
          %2054 = vmatprep.subr.bf16.mxu0 0
          %2055 = vmatpush1.bf16.msra.mxu0 0
          %2056 = vmatprep.subr.bf16.mxu0 0
          %2057 = vmatpush1.bf16.msra.mxu0 0
          %2058 = vmatprep.subr.bf16.mxu0 0
          %2059 = vmatpush1.bf16.msra.mxu0 0
          %2060 = vmatprep.subr.bf16.mxu0 0
          %2061 = vmatpush1.bf16.msra.mxu0 0
          %2062 = vmatprep.subr.bf16.mxu0 0
          %2063 = vmatpush1.bf16.msra.mxu0 0
          %2064 = vmatprep.subr.bf16.mxu0 0
          %2065 = vmatpush1.bf16.msra.mxu0 0
          %2066 = vmatprep.subr.bf16.mxu0 0
          %2067 = vmatpush1.bf16.msra.mxu0 0
          %2068 = vmatprep.subr.bf16.mxu0 0
          %2069 = vmatpush1.bf16.msra.mxu0 0
          %2070 = vmatprep.subr.bf16.mxu0 0
          %2071 = vmatpush1.bf16.msra.mxu0 0
          %2072 = vmatprep.mubr.bf16.mxu0 0
          %2073 = vmatmul.mubr.bf16.gmra.mrb[0].mxu0 %v1938
          %v2074 = vpop.f32.mrb[0].mxu0
          %v2075 = vadd.f32 0.0, %v2074
          %v2076 = vpop.f32.mrb[0].mxu0
          %v2077 = vpop.f32.mrb[0].mxu0
          %v2078 = vadd.f32 0.0, %v2077
          %v2079 = vpop.f32.mrb[0].mxu0
          %2080 = vdwg.mxu0
          %s2081 = scalar_lea.vmem [#allocation3], 32
          %2082 = vst [vmem:[%s2081] sm:$0xff] %v2075
          %2083 = vst [vmem:[%s2081 + $0x8] sm:$0xff] %v2078
          %v2084 = vrot.slane %v1928, 6
          %v2086 = vsel %vm1940, %v2084, 0
          %2088 = vmatprep.subr.bf16.mxu0 0
          %2089 = vmatpush1.bf16.msra.mxu0 %v2086
          %2090 = vmatprep.subr.bf16.mxu0 0
          %2091 = vmatpush1.bf16.msra.mxu0 0
          %2092 = vmatprep.subr.bf16.mxu0 0
          %2093 = vmatpush1.bf16.msra.mxu0 0
          %2094 = vmatprep.subr.bf16.mxu0 0
          %2095 = vmatpush1.bf16.msra.mxu0 0
          %2096 = vmatprep.subr.bf16.mxu0 0
          %2097 = vmatpush1.bf16.msra.mxu0 0
          %2098 = vmatprep.subr.bf16.mxu0 0
          %2099 = vmatpush1.bf16.msra.mxu0 0
          %2100 = vmatprep.subr.bf16.mxu0 0
          %2101 = vmatpush1.bf16.msra.mxu0 0
          %2102 = vmatprep.subr.bf16.mxu0 0
          %2103 = vmatpush1.bf16.msra.mxu0 0
          %2104 = vmatprep.subr.bf16.mxu0 0
          %2105 = vmatpush1.bf16.msra.mxu0 0
          %2106 = vmatprep.subr.bf16.mxu0 0
          %2107 = vmatpush1.bf16.msra.mxu0 0
          %2108 = vmatprep.subr.bf16.mxu0 0
          %2109 = vmatpush1.bf16.msra.mxu0 0
          %2110 = vmatprep.subr.bf16.mxu0 0
          %2111 = vmatpush1.bf16.msra.mxu0 0
          %2112 = vmatprep.subr.bf16.mxu0 0
          %2113 = vmatpush1.bf16.msra.mxu0 0
          %2114 = vmatprep.subr.bf16.mxu0 0
          %2115 = vmatpush1.bf16.msra.mxu0 0
          %2116 = vmatprep.subr.bf16.mxu0 0
          %2117 = vmatpush1.bf16.msra.mxu0 0
          %2118 = vmatprep.subr.bf16.mxu0 0
          %2119 = vmatpush1.bf16.msra.mxu0 0
          %2120 = vmatprep.mubr.bf16.mxu0 0
          %2121 = vmatmul.mubr.bf16.gmra.mrb[0].mxu0 %v1938
          %v2122 = vpop.f32.mrb[0].mxu0
          %v2123 = vadd.f32 0.0, %v2122
          %v2124 = vpop.f32.mrb[0].mxu0
          %v2125 = vpop.f32.mrb[0].mxu0
          %v2126 = vadd.f32 0.0, %v2125
          %v2127 = vpop.f32.mrb[0].mxu0
          %2128 = vdwg.mxu0
          %s2129 = scalar_lea.vmem [#allocation3], 48
          %2130 = vst [vmem:[%s2129] sm:$0xff] %v2123
          %2131 = vst [vmem:[%s2129 + $0x8] sm:$0xff] %v2126
        $region100: #{_lambda_.1} parent=95 // pred_fallthru
          _
        %s2132 = smul.u32 %s38, 16
        %s2133 = scvt.s32.f32 %s2132
        %s2134 = smul.f32 %s2133, 0.46666667
        %s2135 = sfloor.f32 %s2134
        %s2136 = smin.f32 %s2135, 6.0
        %s2137 = scvt.f32.s32.to.zero.pseudo %s2136
        %s2138 = scvt.s32.f32 %s2137
        %s2139 = ssub.f32 %s2134, %s2138
        %s2140 = smul.u32 %s2137, 16
        %s2141 = scalar_lea.vmem [#allocation2], %s2140
        %v2142 = vld [vmem:[%s2141] sm:$0xff]
        %v2143 = vld [vmem:[%s2141 + $0x8] sm:$0xff]
        %s2144 = ssub.f32 1.0, %s2139
        %v2145 = vstv %s2144
        %v2146 = vmul.f32 %v2142, %v2145
        %v2147 = vmul.f32 %v2143, %v2145
        %s2148 = sadd.s32 %s2137, 1
        %s2149 = smul.u32 %s2148, 16
        %s2150 = scalar_lea.vmem [#allocation2], %s2149
        %v2151 = vld [vmem:[%s2150] sm:$0xff]
        %v2152 = vld [vmem:[%s2150 + $0x8] sm:$0xff]
        %v2153 = vstv %s2139
        %v2154 = vmul.f32 %v2151, %v2153
        %v2155 = vmul.f32 %v2152, %v2153
        %v2156 = vadd.f32 %v2146, %v2154
        %v2157 = vadd.f32 %v2147, %v2155
        %s2158 = smul.f32 %s2133, 0.2
        %s2159 = sfloor.f32 %s2158
        %s2160 = smin.f32 %s2159, 2.0
        %s2161 = scvt.f32.s32.to.zero.pseudo %s2160
        %s2162 = scvt.s32.f32 %s2161
        %s2163 = ssub.f32 %s2158, %s2162
        %s2164 = smul.u32 %s2161, 16
        %s2165 = scalar_lea.vmem [#allocation3], %s2164
        %v2166 = vld [vmem:[%s2165] sm:$0xff]
        %v2167 = vld [vmem:[%s2165 + $0x8] sm:$0xff]
        %s2168 = ssub.f32 1.0, %s2163
        %v2169 = vstv %s2168
        %v2170 = vmul.f32 %v2166, %v2169
        %v2171 = vmul.f32 %v2167, %v2169
        %s2172 = sadd.s32 %s2161, 1
        %s2173 = smul.u32 %s2172, 16
        %s2174 = scalar_lea.vmem [#allocation3], %s2173
        %v2175 = vld [vmem:[%s2174] sm:$0xff]
        %v2176 = vld [vmem:[%s2174 + $0x8] sm:$0xff]
        %v2177 = vstv %s2163
        %v2178 = vmul.f32 %v2175, %v2177
        %v2179 = vmul.f32 %v2176, %v2177
        %v2180 = vadd.f32 %v2170, %v2178
        %v2181 = vadd.f32 %v2171, %v2179
        %v2182 = vadd.f32 %v2156, %v2180
        %v2183 = vadd.f32 %v2157, %v2181
        %2184 = vst [vmem:[#allocation4] sm:$0xff] %v2182
        %2185 = vst [vmem:[#allocation4 + $0x8] sm:$0xff] %v2183
        %s2186 = sadd.s32 %s2132, 1
        %s2187 = scvt.s32.f32 %s2186
        %s2188 = smul.f32 %s2187, 0.46666667
        %s2189 = sfloor.f32 %s2188
        %s2190 = smin.f32 %s2189, 6.0
        %s2191 = scvt.f32.s32.to.zero.pseudo %s2190
        %s2192 = scvt.s32.f32 %s2191
        %s2193 = ssub.f32 %s2188, %s2192
        %s2194 = smul.u32 %s2191, 16
        %s2195 = scalar_lea.vmem [#allocation2], %s2194
        %v2196 = vld [vmem:[%s2195] sm:$0xff]
        %v2197 = vld [vmem:[%s2195 + $0x8] sm:$0xff]
        %s2198 = ssub.f32 1.0, %s2193
        %v2199 = vstv %s2198
        %v2200 = vmul.f32 %v2196, %v2199
        %v2201 = vmul.f32 %v2197, %v2199
        %s2202 = sadd.s32 %s2191, 1
        %s2203 = smul.u32 %s2202, 16
        %s2204 = scalar_lea.vmem [#allocation2], %s2203
        %v2205 = vld [vmem:[%s2204] sm:$0xff]
        %v2206 = vld [vmem:[%s2204 + $0x8] sm:$0xff]
        %v2207 = vstv %s2193
        %v2208 = vmul.f32 %v2205, %v2207
        %v2209 = vmul.f32 %v2206, %v2207
        %v2210 = vadd.f32 %v2200, %v2208
        %v2211 = vadd.f32 %v2201, %v2209
        %s2212 = smul.f32 %s2187, 0.2
        %s2213 = sfloor.f32 %s2212
        %s2214 = smin.f32 %s2213, 2.0
        %s2215 = scvt.f32.s32.to.zero.pseudo %s2214
        %s2216 = scvt.s32.f32 %s2215
        %s2217 = ssub.f32 %s2212, %s2216
        %s2218 = smul.u32 %s2215, 16
        %s2219 = scalar_lea.vmem [#allocation3], %s2218
        %v2220 = vld [vmem:[%s2219] sm:$0xff]
        %v2221 = vld [vmem:[%s2219 + $0x8] sm:$0xff]
        %s2222 = ssub.f32 1.0, %s2217
        %v2223 = vstv %s2222
        %v2224 = vmul.f32 %v2220, %v2223
        %v2225 = vmul.f32 %v2221, %v2223
        %s2226 = sadd.s32 %s2215, 1
        %s2227 = smul.u32 %s2226, 16
        %s2228 = scalar_lea.vmem [#allocation3], %s2227
        %v2229 = vld [vmem:[%s2228] sm:$0xff]
        %v2230 = vld [vmem:[%s2228 + $0x8] sm:$0xff]
        %v2231 = vstv %s2217
        %v2232 = vmul.f32 %v2229, %v2231
        %v2233 = vmul.f32 %v2230, %v2231
        %v2234 = vadd.f32 %v2224, %v2232
        %v2235 = vadd.f32 %v2225, %v2233
        %v2236 = vadd.f32 %v2210, %v2234
        %v2237 = vadd.f32 %v2211, %v2235
        %2238 = vst [vmem:[#allocation4 + $0x10] sm:$0xff] %v2236
        %2239 = vst [vmem:[#allocation4 + $0x18] sm:$0xff] %v2237
        %s2240 = sadd.s32 %s2132, 2
        %s2241 = scvt.s32.f32 %s2240
        %s2242 = smul.f32 %s2241, 0.46666667
        %s2243 = sfloor.f32 %s2242
        %s2244 = smin.f32 %s2243, 6.0
        %s2245 = scvt.f32.s32.to.zero.pseudo %s2244
        %s2246 = scvt.s32.f32 %s2245
        %s2247 = ssub.f32 %s2242, %s2246
        %s2248 = smul.u32 %s2245, 16
        %s2249 = scalar_lea.vmem [#allocation2], %s2248
        %v2250 = vld [vmem:[%s2249] sm:$0xff]
        %v2251 = vld [vmem:[%s2249 + $0x8] sm:$0xff]
        %s2252 = ssub.f32 1.0, %s2247
        %v2253 = vstv %s2252
        %v2254 = vmul.f32 %v2250, %v2253
        %v2255 = vmul.f32 %v2251, %v2253
        %s2256 = sadd.s32 %s2245, 1
        %s2257 = smul.u32 %s2256, 16
        %s2258 = scalar_lea.vmem [#allocation2], %s2257
        %v2259 = vld [vmem:[%s2258] sm:$0xff]
        %v2260 = vld [vmem:[%s2258 + $0x8] sm:$0xff]
        %v2261 = vstv %s2247
        %v2262 = vmul.f32 %v2259, %v2261
        %v2263 = vmul.f32 %v2260, %v2261
        %v2264 = vadd.f32 %v2254, %v2262
        %v2265 = vadd.f32 %v2255, %v2263
        %s2266 = smul.f32 %s2241, 0.2
        %s2267 = sfloor.f32 %s2266
        %s2268 = smin.f32 %s2267, 2.0
        %s2269 = scvt.f32.s32.to.zero.pseudo %s2268
        %s2270 = scvt.s32.f32 %s2269
        %s2271 = ssub.f32 %s2266, %s2270
        %s2272 = smul.u32 %s2269, 16
        %s2273 = scalar_lea.vmem [#allocation3], %s2272
        %v2274 = vld [vmem:[%s2273] sm:$0xff]
        %v2275 = vld [vmem:[%s2273 + $0x8] sm:$0xff]
        %s2276 = ssub.f32 1.0, %s2271
        %v2277 = vstv %s2276
        %v2278 = vmul.f32 %v2274, %v2277
        %v2279 = vmul.f32 %v2275, %v2277
        %s2280 = sadd.s32 %s2269, 1
        %s2281 = smul.u32 %s2280, 16
        %s2282 = scalar_lea.vmem [#allocation3], %s2281
        %v2283 = vld [vmem:[%s2282] sm:$0xff]
        %v2284 = vld [vmem:[%s2282 + $0x8] sm:$0xff]
        %v2285 = vstv %s2271
        %v2286 = vmul.f32 %v2283, %v2285
        %v2287 = vmul.f32 %v2284, %v2285
        %v2288 = vadd.f32 %v2278, %v2286
        %v2289 = vadd.f32 %v2279, %v2287
        %v2290 = vadd.f32 %v2264, %v2288
        %v2291 = vadd.f32 %v2265, %v2289
        %2292 = vst [vmem:[#allocation4 + $0x20] sm:$0xff] %v2290
        %2293 = vst [vmem:[#allocation4 + $0x28] sm:$0xff] %v2291
        %s2294 = sadd.s32 %s2132, 3
        %s2295 = scvt.s32.f32 %s2294
        %s2296 = smul.f32 %s2295, 0.46666667
        %s2297 = sfloor.f32 %s2296
        %s2298 = smin.f32 %s2297, 6.0
        %s2299 = scvt.f32.s32.to.zero.pseudo %s2298
        %s2300 = scvt.s32.f32 %s2299
        %s2301 = ssub.f32 %s2296, %s2300
        %s2302 = smul.u32 %s2299, 16
        %s2303 = scalar_lea.vmem [#allocation2], %s2302
        %v2304 = vld [vmem:[%s2303] sm:$0xff]
        %v2305 = vld [vmem:[%s2303 + $0x8] sm:$0xff]
        %s2306 = ssub.f32 1.0, %s2301
        %v2307 = vstv %s2306
        %v2308 = vmul.f32 %v2304, %v2307
        %v2309 = vmul.f32 %v2305, %v2307
        %s2310 = sadd.s32 %s2299, 1
        %s2311 = smul.u32 %s2310, 16
        %s2312 = scalar_lea.vmem [#allocation2], %s2311
        %v2313 = vld [vmem:[%s2312] sm:$0xff]
        %v2314 = vld [vmem:[%s2312 + $0x8] sm:$0xff]
        %v2315 = vstv %s2301
        %v2316 = vmul.f32 %v2313, %v2315
        %v2317 = vmul.f32 %v2314, %v2315
        %v2318 = vadd.f32 %v2308, %v2316
        %v2319 = vadd.f32 %v2309, %v2317
        %s2320 = smul.f32 %s2295, 0.2
        %s2321 = sfloor.f32 %s2320
        %s2322 = smin.f32 %s2321, 2.0
        %s2323 = scvt.f32.s32.to.zero.pseudo %s2322
        %s2324 = scvt.s32.f32 %s2323
        %s2325 = ssub.f32 %s2320, %s2324
        %s2326 = smul.u32 %s2323, 16
        %s2327 = scalar_lea.vmem [#allocation3], %s2326
        %v2328 = vld [vmem:[%s2327] sm:$0xff]
        %v2329 = vld [vmem:[%s2327 + $0x8] sm:$0xff]
        %s2330 = ssub.f32 1.0, %s2325
        %v2331 = vstv %s2330
        %v2332 = vmul.f32 %v2328, %v2331
        %v2333 = vmul.f32 %v2329, %v2331
        %s2334 = sadd.s32 %s2323, 1
        %s2335 = smul.u32 %s2334, 16
        %s2336 = scalar_lea.vmem [#allocation3], %s2335
        %v2337 = vld [vmem:[%s2336] sm:$0xff]
        %v2338 = vld [vmem:[%s2336 + $0x8] sm:$0xff]
        %v2339 = vstv %s2325
        %v2340 = vmul.f32 %v2337, %v2339
        %v2341 = vmul.f32 %v2338, %v2339
        %v2342 = vadd.f32 %v2332, %v2340
        %v2343 = vadd.f32 %v2333, %v2341
        %v2344 = vadd.f32 %v2318, %v2342
        %v2345 = vadd.f32 %v2319, %v2343
        %2346 = vst [vmem:[#allocation4 + $0x30] sm:$0xff] %v2344
        %2347 = vst [vmem:[#allocation4 + $0x38] sm:$0xff] %v2345
        %s2348 = sadd.s32 %s2132, 4
        %s2349 = scvt.s32.f32 %s2348
        %s2350 = smul.f32 %s2349, 0.46666667
        %s2351 = sfloor.f32 %s2350
        %s2352 = smin.f32 %s2351, 6.0
        %s2353 = scvt.f32.s32.to.zero.pseudo %s2352
        %s2354 = scvt.s32.f32 %s2353
        %s2355 = ssub.f32 %s2350, %s2354
        %s2356 = smul.u32 %s2353, 16
        %s2357 = scalar_lea.vmem [#allocation2], %s2356
        %v2358 = vld [vmem:[%s2357] sm:$0xff]
        %v2359 = vld [vmem:[%s2357 + $0x8] sm:$0xff]
        %s2360 = ssub.f32 1.0, %s2355
        %v2361 = vstv %s2360
        %v2362 = vmul.f32 %v2358, %v2361
        %v2363 = vmul.f32 %v2359, %v2361
        %s2364 = sadd.s32 %s2353, 1
        %s2365 = smul.u32 %s2364, 16
        %s2366 = scalar_lea.vmem [#allocation2], %s2365
        %v2367 = vld [vmem:[%s2366] sm:$0xff]
        %v2368 = vld [vmem:[%s2366 + $0x8] sm:$0xff]
        %v2369 = vstv %s2355
        %v2370 = vmul.f32 %v2367, %v2369
        %v2371 = vmul.f32 %v2368, %v2369
        %v2372 = vadd.f32 %v2362, %v2370
        %v2373 = vadd.f32 %v2363, %v2371
        %s2374 = smul.f32 %s2349, 0.2
        %s2375 = sfloor.f32 %s2374
        %s2376 = smin.f32 %s2375, 2.0
        %s2377 = scvt.f32.s32.to.zero.pseudo %s2376
        %s2378 = scvt.s32.f32 %s2377
        %s2379 = ssub.f32 %s2374, %s2378
        %s2380 = smul.u32 %s2377, 16
        %s2381 = scalar_lea.vmem [#allocation3], %s2380
        %v2382 = vld [vmem:[%s2381] sm:$0xff]
        %v2383 = vld [vmem:[%s2381 + $0x8] sm:$0xff]
        %s2384 = ssub.f32 1.0, %s2379
        %v2385 = vstv %s2384
        %v2386 = vmul.f32 %v2382, %v2385
        %v2387 = vmul.f32 %v2383, %v2385
        %s2388 = sadd.s32 %s2377, 1
        %s2389 = smul.u32 %s2388, 16
        %s2390 = scalar_lea.vmem [#allocation3], %s2389
        %v2391 = vld [vmem:[%s2390] sm:$0xff]
        %v2392 = vld [vmem:[%s2390 + $0x8] sm:$0xff]
        %v2393 = vstv %s2379
        %v2394 = vmul.f32 %v2391, %v2393
        %v2395 = vmul.f32 %v2392, %v2393
        %v2396 = vadd.f32 %v2386, %v2394
        %v2397 = vadd.f32 %v2387, %v2395
        %v2398 = vadd.f32 %v2372, %v2396
        %v2399 = vadd.f32 %v2373, %v2397
        %2400 = vst [vmem:[#allocation4 + $0x40] sm:$0xff] %v2398
        %2401 = vst [vmem:[#allocation4 + $0x48] sm:$0xff] %v2399
        %s2402 = sadd.s32 %s2132, 5
        %s2403 = scvt.s32.f32 %s2402
        %s2404 = smul.f32 %s2403, 0.46666667
        %s2405 = sfloor.f32 %s2404
        %s2406 = smin.f32 %s2405, 6.0
        %s2407 = scvt.f32.s32.to.zero.pseudo %s2406
        %s2408 = scvt.s32.f32 %s2407
        %s2409 = ssub.f32 %s2404, %s2408
        %s2410 = smul.u32 %s2407, 16
        %s2411 = scalar_lea.vmem [#allocation2], %s2410
        %v2412 = vld [vmem:[%s2411] sm:$0xff]
        %v2413 = vld [vmem:[%s2411 + $0x8] sm:$0xff]
        %s2414 = ssub.f32 1.0, %s2409
        %v2415 = vstv %s2414
        %v2416 = vmul.f32 %v2412, %v2415
        %v2417 = vmul.f32 %v2413, %v2415
        %s2418 = sadd.s32 %s2407, 1
        %s2419 = smul.u32 %s2418, 16
        %s2420 = scalar_lea.vmem [#allocation2], %s2419
        %v2421 = vld [vmem:[%s2420] sm:$0xff]
        %v2422 = vld [vmem:[%s2420 + $0x8] sm:$0xff]
        %v2423 = vstv %s2409
        %v2424 = vmul.f32 %v2421, %v2423
        %v2425 = vmul.f32 %v2422, %v2423
        %v2426 = vadd.f32 %v2416, %v2424
        %v2427 = vadd.f32 %v2417, %v2425
        %s2428 = smul.f32 %s2403, 0.2
        %s2429 = sfloor.f32 %s2428
        %s2430 = smin.f32 %s2429, 2.0
        %s2431 = scvt.f32.s32.to.zero.pseudo %s2430
        %s2432 = scvt.s32.f32 %s2431
        %s2433 = ssub.f32 %s2428, %s2432
        %s2434 = smul.u32 %s2431, 16
        %s2435 = scalar_lea.vmem [#allocation3], %s2434
        %v2436 = vld [vmem:[%s2435] sm:$0xff]
        %v2437 = vld [vmem:[%s2435 + $0x8] sm:$0xff]
        %s2438 = ssub.f32 1.0, %s2433
        %v2439 = vstv %s2438
        %v2440 = vmul.f32 %v2436, %v2439
        %v2441 = vmul.f32 %v2437, %v2439
        %s2442 = sadd.s32 %s2431, 1
        %s2443 = smul.u32 %s2442, 16
        %s2444 = scalar_lea.vmem [#allocation3], %s2443
        %v2445 = vld [vmem:[%s2444] sm:$0xff]
        %v2446 = vld [vmem:[%s2444 + $0x8] sm:$0xff]
        %v2447 = vstv %s2433
        %v2448 = vmul.f32 %v2445, %v2447
        %v2449 = vmul.f32 %v2446, %v2447
        %v2450 = vadd.f32 %v2440, %v2448
        %v2451 = vadd.f32 %v2441, %v2449
        %v2452 = vadd.f32 %v2426, %v2450
        %v2453 = vadd.f32 %v2427, %v2451
        %2454 = vst [vmem:[#allocation4 + $0x50] sm:$0xff] %v2452
        %2455 = vst [vmem:[#allocation4 + $0x58] sm:$0xff] %v2453
        %s2456 = sadd.s32 %s2132, 6
        %s2457 = scvt.s32.f32 %s2456
        %s2458 = smul.f32 %s2457, 0.46666667
        %s2459 = sfloor.f32 %s2458
        %s2460 = smin.f32 %s2459, 6.0
        %s2461 = scvt.f32.s32.to.zero.pseudo %s2460
        %s2462 = scvt.s32.f32 %s2461
        %s2463 = ssub.f32 %s2458, %s2462
        %s2464 = smul.u32 %s2461, 16
        %s2465 = scalar_lea.vmem [#allocation2], %s2464
        %v2466 = vld [vmem:[%s2465] sm:$0xff]
        %v2467 = vld [vmem:[%s2465 + $0x8] sm:$0xff]
        %s2468 = ssub.f32 1.0, %s2463
        %v2469 = vstv %s2468
        %v2470 = vmul.f32 %v2466, %v2469
        %v2471 = vmul.f32 %v2467, %v2469
        %s2472 = sadd.s32 %s2461, 1
        %s2473 = smul.u32 %s2472, 16
        %s2474 = scalar_lea.vmem [#allocation2], %s2473
        %v2475 = vld [vmem:[%s2474] sm:$0xff]
        %v2476 = vld [vmem:[%s2474 + $0x8] sm:$0xff]
        %v2477 = vstv %s2463
        %v2478 = vmul.f32 %v2475, %v2477
        %v2479 = vmul.f32 %v2476, %v2477
        %v2480 = vadd.f32 %v2470, %v2478
        %v2481 = vadd.f32 %v2471, %v2479
        %s2482 = smul.f32 %s2457, 0.2
        %s2483 = sfloor.f32 %s2482
        %s2484 = smin.f32 %s2483, 2.0
        %s2485 = scvt.f32.s32.to.zero.pseudo %s2484
        %s2486 = scvt.s32.f32 %s2485
        %s2487 = ssub.f32 %s2482, %s2486
        %s2488 = smul.u32 %s2485, 16
        %s2489 = scalar_lea.vmem [#allocation3], %s2488
        %v2490 = vld [vmem:[%s2489] sm:$0xff]
        %v2491 = vld [vmem:[%s2489 + $0x8] sm:$0xff]
        %s2492 = ssub.f32 1.0, %s2487
        %v2493 = vstv %s2492
        %v2494 = vmul.f32 %v2490, %v2493
        %v2495 = vmul.f32 %v2491, %v2493
        %s2496 = sadd.s32 %s2485, 1
        %s2497 = smul.u32 %s2496, 16
        %s2498 = scalar_lea.vmem [#allocation3], %s2497
        %v2499 = vld [vmem:[%s2498] sm:$0xff]
        %v2500 = vld [vmem:[%s2498 + $0x8] sm:$0xff]
        %v2501 = vstv %s2487
        %v2502 = vmul.f32 %v2499, %v2501
        %v2503 = vmul.f32 %v2500, %v2501
        %v2504 = vadd.f32 %v2494, %v2502
        %v2505 = vadd.f32 %v2495, %v2503
        %v2506 = vadd.f32 %v2480, %v2504
        %v2507 = vadd.f32 %v2481, %v2505
        %2508 = vst [vmem:[#allocation4 + $0x60] sm:$0xff] %v2506
        %2509 = vst [vmem:[#allocation4 + $0x68] sm:$0xff] %v2507
        %s2510 = sadd.s32 %s2132, 7
        %s2511 = scvt.s32.f32 %s2510
        %s2512 = smul.f32 %s2511, 0.46666667
        %s2513 = sfloor.f32 %s2512
        %s2514 = smin.f32 %s2513, 6.0
        %s2515 = scvt.f32.s32.to.zero.pseudo %s2514
        %s2516 = scvt.s32.f32 %s2515
        %s2517 = ssub.f32 %s2512, %s2516
        %s2518 = smul.u32 %s2515, 16
        %s2519 = scalar_lea.vmem [#allocation2], %s2518
        %v2520 = vld [vmem:[%s2519] sm:$0xff]
        %v2521 = vld [vmem:[%s2519 + $0x8] sm:$0xff]
        %s2522 = ssub.f32 1.0, %s2517
        %v2523 = vstv %s2522
        %v2524 = vmul.f32 %v2520, %v2523
        %v2525 = vmul.f32 %v2521, %v2523
        %s2526 = sadd.s32 %s2515, 1
        %s2527 = smul.u32 %s2526, 16
        %s2528 = scalar_lea.vmem [#allocation2], %s2527
        %v2529 = vld [vmem:[%s2528] sm:$0xff]
        %v2530 = vld [vmem:[%s2528 + $0x8] sm:$0xff]
        %v2531 = vstv %s2517
        %v2532 = vmul.f32 %v2529, %v2531
        %v2533 = vmul.f32 %v2530, %v2531
        %v2534 = vadd.f32 %v2524, %v2532
        %v2535 = vadd.f32 %v2525, %v2533
        %s2536 = smul.f32 %s2511, 0.2
        %s2537 = sfloor.f32 %s2536
        %s2538 = smin.f32 %s2537, 2.0
        %s2539 = scvt.f32.s32.to.zero.pseudo %s2538
        %s2540 = scvt.s32.f32 %s2539
        %s2541 = ssub.f32 %s2536, %s2540
        %s2542 = smul.u32 %s2539, 16
        %s2543 = scalar_lea.vmem [#allocation3], %s2542
        %v2544 = vld [vmem:[%s2543] sm:$0xff]
        %v2545 = vld [vmem:[%s2543 + $0x8] sm:$0xff]
        %s2546 = ssub.f32 1.0, %s2541
        %v2547 = vstv %s2546
        %v2548 = vmul.f32 %v2544, %v2547
        %v2549 = vmul.f32 %v2545, %v2547
        %s2550 = sadd.s32 %s2539, 1
        %s2551 = smul.u32 %s2550, 16
        %s2552 = scalar_lea.vmem [#allocation3], %s2551
        %v2553 = vld [vmem:[%s2552] sm:$0xff]
        %v2554 = vld [vmem:[%s2552 + $0x8] sm:$0xff]
        %v2555 = vstv %s2541
        %v2556 = vmul.f32 %v2553, %v2555
        %v2557 = vmul.f32 %v2554, %v2555
        %v2558 = vadd.f32 %v2548, %v2556
        %v2559 = vadd.f32 %v2549, %v2557
        %v2560 = vadd.f32 %v2534, %v2558
        %v2561 = vadd.f32 %v2535, %v2559
        %2562 = vst [vmem:[#allocation4 + $0x70] sm:$0xff] %v2560
        %2563 = vst [vmem:[#allocation4 + $0x78] sm:$0xff] %v2561
        %s2564 = sadd.s32 %s2132, 8
        %s2565 = scvt.s32.f32 %s2564
        %s2566 = smul.f32 %s2565, 0.46666667
        %s2567 = sfloor.f32 %s2566
        %s2568 = smin.f32 %s2567, 6.0
        %s2569 = scvt.f32.s32.to.zero.pseudo %s2568
        %s2570 = scvt.s32.f32 %s2569
        %s2571 = ssub.f32 %s2566, %s2570
        %s2572 = smul.u32 %s2569, 16
        %s2573 = scalar_lea.vmem [#allocation2], %s2572
        %v2574 = vld [vmem:[%s2573] sm:$0xff]
        %v2575 = vld [vmem:[%s2573 + $0x8] sm:$0xff]
        %s2576 = ssub.f32 1.0, %s2571
        %v2577 = vstv %s2576
        %v2578 = vmul.f32 %v2574, %v2577
        %v2579 = vmul.f32 %v2575, %v2577
        %s2580 = sadd.s32 %s2569, 1
        %s2581 = smul.u32 %s2580, 16
        %s2582 = scalar_lea.vmem [#allocation2], %s2581
        %v2583 = vld [vmem:[%s2582] sm:$0xff]
        %v2584 = vld [vmem:[%s2582 + $0x8] sm:$0xff]
        %v2585 = vstv %s2571
        %v2586 = vmul.f32 %v2583, %v2585
        %v2587 = vmul.f32 %v2584, %v2585
        %v2588 = vadd.f32 %v2578, %v2586
        %v2589 = vadd.f32 %v2579, %v2587
        %s2590 = smul.f32 %s2565, 0.2
        %s2591 = sfloor.f32 %s2590
        %s2592 = smin.f32 %s2591, 2.0
        %s2593 = scvt.f32.s32.to.zero.pseudo %s2592
        %s2594 = scvt.s32.f32 %s2593
        %s2595 = ssub.f32 %s2590, %s2594
        %s2596 = smul.u32 %s2593, 16
        %s2597 = scalar_lea.vmem [#allocation3], %s2596
        %v2598 = vld [vmem:[%s2597] sm:$0xff]
        %v2599 = vld [vmem:[%s2597 + $0x8] sm:$0xff]
        %s2600 = ssub.f32 1.0, %s2595
        %v2601 = vstv %s2600
        %v2602 = vmul.f32 %v2598, %v2601
        %v2603 = vmul.f32 %v2599, %v2601
        %s2604 = sadd.s32 %s2593, 1
        %s2605 = smul.u32 %s2604, 16
        %s2606 = scalar_lea.vmem [#allocation3], %s2605
        %v2607 = vld [vmem:[%s2606] sm:$0xff]
        %v2608 = vld [vmem:[%s2606 + $0x8] sm:$0xff]
        %v2609 = vstv %s2595
        %v2610 = vmul.f32 %v2607, %v2609
        %v2611 = vmul.f32 %v2608, %v2609
        %v2612 = vadd.f32 %v2602, %v2610
        %v2613 = vadd.f32 %v2603, %v2611
        %v2614 = vadd.f32 %v2588, %v2612
        %v2615 = vadd.f32 %v2589, %v2613
        %2616 = vst [vmem:[#allocation4 + $0x80] sm:$0xff] %v2614
        %2617 = vst [vmem:[#allocation4 + $0x88] sm:$0xff] %v2615
        %s2618 = sadd.s32 %s2132, 9
        %s2619 = scvt.s32.f32 %s2618
        %s2620 = smul.f32 %s2619, 0.46666667
        %s2621 = sfloor.f32 %s2620
        %s2622 = smin.f32 %s2621, 6.0
        %s2623 = scvt.f32.s32.to.zero.pseudo %s2622
        %s2624 = scvt.s32.f32 %s2623
        %s2625 = ssub.f32 %s2620, %s2624
        %s2626 = smul.u32 %s2623, 16
        %s2627 = scalar_lea.vmem [#allocation2], %s2626
        %v2628 = vld [vmem:[%s2627] sm:$0xff]
        %v2629 = vld [vmem:[%s2627 + $0x8] sm:$0xff]
        %s2630 = ssub.f32 1.0, %s2625
        %v2631 = vstv %s2630
        %v2632 = vmul.f32 %v2628, %v2631
        %v2633 = vmul.f32 %v2629, %v2631
        %s2634 = sadd.s32 %s2623, 1
        %s2635 = smul.u32 %s2634, 16
        %s2636 = scalar_lea.vmem [#allocation2], %s2635
        %v2637 = vld [vmem:[%s2636] sm:$0xff]
        %v2638 = vld [vmem:[%s2636 + $0x8] sm:$0xff]
        %v2639 = vstv %s2625
        %v2640 = vmul.f32 %v2637, %v2639
        %v2641 = vmul.f32 %v2638, %v2639
        %v2642 = vadd.f32 %v2632, %v2640
        %v2643 = vadd.f32 %v2633, %v2641
        %s2644 = smul.f32 %s2619, 0.2
        %s2645 = sfloor.f32 %s2644
        %s2646 = smin.f32 %s2645, 2.0
        %s2647 = scvt.f32.s32.to.zero.pseudo %s2646
        %s2648 = scvt.s32.f32 %s2647
        %s2649 = ssub.f32 %s2644, %s2648
        %s2650 = smul.u32 %s2647, 16
        %s2651 = scalar_lea.vmem [#allocation3], %s2650
        %v2652 = vld [vmem:[%s2651] sm:$0xff]
        %v2653 = vld [vmem:[%s2651 + $0x8] sm:$0xff]
        %s2654 = ssub.f32 1.0, %s2649
        %v2655 = vstv %s2654
        %v2656 = vmul.f32 %v2652, %v2655
        %v2657 = vmul.f32 %v2653, %v2655
        %s2658 = sadd.s32 %s2647, 1
        %s2659 = smul.u32 %s2658, 16
        %s2660 = scalar_lea.vmem [#allocation3], %s2659
        %v2661 = vld [vmem:[%s2660] sm:$0xff]
        %v2662 = vld [vmem:[%s2660 + $0x8] sm:$0xff]
        %v2663 = vstv %s2649
        %v2664 = vmul.f32 %v2661, %v2663
        %v2665 = vmul.f32 %v2662, %v2663
        %v2666 = vadd.f32 %v2656, %v2664
        %v2667 = vadd.f32 %v2657, %v2665
        %v2668 = vadd.f32 %v2642, %v2666
        %v2669 = vadd.f32 %v2643, %v2667
        %2670 = vst [vmem:[#allocation4 + $0x90] sm:$0xff] %v2668
        %2671 = vst [vmem:[#allocation4 + $0x98] sm:$0xff] %v2669
        %s2672 = sadd.s32 %s2132, 10
        %s2673 = scvt.s32.f32 %s2672
        %s2674 = smul.f32 %s2673, 0.46666667
        %s2675 = sfloor.f32 %s2674
        %s2676 = smin.f32 %s2675, 6.0
        %s2677 = scvt.f32.s32.to.zero.pseudo %s2676
        %s2678 = scvt.s32.f32 %s2677
        %s2679 = ssub.f32 %s2674, %s2678
        %s2680 = smul.u32 %s2677, 16
        %s2681 = scalar_lea.vmem [#allocation2], %s2680
        %v2682 = vld [vmem:[%s2681] sm:$0xff]
        %v2683 = vld [vmem:[%s2681 + $0x8] sm:$0xff]
        %s2684 = ssub.f32 1.0, %s2679
        %v2685 = vstv %s2684
        %v2686 = vmul.f32 %v2682, %v2685
        %v2687 = vmul.f32 %v2683, %v2685
        %s2688 = sadd.s32 %s2677, 1
        %s2689 = smul.u32 %s2688, 16
        %s2690 = scalar_lea.vmem [#allocation2], %s2689
        %v2691 = vld [vmem:[%s2690] sm:$0xff]
        %v2692 = vld [vmem:[%s2690 + $0x8] sm:$0xff]
        %v2693 = vstv %s2679
        %v2694 = vmul.f32 %v2691, %v2693
        %v2695 = vmul.f32 %v2692, %v2693
        %v2696 = vadd.f32 %v2686, %v2694
        %v2697 = vadd.f32 %v2687, %v2695
        %s2698 = smul.f32 %s2673, 0.2
        %s2699 = sfloor.f32 %s2698
        %s2700 = smin.f32 %s2699, 2.0
        %s2701 = scvt.f32.s32.to.zero.pseudo %s2700
        %s2702 = scvt.s32.f32 %s2701
        %s2703 = ssub.f32 %s2698, %s2702
        %s2704 = smul.u32 %s2701, 16
        %s2705 = scalar_lea.vmem [#allocation3], %s2704
        %v2706 = vld [vmem:[%s2705] sm:$0xff]
        %v2707 = vld [vmem:[%s2705 + $0x8] sm:$0xff]
        %s2708 = ssub.f32 1.0, %s2703
        %v2709 = vstv %s2708
        %v2710 = vmul.f32 %v2706, %v2709
        %v2711 = vmul.f32 %v2707, %v2709
        %s2712 = sadd.s32 %s2701, 1
        %s2713 = smul.u32 %s2712, 16
        %s2714 = scalar_lea.vmem [#allocation3], %s2713
        %v2715 = vld [vmem:[%s2714] sm:$0xff]
        %v2716 = vld [vmem:[%s2714 + $0x8] sm:$0xff]
        %v2717 = vstv %s2703
        %v2718 = vmul.f32 %v2715, %v2717
        %v2719 = vmul.f32 %v2716, %v2717
        %v2720 = vadd.f32 %v2710, %v2718
        %v2721 = vadd.f32 %v2711, %v2719
        %v2722 = vadd.f32 %v2696, %v2720
        %v2723 = vadd.f32 %v2697, %v2721
        %2724 = vst [vmem:[#allocation4 + $0xa0] sm:$0xff] %v2722
        %2725 = vst [vmem:[#allocation4 + $0xa8] sm:$0xff] %v2723
        %s2726 = sadd.s32 %s2132, 11
        %s2727 = scvt.s32.f32 %s2726
        %s2728 = smul.f32 %s2727, 0.46666667
        %s2729 = sfloor.f32 %s2728
        %s2730 = smin.f32 %s2729, 6.0
        %s2731 = scvt.f32.s32.to.zero.pseudo %s2730
        %s2732 = scvt.s32.f32 %s2731
        %s2733 = ssub.f32 %s2728, %s2732
        %s2734 = smul.u32 %s2731, 16
        %s2735 = scalar_lea.vmem [#allocation2], %s2734
        %v2736 = vld [vmem:[%s2735] sm:$0xff]
        %v2737 = vld [vmem:[%s2735 + $0x8] sm:$0xff]
        %s2738 = ssub.f32 1.0, %s2733
        %v2739 = vstv %s2738
        %v2740 = vmul.f32 %v2736, %v2739
        %v2741 = vmul.f32 %v2737, %v2739
        %s2742 = sadd.s32 %s2731, 1
        %s2743 = smul.u32 %s2742, 16
        %s2744 = scalar_lea.vmem [#allocation2], %s2743
        %v2745 = vld [vmem:[%s2744] sm:$0xff]
        %v2746 = vld [vmem:[%s2744 + $0x8] sm:$0xff]
        %v2747 = vstv %s2733
        %v2748 = vmul.f32 %v2745, %v2747
        %v2749 = vmul.f32 %v2746, %v2747
        %v2750 = vadd.f32 %v2740, %v2748
        %v2751 = vadd.f32 %v2741, %v2749
        %s2752 = smul.f32 %s2727, 0.2
        %s2753 = sfloor.f32 %s2752
        %s2754 = smin.f32 %s2753, 2.0
        %s2755 = scvt.f32.s32.to.zero.pseudo %s2754
        %s2756 = scvt.s32.f32 %s2755
        %s2757 = ssub.f32 %s2752, %s2756
        %s2758 = smul.u32 %s2755, 16
        %s2759 = scalar_lea.vmem [#allocation3], %s2758
        %v2760 = vld [vmem:[%s2759] sm:$0xff]
        %v2761 = vld [vmem:[%s2759 + $0x8] sm:$0xff]
        %s2762 = ssub.f32 1.0, %s2757
        %v2763 = vstv %s2762
        %v2764 = vmul.f32 %v2760, %v2763
        %v2765 = vmul.f32 %v2761, %v2763
        %s2766 = sadd.s32 %s2755, 1
        %s2767 = smul.u32 %s2766, 16
        %s2768 = scalar_lea.vmem [#allocation3], %s2767
        %v2769 = vld [vmem:[%s2768] sm:$0xff]
        %v2770 = vld [vmem:[%s2768 + $0x8] sm:$0xff]
        %v2771 = vstv %s2757
        %v2772 = vmul.f32 %v2769, %v2771
        %v2773 = vmul.f32 %v2770, %v2771
        %v2774 = vadd.f32 %v2764, %v2772
        %v2775 = vadd.f32 %v2765, %v2773
        %v2776 = vadd.f32 %v2750, %v2774
        %v2777 = vadd.f32 %v2751, %v2775
        %2778 = vst [vmem:[#allocation4 + $0xb0] sm:$0xff] %v2776
        %2779 = vst [vmem:[#allocation4 + $0xb8] sm:$0xff] %v2777
        %s2780 = sadd.s32 %s2132, 12
        %s2781 = scvt.s32.f32 %s2780
        %s2782 = smul.f32 %s2781, 0.46666667
        %s2783 = sfloor.f32 %s2782
        %s2784 = smin.f32 %s2783, 6.0
        %s2785 = scvt.f32.s32.to.zero.pseudo %s2784
        %s2786 = scvt.s32.f32 %s2785
        %s2787 = ssub.f32 %s2782, %s2786
        %s2788 = smul.u32 %s2785, 16
        %s2789 = scalar_lea.vmem [#allocation2], %s2788
        %v2790 = vld [vmem:[%s2789] sm:$0xff]
        %v2791 = vld [vmem:[%s2789 + $0x8] sm:$0xff]
        %s2792 = ssub.f32 1.0, %s2787
        %v2793 = vstv %s2792
        %v2794 = vmul.f32 %v2790, %v2793
        %v2795 = vmul.f32 %v2791, %v2793
        %s2796 = sadd.s32 %s2785, 1
        %s2797 = smul.u32 %s2796, 16
        %s2798 = scalar_lea.vmem [#allocation2], %s2797
        %v2799 = vld [vmem:[%s2798] sm:$0xff]
        %v2800 = vld [vmem:[%s2798 + $0x8] sm:$0xff]
        %v2801 = vstv %s2787
        %v2802 = vmul.f32 %v2799, %v2801
        %v2803 = vmul.f32 %v2800, %v2801
        %v2804 = vadd.f32 %v2794, %v2802
        %v2805 = vadd.f32 %v2795, %v2803
        %s2806 = smul.f32 %s2781, 0.2
        %s2807 = sfloor.f32 %s2806
        %s2808 = smin.f32 %s2807, 2.0
        %s2809 = scvt.f32.s32.to.zero.pseudo %s2808
        %s2810 = scvt.s32.f32 %s2809
        %s2811 = ssub.f32 %s2806, %s2810
        %s2812 = smul.u32 %s2809, 16
        %s2813 = scalar_lea.vmem [#allocation3], %s2812
        %v2814 = vld [vmem:[%s2813] sm:$0xff]
        %v2815 = vld [vmem:[%s2813 + $0x8] sm:$0xff]
        %s2816 = ssub.f32 1.0, %s2811
        %v2817 = vstv %s2816
        %v2818 = vmul.f32 %v2814, %v2817
        %v2819 = vmul.f32 %v2815, %v2817
        %s2820 = sadd.s32 %s2809, 1
        %s2821 = smul.u32 %s2820, 16
        %s2822 = scalar_lea.vmem [#allocation3], %s2821
        %v2823 = vld [vmem:[%s2822] sm:$0xff]
        %v2824 = vld [vmem:[%s2822 + $0x8] sm:$0xff]
        %v2825 = vstv %s2811
        %v2826 = vmul.f32 %v2823, %v2825
        %v2827 = vmul.f32 %v2824, %v2825
        %v2828 = vadd.f32 %v2818, %v2826
        %v2829 = vadd.f32 %v2819, %v2827
        %v2830 = vadd.f32 %v2804, %v2828
        %v2831 = vadd.f32 %v2805, %v2829
        %2832 = vst [vmem:[#allocation4 + $0xc0] sm:$0xff] %v2830
        %2833 = vst [vmem:[#allocation4 + $0xc8] sm:$0xff] %v2831
        %s2834 = sadd.s32 %s2132, 13
        %s2835 = scvt.s32.f32 %s2834
        %s2836 = smul.f32 %s2835, 0.46666667
        %s2837 = sfloor.f32 %s2836
        %s2838 = smin.f32 %s2837, 6.0
        %s2839 = scvt.f32.s32.to.zero.pseudo %s2838
        %s2840 = scvt.s32.f32 %s2839
        %s2841 = ssub.f32 %s2836, %s2840
        %s2842 = smul.u32 %s2839, 16
        %s2843 = scalar_lea.vmem [#allocation2], %s2842
        %v2844 = vld [vmem:[%s2843] sm:$0xff]
        %v2845 = vld [vmem:[%s2843 + $0x8] sm:$0xff]
        %s2846 = ssub.f32 1.0, %s2841
        %v2847 = vstv %s2846
        %v2848 = vmul.f32 %v2844, %v2847
        %v2849 = vmul.f32 %v2845, %v2847
        %s2850 = sadd.s32 %s2839, 1
        %s2851 = smul.u32 %s2850, 16
        %s2852 = scalar_lea.vmem [#allocation2], %s2851
        %v2853 = vld [vmem:[%s2852] sm:$0xff]
        %v2854 = vld [vmem:[%s2852 + $0x8] sm:$0xff]
        %v2855 = vstv %s2841
        %v2856 = vmul.f32 %v2853, %v2855
        %v2857 = vmul.f32 %v2854, %v2855
        %v2858 = vadd.f32 %v2848, %v2856
        %v2859 = vadd.f32 %v2849, %v2857
        %s2860 = smul.f32 %s2835, 0.2
        %s2861 = sfloor.f32 %s2860
        %s2862 = smin.f32 %s2861, 2.0
        %s2863 = scvt.f32.s32.to.zero.pseudo %s2862
        %s2864 = scvt.s32.f32 %s2863
        %s2865 = ssub.f32 %s2860, %s2864
        %s2866 = smul.u32 %s2863, 16
        %s2867 = scalar_lea.vmem [#allocation3], %s2866
        %v2868 = vld [vmem:[%s2867] sm:$0xff]
        %v2869 = vld [vmem:[%s2867 + $0x8] sm:$0xff]
        %s2870 = ssub.f32 1.0, %s2865
        %v2871 = vstv %s2870
        %v2872 = vmul.f32 %v2868, %v2871
        %v2873 = vmul.f32 %v2869, %v2871
        %s2874 = sadd.s32 %s2863, 1
        %s2875 = smul.u32 %s2874, 16
        %s2876 = scalar_lea.vmem [#allocation3], %s2875
        %v2877 = vld [vmem:[%s2876] sm:$0xff]
        %v2878 = vld [vmem:[%s2876 + $0x8] sm:$0xff]
        %v2879 = vstv %s2865
        %v2880 = vmul.f32 %v2877, %v2879
        %v2881 = vmul.f32 %v2878, %v2879
        %v2882 = vadd.f32 %v2872, %v2880
        %v2883 = vadd.f32 %v2873, %v2881
        %v2884 = vadd.f32 %v2858, %v2882
        %v2885 = vadd.f32 %v2859, %v2883
        %2886 = vst [vmem:[#allocation4 + $0xd0] sm:$0xff] %v2884
        %2887 = vst [vmem:[#allocation4 + $0xd8] sm:$0xff] %v2885
        %s2888 = sadd.s32 %s2132, 14
        %s2889 = scvt.s32.f32 %s2888
        %s2890 = smul.f32 %s2889, 0.46666667
        %s2891 = sfloor.f32 %s2890
        %s2892 = smin.f32 %s2891, 6.0
        %s2893 = scvt.f32.s32.to.zero.pseudo %s2892
        %s2894 = scvt.s32.f32 %s2893
        %s2895 = ssub.f32 %s2890, %s2894
        %s2896 = smul.u32 %s2893, 16
        %s2897 = scalar_lea.vmem [#allocation2], %s2896
        %v2898 = vld [vmem:[%s2897] sm:$0xff]
        %v2899 = vld [vmem:[%s2897 + $0x8] sm:$0xff]
        %s2900 = ssub.f32 1.0, %s2895
        %v2901 = vstv %s2900
        %v2902 = vmul.f32 %v2898, %v2901
        %v2903 = vmul.f32 %v2899, %v2901
        %s2904 = sadd.s32 %s2893, 1
        %s2905 = smul.u32 %s2904, 16
        %s2906 = scalar_lea.vmem [#allocation2], %s2905
        %v2907 = vld [vmem:[%s2906] sm:$0xff]
        %v2908 = vld [vmem:[%s2906 + $0x8] sm:$0xff]
        %v2909 = vstv %s2895
        %v2910 = vmul.f32 %v2907, %v2909
        %v2911 = vmul.f32 %v2908, %v2909
        %v2912 = vadd.f32 %v2902, %v2910
        %v2913 = vadd.f32 %v2903, %v2911
        %s2914 = smul.f32 %s2889, 0.2
        %s2915 = sfloor.f32 %s2914
        %s2916 = smin.f32 %s2915, 2.0
        %s2917 = scvt.f32.s32.to.zero.pseudo %s2916
        %s2918 = scvt.s32.f32 %s2917
        %s2919 = ssub.f32 %s2914, %s2918
        %s2920 = smul.u32 %s2917, 16
        %s2921 = scalar_lea.vmem [#allocation3], %s2920
        %v2922 = vld [vmem:[%s2921] sm:$0xff]
        %v2923 = vld [vmem:[%s2921 + $0x8] sm:$0xff]
        %s2924 = ssub.f32 1.0, %s2919
        %v2925 = vstv %s2924
        %v2926 = vmul.f32 %v2922, %v2925
        %v2927 = vmul.f32 %v2923, %v2925
        %s2928 = sadd.s32 %s2917, 1
        %s2929 = smul.u32 %s2928, 16
        %s2930 = scalar_lea.vmem [#allocation3], %s2929
        %v2931 = vld [vmem:[%s2930] sm:$0xff]
        %v2932 = vld [vmem:[%s2930 + $0x8] sm:$0xff]
        %v2933 = vstv %s2919
        %v2934 = vmul.f32 %v2931, %v2933
        %v2935 = vmul.f32 %v2932, %v2933
        %v2936 = vadd.f32 %v2926, %v2934
        %v2937 = vadd.f32 %v2927, %v2935
        %v2938 = vadd.f32 %v2912, %v2936
        %v2939 = vadd.f32 %v2913, %v2937
        %2940 = vst [vmem:[#allocation4 + $0xe0] sm:$0xff] %v2938
        %2941 = vst [vmem:[#allocation4 + $0xe8] sm:$0xff] %v2939
        %s2942 = sadd.s32 %s2132, 15
        %s2943 = scvt.s32.f32 %s2942
        %s2944 = smul.f32 %s2943, 0.46666667
        %s2945 = sfloor.f32 %s2944
        %s2946 = smin.f32 %s2945, 6.0
        %s2947 = scvt.f32.s32.to.zero.pseudo %s2946
        %s2948 = scvt.s32.f32 %s2947
        %s2949 = ssub.f32 %s2944, %s2948
        %s2950 = smul.u32 %s2947, 16
        %s2951 = scalar_lea.vmem [#allocation2], %s2950
        %v2952 = vld [vmem:[%s2951] sm:$0xff]
        %v2953 = vld [vmem:[%s2951 + $0x8] sm:$0xff]
        %s2954 = ssub.f32 1.0, %s2949
        %v2955 = vstv %s2954
        %v2956 = vmul.f32 %v2952, %v2955
        %v2957 = vmul.f32 %v2953, %v2955
        %s2958 = sadd.s32 %s2947, 1
        %s2959 = smul.u32 %s2958, 16
        %s2960 = scalar_lea.vmem [#allocation2], %s2959
        %v2961 = vld [vmem:[%s2960] sm:$0xff]
        %v2962 = vld [vmem:[%s2960 + $0x8] sm:$0xff]
        %v2963 = vstv %s2949
        %v2964 = vmul.f32 %v2961, %v2963
        %v2965 = vmul.f32 %v2962, %v2963
        %v2966 = vadd.f32 %v2956, %v2964
        %v2967 = vadd.f32 %v2957, %v2965
        %s2968 = smul.f32 %s2943, 0.2
        %s2969 = sfloor.f32 %s2968
        %s2970 = smin.f32 %s2969, 2.0
        %s2971 = scvt.f32.s32.to.zero.pseudo %s2970
        %s2972 = scvt.s32.f32 %s2971
        %s2973 = ssub.f32 %s2968, %s2972
        %s2974 = smul.u32 %s2971, 16
        %s2975 = scalar_lea.vmem [#allocation3], %s2974
        %v2976 = vld [vmem:[%s2975] sm:$0xff]
        %v2977 = vld [vmem:[%s2975 + $0x8] sm:$0xff]
        %s2978 = ssub.f32 1.0, %s2973
        %v2979 = vstv %s2978
        %v2980 = vmul.f32 %v2976, %v2979
        %v2981 = vmul.f32 %v2977, %v2979
        %s2982 = sadd.s32 %s2971, 1
        %s2983 = smul.u32 %s2982, 16
        %s2984 = scalar_lea.vmem [#allocation3], %s2983
        %v2985 = vld [vmem:[%s2984] sm:$0xff]
        %v2986 = vld [vmem:[%s2984 + $0x8] sm:$0xff]
        %v2987 = vstv %s2973
        %v2988 = vmul.f32 %v2985, %v2987
        %v2989 = vmul.f32 %v2986, %v2987
        %v2990 = vadd.f32 %v2980, %v2988
        %v2991 = vadd.f32 %v2981, %v2989
        %v2992 = vadd.f32 %v2966, %v2990
        %v2993 = vadd.f32 %v2967, %v2991
        %2994 = vst [vmem:[#allocation4 + $0xf0] sm:$0xff] %v2992
        %2995 = vst [vmem:[#allocation4 + $0xf8] sm:$0xff] %v2993
        %v2996 = vld [vmem:[%s659] sm:$0xf]
        %v2997 = vld [vmem:[%s659 + $0x4] sm:$0xf]
        %v2998 = vld [vmem:[%s659 + $0x8] sm:$0xf]
        %v2999 = vld [vmem:[%s659 + $0xc] sm:$0xf]
        %v3000 = vld [vmem:[%s659 + $0x10] sm:$0xf]
        %v3001 = vld [vmem:[%s659 + $0x14] sm:$0xf]
        %v3002 = vld [vmem:[%s659 + $0x18] sm:$0xf]
        %v3003 = vld [vmem:[%s659 + $0x1c] sm:$0xf]
        %v3004 = vld [vmem:[%s659 + $0x20] sm:$0xf]
        %v3005 = vld [vmem:[%s659 + $0x24] sm:$0xf]
        %v3006 = vld [vmem:[%s659 + $0x28] sm:$0xf]
        %v3007 = vld [vmem:[%s659 + $0x2c] sm:$0xf]
        %v3008 = vld [vmem:[%s659 + $0x30] sm:$0xf]
        %v3009 = vld [vmem:[%s659 + $0x34] sm:$0xf]
        %v3010 = vld [vmem:[%s659 + $0x38] sm:$0xf]
        %v3011 = vld [vmem:[%s659 + $0x3c] sm:$0xf]
        %v3012 = vld [vmem:[%s659 + $0x40] sm:$0xf]
        %v3013 = vld [vmem:[%s659 + $0x44] sm:$0xf]
        %v3014 = vld [vmem:[%s659 + $0x48] sm:$0xf]
        %v3015 = vld [vmem:[%s659 + $0x4c] sm:$0xf]
        %v3016 = vld [vmem:[%s659 + $0x50] sm:$0xf]
        %v3017 = vld [vmem:[%s659 + $0x54] sm:$0xf]
        %v3018 = vld [vmem:[%s659 + $0x58] sm:$0xf]
        %v3019 = vld [vmem:[%s659 + $0x5c] sm:$0xf]
        %v3020 = vld [vmem:[%s659 + $0x60] sm:$0xf]
        %v3021 = vld [vmem:[%s659 + $0x64] sm:$0xf]
        %v3022 = vld [vmem:[%s659 + $0x68] sm:$0xf]
        %v3023 = vld [vmem:[%s659 + $0x6c] sm:$0xf]
        %v3024 = vld [vmem:[%s659 + $0x70] sm:$0xf]
        %v3025 = vld [vmem:[%s659 + $0x74] sm:$0xf]
        %v3026 = vld [vmem:[%s659 + $0x78] sm:$0xf]
        %v3027 = vld [vmem:[%s659 + $0x7c] sm:$0xf]
        %v3028 = vld [vmem:[%s3] sm:$0xf]
        %v3029 = vld [vmem:[%s3 + $0x4] sm:$0xf]
        %v3030 = vld [vmem:[%s3 + $0x8] sm:$0xf]
        %v3031 = vld [vmem:[%s3 + $0xc] sm:$0xf]
        %v3032 = vld [vmem:[%s3 + $0x10] sm:$0xf]
        %v3033 = vld [vmem:[%s3 + $0x14] sm:$0xf]
        %v3034 = vld [vmem:[%s3 + $0x18] sm:$0xf]
        %v3035 = vld [vmem:[%s3 + $0x1c] sm:$0xf]
        %v3036 = vld [vmem:[%s3 + $0x20] sm:$0xf]
        %v3037 = vld [vmem:[%s3 + $0x24] sm:$0xf]
        %v3038 = vld [vmem:[%s3 + $0x28] sm:$0xf]
        %v3039 = vld [vmem:[%s3 + $0x2c] sm:$0xf]
        %v3040 = vld [vmem:[%s3 + $0x30] sm:$0xf]
        %v3041 = vld [vmem:[%s3 + $0x34] sm:$0xf]
        %v3042 = vld [vmem:[%s3 + $0x38] sm:$0xf]
        %v3043 = vld [vmem:[%s3 + $0x3c] sm:$0xf]
        %v3076 = vunpack.c.l.b16 %v2996
        %v3077 = vunpack.c.l.b16 %v2997
        %v3078 = vunpack.c.l.b16 %v2998
        %v3079 = vunpack.c.l.b16 %v2999
        %v3080 = vunpack.c.l.b16 %v3000
        %v3081 = vunpack.c.l.b16 %v3001
        %v3082 = vunpack.c.l.b16 %v3002
        %v3083 = vunpack.c.l.b16 %v3003
        %v3084 = vunpack.c.l.b16 %v3004
        %v3085 = vunpack.c.l.b16 %v3005
        %v3086 = vunpack.c.l.b16 %v3006
        %v3087 = vunpack.c.l.b16 %v3007
        %v3088 = vunpack.c.l.b16 %v3008
        %v3089 = vunpack.c.l.b16 %v3009
        %v3090 = vunpack.c.l.b16 %v3010
        %v3091 = vunpack.c.l.b16 %v3011
        %v3092 = vunpack.c.l.b16 %v3012
        %v3093 = vunpack.c.l.b16 %v3013
        %v3094 = vunpack.c.l.b16 %v3014
        %v3095 = vunpack.c.l.b16 %v3015
        %v3096 = vunpack.c.l.b16 %v3016
        %v3097 = vunpack.c.l.b16 %v3017
        %v3098 = vunpack.c.l.b16 %v3018
        %v3099 = vunpack.c.l.b16 %v3019
        %v3100 = vunpack.c.l.b16 %v3020
        %v3101 = vunpack.c.l.b16 %v3021
        %v3102 = vunpack.c.l.b16 %v3022
        %v3103 = vunpack.c.l.b16 %v3023
        %v3104 = vunpack.c.l.b16 %v3024
        %v3105 = vunpack.c.l.b16 %v3025
        %v3106 = vunpack.c.l.b16 %v3026
        %v3107 = vunpack.c.l.b16 %v3027
        %v3108 = vpack.c.b16 %v3077, %v3076
        %v3109 = vpack.c.b16 %v3079, %v3078
        %v3110 = vpack.c.b16 %v3081, %v3080
        %v3111 = vpack.c.b16 %v3083, %v3082
        %v3112 = vpack.c.b16 %v3085, %v3084
        %v3113 = vpack.c.b16 %v3087, %v3086
        %v3114 = vpack.c.b16 %v3089, %v3088
        %v3115 = vpack.c.b16 %v3091, %v3090
        %v3116 = vpack.c.b16 %v3093, %v3092
        %v3117 = vpack.c.b16 %v3095, %v3094
        %v3118 = vpack.c.b16 %v3097, %v3096
        %v3119 = vpack.c.b16 %v3099, %v3098
        %v3120 = vpack.c.b16 %v3101, %v3100
        %v3121 = vpack.c.b16 %v3103, %v3102
        %v3122 = vpack.c.b16 %v3105, %v3104
        %v3123 = vpack.c.b16 %v3107, %v3106
        %v3156 = vunpack.c.l.b16 %v3028
        %v3157 = vunpack.c.l.b16 %v3029
        %v3158 = vunpack.c.l.b16 %v3030
        %v3159 = vunpack.c.l.b16 %v3031
        %v3160 = vunpack.c.l.b16 %v3032
        %v3161 = vunpack.c.l.b16 %v3033
        %v3162 = vunpack.c.l.b16 %v3034
        %v3163 = vunpack.c.l.b16 %v3035
        %v3164 = vunpack.c.l.b16 %v3036
        %v3165 = vunpack.c.l.b16 %v3037
        %v3166 = vunpack.c.l.b16 %v3038
        %v3167 = vunpack.c.l.b16 %v3039
        %v3168 = vunpack.c.l.b16 %v3040
        %v3169 = vunpack.c.l.b16 %v3041
        %v3170 = vunpack.c.l.b16 %v3042
        %v3171 = vunpack.c.l.b16 %v3043
        %v3172 = vpack.c.b16 %v3157, %v3156
        %v3173 = vpack.c.b16 %v3159, %v3158
        %v3174 = vpack.c.b16 %v3161, %v3160
        %v3175 = vpack.c.b16 %v3163, %v3162
        %v3176 = vpack.c.b16 %v3165, %v3164
        %v3177 = vpack.c.b16 %v3167, %v3166
        %v3178 = vpack.c.b16 %v3169, %v3168
        %v3179 = vpack.c.b16 %v3171, %v3170
        %3188 = vmatprep.subr.bf16.mxu0 0
        %3189 = vmatpush1.bf16.msra.mxu0 %v3172
        %3190 = vmatprep.subr.bf16.mxu0 0
        %3191 = vmatpush1.bf16.msra.mxu0 %v3173
        %3192 = vmatprep.subr.bf16.mxu0 0
        %3193 = vmatpush1.bf16.msra.mxu0 %v3174
        %3194 = vmatprep.subr.bf16.mxu0 0
        %3195 = vmatpush1.bf16.msra.mxu0 %v3175
        %3196 = vmatprep.subr.bf16.mxu0 0
        %3197 = vmatpush1.bf16.msra.mxu0 %v3176
        %3198 = vmatprep.subr.bf16.mxu0 0
        %3199 = vmatpush1.bf16.msra.mxu0 %v3177
        %3200 = vmatprep.subr.bf16.mxu0 0
        %3201 = vmatpush1.bf16.msra.mxu0 %v3178
        %3202 = vmatprep.subr.bf16.mxu0 0
        %3203 = vmatpush1.bf16.msra.mxu0 %v3179
        %3204 = vmatprep.subr.bf16.mxu0 0
        %3205 = vmatpush1.bf16.msra.mxu0 0
        %3206 = vmatprep.subr.bf16.mxu0 0
        %3207 = vmatpush1.bf16.msra.mxu0 0
        %3208 = vmatprep.subr.bf16.mxu0 0
        %3209 = vmatpush1.bf16.msra.mxu0 0
        %3210 = vmatprep.subr.bf16.mxu0 0
        %3211 = vmatpush1.bf16.msra.mxu0 0
        %3212 = vmatprep.subr.bf16.mxu0 0
        %3213 = vmatpush1.bf16.msra.mxu0 0
        %3214 = vmatprep.subr.bf16.mxu0 0
        %3215 = vmatpush1.bf16.msra.mxu0 0
        %3216 = vmatprep.subr.bf16.mxu0 0
        %3217 = vmatpush1.bf16.msra.mxu0 0
        %3218 = vmatprep.subr.bf16.mxu0 0
        %3219 = vmatpush1.bf16.msra.mxu0 0
        %3220 = vmatprep.mubr.bf16.mxu0 0
        %3221 = vmatmul.mubr.bf16.gmra.mrb[0].mxu0 %v3108
        %v3222 = vpop.f32.mrb[0].mxu0
        %v3223 = vadd.f32 0.0, %v3222
        %v3224 = vpop.f32.mrb[0].mxu0
        %v3225 = vpop.f32.mrb[0].mxu0
        %v3226 = vadd.f32 0.0, %v3225
        %v3227 = vpop.f32.mrb[0].mxu0
        %3228 = vmatprep.mubr.bf16.mxu0 0
        %3229 = vmatmul.mubr.bf16.gmra.mrb[0].mxu0 %v3109
        %v3230 = vpop.f32.mrb[0].mxu0
        %v3231 = vadd.f32 0.0, %v3230
        %v3232 = vpop.f32.mrb[0].mxu0
        %v3233 = vpop.f32.mrb[0].mxu0
        %v3234 = vadd.f32 0.0, %v3233
        %v3235 = vpop.f32.mrb[0].mxu0
        %3236 = vmatprep.mubr.bf16.mxu0 0
        %3237 = vmatmul.mubr.bf16.gmra.mrb[0].mxu0 %v3110
        %v3238 = vpop.f32.mrb[0].mxu0
        %v3239 = vadd.f32 0.0, %v3238
        %v3240 = vpop.f32.mrb[0].mxu0
        %v3241 = vpop.f32.mrb[0].mxu0
        %v3242 = vadd.f32 0.0, %v3241
        %v3243 = vpop.f32.mrb[0].mxu0
        %3244 = vmatprep.mubr.bf16.mxu0 0
        %3245 = vmatmul.mubr.bf16.gmra.mrb[0].mxu0 %v3111
        %v3246 = vpop.f32.mrb[0].mxu0
        %v3247 = vadd.f32 0.0, %v3246
        %v3248 = vpop.f32.mrb[0].mxu0
        %v3249 = vpop.f32.mrb[0].mxu0
        %v3250 = vadd.f32 0.0, %v3249
        %v3251 = vpop.f32.mrb[0].mxu0
        %3252 = vmatprep.mubr.bf16.mxu0 0
        %3253 = vmatmul.mubr.bf16.gmra.mrb[0].mxu0 %v3112
        %v3254 = vpop.f32.mrb[0].mxu0
        %v3255 = vadd.f32 0.0, %v3254
        %v3256 = vpop.f32.mrb[0].mxu0
        %v3257 = vpop.f32.mrb[0].mxu0
        %v3258 = vadd.f32 0.0, %v3257
        %v3259 = vpop.f32.mrb[0].mxu0
        %3260 = vmatprep.mubr.bf16.mxu0 0
        %3261 = vmatmul.mubr.bf16.gmra.mrb[0].mxu0 %v3113
        %v3262 = vpop.f32.mrb[0].mxu0
        %v3263 = vadd.f32 0.0, %v3262
        %v3264 = vpop.f32.mrb[0].mxu0
        %v3265 = vpop.f32.mrb[0].mxu0
        %v3266 = vadd.f32 0.0, %v3265
        %v3267 = vpop.f32.mrb[0].mxu0
        %3268 = vmatprep.mubr.bf16.mxu0 0
        %3269 = vmatmul.mubr.bf16.gmra.mrb[0].mxu0 %v3114
        %v3270 = vpop.f32.mrb[0].mxu0
        %v3271 = vadd.f32 0.0, %v3270
        %v3272 = vpop.f32.mrb[0].mxu0
        %v3273 = vpop.f32.mrb[0].mxu0
        %v3274 = vadd.f32 0.0, %v3273
        %v3275 = vpop.f32.mrb[0].mxu0
        %3276 = vmatprep.mubr.bf16.mxu0 0
        %3277 = vmatmul.mubr.bf16.gmra.mrb[0].mxu0 %v3115
        %v3278 = vpop.f32.mrb[0].mxu0
        %v3279 = vadd.f32 0.0, %v3278
        %v3280 = vpop.f32.mrb[0].mxu0
        %v3281 = vpop.f32.mrb[0].mxu0
        %v3282 = vadd.f32 0.0, %v3281
        %v3283 = vpop.f32.mrb[0].mxu0
        %3284 = vmatprep.mubr.bf16.mxu0 0
        %3285 = vmatmul.mubr.bf16.gmra.mrb[0].mxu0 %v3116
        %v3286 = vpop.f32.mrb[0].mxu0
        %v3287 = vadd.f32 0.0, %v3286
        %v3288 = vpop.f32.mrb[0].mxu0
        %v3289 = vpop.f32.mrb[0].mxu0
        %v3290 = vadd.f32 0.0, %v3289
        %v3291 = vpop.f32.mrb[0].mxu0
        %3292 = vmatprep.mubr.bf16.mxu0 0
        %3293 = vmatmul.mubr.bf16.gmra.mrb[0].mxu0 %v3117
        %v3294 = vpop.f32.mrb[0].mxu0
        %v3295 = vadd.f32 0.0, %v3294
        %v3296 = vpop.f32.mrb[0].mxu0
        %v3297 = vpop.f32.mrb[0].mxu0
        %v3298 = vadd.f32 0.0, %v3297
        %v3299 = vpop.f32.mrb[0].mxu0
        %3300 = vmatprep.mubr.bf16.mxu0 0
        %3301 = vmatmul.mubr.bf16.gmra.mrb[0].mxu0 %v3118
        %v3302 = vpop.f32.mrb[0].mxu0
        %v3303 = vadd.f32 0.0, %v3302
        %v3304 = vpop.f32.mrb[0].mxu0
        %v3305 = vpop.f32.mrb[0].mxu0
        %v3306 = vadd.f32 0.0, %v3305
        %v3307 = vpop.f32.mrb[0].mxu0
        %3308 = vmatprep.mubr.bf16.mxu0 0
        %3309 = vmatmul.mubr.bf16.gmra.mrb[0].mxu0 %v3119
        %v3310 = vpop.f32.mrb[0].mxu0
        %v3311 = vadd.f32 0.0, %v3310
        %v3312 = vpop.f32.mrb[0].mxu0
        %v3313 = vpop.f32.mrb[0].mxu0
        %v3314 = vadd.f32 0.0, %v3313
        %v3315 = vpop.f32.mrb[0].mxu0
        %3316 = vmatprep.mubr.bf16.mxu0 0
        %3317 = vmatmul.mubr.bf16.gmra.mrb[0].mxu0 %v3120
        %v3318 = vpop.f32.mrb[0].mxu0
        %v3319 = vadd.f32 0.0, %v3318
        %v3320 = vpop.f32.mrb[0].mxu0
        %v3321 = vpop.f32.mrb[0].mxu0
        %v3322 = vadd.f32 0.0, %v3321
        %v3323 = vpop.f32.mrb[0].mxu0
        %3324 = vmatprep.mubr.bf16.mxu0 0
        %3325 = vmatmul.mubr.bf16.gmra.mrb[0].mxu0 %v3121
        %v3326 = vpop.f32.mrb[0].mxu0
        %v3327 = vadd.f32 0.0, %v3326
        %v3328 = vpop.f32.mrb[0].mxu0
        %v3329 = vpop.f32.mrb[0].mxu0
        %v3330 = vadd.f32 0.0, %v3329
        %v3331 = vpop.f32.mrb[0].mxu0
        %3332 = vmatprep.mubr.bf16.mxu0 0
        %3333 = vmatmul.mubr.bf16.gmra.mrb[0].mxu0 %v3122
        %v3334 = vpop.f32.mrb[0].mxu0
        %v3335 = vadd.f32 0.0, %v3334
        %v3336 = vpop.f32.mrb[0].mxu0
        %v3337 = vpop.f32.mrb[0].mxu0
        %v3338 = vadd.f32 0.0, %v3337
        %v3339 = vpop.f32.mrb[0].mxu0
        %3340 = vmatprep.mubr.bf16.mxu0 0
        %3341 = vmatmul.mubr.bf16.gmra.mrb[0].mxu0 %v3123
        %v3342 = vpop.f32.mrb[0].mxu0
        %v3343 = vadd.f32 0.0, %v3342
        %v3344 = vpop.f32.mrb[0].mxu0
        %v3345 = vpop.f32.mrb[0].mxu0
        %v3346 = vadd.f32 0.0, %v3345
        %v3347 = vpop.f32.mrb[0].mxu0
        %3348 = vdwg.mxu0
        %v3349 = vld [vmem:[%s4] sm:$0x1]
        %v3351 = vlaneseq
        %v3352 = vshrl.u32 %v3351, 7
        %v3353 = vsub.s32 0, %v3352
        %v3354 = vrot.slane %v3349, %v3353
        %v3356 = vmul.f32 %v3223, %v3354
        %v3357 = vmul.f32 %v3226, %v3354
        %v3358 = vmul.f32 %v3231, %v3354
        %v3359 = vmul.f32 %v3234, %v3354
        %v3360 = vmul.f32 %v3239, %v3354
        %v3361 = vmul.f32 %v3242, %v3354
        %v3362 = vmul.f32 %v3247, %v3354
        %v3363 = vmul.f32 %v3250, %v3354
        %v3364 = vmul.f32 %v3255, %v3354
        %v3365 = vmul.f32 %v3258, %v3354
        %v3366 = vmul.f32 %v3263, %v3354
        %v3367 = vmul.f32 %v3266, %v3354
        %v3368 = vmul.f32 %v3271, %v3354
        %v3369 = vmul.f32 %v3274, %v3354
        %v3370 = vmul.f32 %v3279, %v3354
        %v3371 = vmul.f32 %v3282, %v3354
        %v3372 = vmul.f32 %v3287, %v3354
        %v3373 = vmul.f32 %v3290, %v3354
        %v3374 = vmul.f32 %v3295, %v3354
        %v3375 = vmul.f32 %v3298, %v3354
        %v3376 = vmul.f32 %v3303, %v3354
        %v3377 = vmul.f32 %v3306, %v3354
        %v3378 = vmul.f32 %v3311, %v3354
        %v3379 = vmul.f32 %v3314, %v3354
        %v3380 = vmul.f32 %v3319, %v3354
        %v3381 = vmul.f32 %v3322, %v3354
        %v3382 = vmul.f32 %v3327, %v3354
        %v3383 = vmul.f32 %v3330, %v3354
        %v3384 = vmul.f32 %v3335, %v3354
        %v3385 = vmul.f32 %v3338, %v3354
        %v3386 = vmul.f32 %v3343, %v3354
        %v3387 = vmul.f32 %v3346, %v3354
        %v3388 = vld [vmem:[%s5] sm:$0x1]
        %v3390 = vlaneseq
        %v3391 = vshrl.u32 %v3390, 7
        %v3392 = vsub.s32 0, %v3391
        %v3393 = vrot.slane %v3388, %v3392
        %v3395 = vadd.f32 %v3356, %v3393
        %v3396 = vadd.f32 %v3357, %v3393
        %v3397 = vadd.f32 %v3358, %v3393
        %v3398 = vadd.f32 %v3359, %v3393
        %v3399 = vadd.f32 %v3360, %v3393
        %v3400 = vadd.f32 %v3361, %v3393
        %v3401 = vadd.f32 %v3362, %v3393
        %v3402 = vadd.f32 %v3363, %v3393
        %v3403 = vadd.f32 %v3364, %v3393
        %v3404 = vadd.f32 %v3365, %v3393
        %v3405 = vadd.f32 %v3366, %v3393
        %v3406 = vadd.f32 %v3367, %v3393
        %v3407 = vadd.f32 %v3368, %v3393
        %v3408 = vadd.f32 %v3369, %v3393
        %v3409 = vadd.f32 %v3370, %v3393
        %v3410 = vadd.f32 %v3371, %v3393
        %v3411 = vadd.f32 %v3372, %v3393
        %v3412 = vadd.f32 %v3373, %v3393
        %v3413 = vadd.f32 %v3374, %v3393
        %v3414 = vadd.f32 %v3375, %v3393
        %v3415 = vadd.f32 %v3376, %v3393
        %v3416 = vadd.f32 %v3377, %v3393
        %v3417 = vadd.f32 %v3378, %v3393
        %v3418 = vadd.f32 %v3379, %v3393
        %v3419 = vadd.f32 %v3380, %v3393
        %v3420 = vadd.f32 %v3381, %v3393
        %v3421 = vadd.f32 %v3382, %v3393
        %v3422 = vadd.f32 %v3383, %v3393
        %v3423 = vadd.f32 %v3384, %v3393
        %v3424 = vadd.f32 %v3385, %v3393
        %v3425 = vadd.f32 %v3386, %v3393
        %v3426 = vadd.f32 %v3387, %v3393
        %v3427 = vmax.f32 %v3395, 0.0
        %v3428 = vmax.f32 %v3396, 0.0
        %v3429 = vmax.f32 %v3397, 0.0
        %v3430 = vmax.f32 %v3398, 0.0
        %v3431 = vmax.f32 %v3399, 0.0
        %v3432 = vmax.f32 %v3400, 0.0
        %v3433 = vmax.f32 %v3401, 0.0
        %v3434 = vmax.f32 %v3402, 0.0
        %v3435 = vmax.f32 %v3403, 0.0
        %v3436 = vmax.f32 %v3404, 0.0
        %v3437 = vmax.f32 %v3405, 0.0
        %v3438 = vmax.f32 %v3406, 0.0
        %v3439 = vmax.f32 %v3407, 0.0
        %v3440 = vmax.f32 %v3408, 0.0
        %v3441 = vmax.f32 %v3409, 0.0
        %v3442 = vmax.f32 %v3410, 0.0
        %v3443 = vmax.f32 %v3411, 0.0
        %v3444 = vmax.f32 %v3412, 0.0
        %v3445 = vmax.f32 %v3413, 0.0
        %v3446 = vmax.f32 %v3414, 0.0
        %v3447 = vmax.f32 %v3415, 0.0
        %v3448 = vmax.f32 %v3416, 0.0
        %v3449 = vmax.f32 %v3417, 0.0
        %v3450 = vmax.f32 %v3418, 0.0
        %v3451 = vmax.f32 %v3419, 0.0
        %v3452 = vmax.f32 %v3420, 0.0
        %v3453 = vmax.f32 %v3421, 0.0
        %v3454 = vmax.f32 %v3422, 0.0
        %v3455 = vmax.f32 %v3423, 0.0
        %v3456 = vmax.f32 %v3424, 0.0
        %v3457 = vmax.f32 %v3425, 0.0
        %v3458 = vmax.f32 %v3426, 0.0
        %v3459 = vpack.c.bf16 %v3428, %v3427
        %v3460 = vpack.c.bf16 %v3430, %v3429
        %v3461 = vpack.c.bf16 %v3432, %v3431
        %v3462 = vpack.c.bf16 %v3434, %v3433
        %v3463 = vpack.c.bf16 %v3436, %v3435
        %v3464 = vpack.c.bf16 %v3438, %v3437
        %v3465 = vpack.c.bf16 %v3440, %v3439
        %v3466 = vpack.c.bf16 %v3442, %v3441
        %v3467 = vpack.c.bf16 %v3444, %v3443
        %v3468 = vpack.c.bf16 %v3446, %v3445
        %v3469 = vpack.c.bf16 %v3448, %v3447
        %v3470 = vpack.c.bf16 %v3450, %v3449
        %v3471 = vpack.c.bf16 %v3452, %v3451
        %v3472 = vpack.c.bf16 %v3454, %v3453
        %v3473 = vpack.c.bf16 %v3456, %v3455
        %v3474 = vpack.c.bf16 %v3458, %v3457
        %v3475 = vld [vmem:[%s12] sm:$0xf]
        %v3476 = vld [vmem:[%s12 + $0x4] sm:$0xf]
        %v3477 = vld [vmem:[%s12 + $0x8] sm:$0xf]
        %v3478 = vld [vmem:[%s12 + $0xc] sm:$0xf]
        %v3479 = vld [vmem:[%s12 + $0x10] sm:$0xf]
        %v3480 = vld [vmem:[%s12 + $0x14] sm:$0xf]
        %v3481 = vld [vmem:[%s12 + $0x18] sm:$0xf]
        %v3482 = vld [vmem:[%s12 + $0x1c] sm:$0xf]
        %v3483 = vld [vmem:[#allocation4] sm:$0xff]
        %v3484 = vld [vmem:[#allocation4 + $0x8] sm:$0xff]
        %v3485 = vld [vmem:[#allocation4 + $0x10] sm:$0xff]
        %v3486 = vld [vmem:[#allocation4 + $0x18] sm:$0xff]
        %v3487 = vld [vmem:[#allocation4 + $0x20] sm:$0xff]
        %v3488 = vld [vmem:[#allocation4 + $0x28] sm:$0xff]
        %v3489 = vld [vmem:[#allocation4 + $0x30] sm:$0xff]
        %v3490 = vld [vmem:[#allocation4 + $0x38] sm:$0xff]
        %v3491 = vld [vmem:[#allocation4 + $0x40] sm:$0xff]
        %v3492 = vld [vmem:[#allocation4 + $0x48] sm:$0xff]
        %v3493 = vld [vmem:[#allocation4 + $0x50] sm:$0xff]
        %v3494 = vld [vmem:[#allocation4 + $0x58] sm:$0xff]
        %v3495 = vld [vmem:[#allocation4 + $0x60] sm:$0xff]
        %v3496 = vld [vmem:[#allocation4 + $0x68] sm:$0xff]
        %v3497 = vld [vmem:[#allocation4 + $0x70] sm:$0xff]
        %v3498 = vld [vmem:[#allocation4 + $0x78] sm:$0xff]
        %v3499 = vld [vmem:[#allocation4 + $0x80] sm:$0xff]
        %v3500 = vld [vmem:[#allocation4 + $0x88] sm:$0xff]
        %v3501 = vld [vmem:[#allocation4 + $0x90] sm:$0xff]
        %v3502 = vld [vmem:[#allocation4 + $0x98] sm:$0xff]
        %v3503 = vld [vmem:[#allocation4 + $0xa0] sm:$0xff]
        %v3504 = vld [vmem:[#allocation4 + $0xa8] sm:$0xff]
        %v3505 = vld [vmem:[#allocation4 + $0xb0] sm:$0xff]
        %v3506 = vld [vmem:[#allocation4 + $0xb8] sm:$0xff]
        %v3507 = vld [vmem:[#allocation4 + $0xc0] sm:$0xff]
        %v3508 = vld [vmem:[#allocation4 + $0xc8] sm:$0xff]
        %v3509 = vld [vmem:[#allocation4 + $0xd0] sm:$0xff]
        %v3510 = vld [vmem:[#allocation4 + $0xd8] sm:$0xff]
        %v3511 = vld [vmem:[#allocation4 + $0xe0] sm:$0xff]
        %v3512 = vld [vmem:[#allocation4 + $0xe8] sm:$0xff]
        %v3513 = vld [vmem:[#allocation4 + $0xf0] sm:$0xff]
        %v3514 = vld [vmem:[#allocation4 + $0xf8] sm:$0xff]
        %v3523 = vunpack.c.l.b16 %v3475
        %v3524 = vunpack.c.l.b16 %v3476
        %v3525 = vunpack.c.l.b16 %v3477
        %v3526 = vunpack.c.l.b16 %v3478
        %v3527 = vunpack.c.l.b16 %v3479
        %v3528 = vunpack.c.l.b16 %v3480
        %v3529 = vunpack.c.l.b16 %v3481
        %v3530 = vunpack.c.l.b16 %v3482
        %v3531 = vpack.c.b16 %v3524, %v3523
        %v3532 = vpack.c.b16 %v3526, %v3525
        %v3533 = vpack.c.b16 %v3528, %v3527
        %v3534 = vpack.c.b16 %v3530, %v3529
        %vm3539 = vcmask 523264
        %v3541 = vsel %vm3539, %v3459, 0
        %v3544 = vsel %vm3539, %v3460, 0
        %v3547 = vsel %vm3539, %v3461, 0
        %v3550 = vsel %vm3539, %v3462, 0
        %v3553 = vsel %vm3539, %v3463, 0
        %v3556 = vsel %vm3539, %v3464, 0
        %v3559 = vsel %vm3539, %v3465, 0
        %v3562 = vsel %vm3539, %v3466, 0
        %v3565 = vsel %vm3539, %v3467, 0
        %v3568 = vsel %vm3539, %v3468, 0
        %v3571 = vsel %vm3539, %v3469, 0
        %v3574 = vsel %vm3539, %v3470, 0
        %v3577 = vsel %vm3539, %v3471, 0
        %v3580 = vsel %vm3539, %v3472, 0
        %v3583 = vsel %vm3539, %v3473, 0
        %v3586 = vsel %vm3539, %v3474, 0
        %3588 = vmatprep.subr.bf16.mxu0 0
        %3589 = vmatpush1.bf16.msra.mxu0 %v3531
        %3590 = vmatprep.subr.bf16.mxu0 0
        %3591 = vmatpush1.bf16.msra.mxu0 %v3532
        %3592 = vmatprep.subr.bf16.mxu0 0
        %3593 = vmatpush1.bf16.msra.mxu0 %v3533
        %3594 = vmatprep.subr.bf16.mxu0 0
        %3595 = vmatpush1.bf16.msra.mxu0 %v3534
        %3596 = vmatprep.subr.bf16.mxu0 0
        %3597 = vmatpush1.bf16.msra.mxu0 0
        %3598 = vmatprep.subr.bf16.mxu0 0
        %3599 = vmatpush1.bf16.msra.mxu0 0
        %3600 = vmatprep.subr.bf16.mxu0 0
        %3601 = vmatpush1.bf16.msra.mxu0 0
        %3602 = vmatprep.subr.bf16.mxu0 0
        %3603 = vmatpush1.bf16.msra.mxu0 0
        %3604 = vmatprep.subr.bf16.mxu0 0
        %3605 = vmatpush1.bf16.msra.mxu0 0
        %3606 = vmatprep.subr.bf16.mxu0 0
        %3607 = vmatpush1.bf16.msra.mxu0 0
        %3608 = vmatprep.subr.bf16.mxu0 0
        %3609 = vmatpush1.bf16.msra.mxu0 0
        %3610 = vmatprep.subr.bf16.mxu0 0
        %3611 = vmatpush1.bf16.msra.mxu0 0
        %3612 = vmatprep.subr.bf16.mxu0 0
        %3613 = vmatpush1.bf16.msra.mxu0 0
        %3614 = vmatprep.subr.bf16.mxu0 0
        %3615 = vmatpush1.bf16.msra.mxu0 0
        %3616 = vmatprep.subr.bf16.mxu0 0
        %3617 = vmatpush1.bf16.msra.mxu0 0
        %3618 = vmatprep.subr.bf16.mxu0 0
        %3619 = vmatpush1.bf16.msra.mxu0 0
        %3620 = vmatprep.mubr.bf16.mxu0 0
        %3621 = vmatmul.mubr.bf16.gmra.mrb[0].mxu0 %v3541
        %v3622 = vpop.f32.mrb[0].mxu0
        %v3623 = vadd.f32 %v3483, %v3622
        %v3624 = vpop.f32.mrb[0].mxu0
        %v3625 = vpop.f32.mrb[0].mxu0
        %v3626 = vadd.f32 %v3484, %v3625
        %v3627 = vpop.f32.mrb[0].mxu0
        %3628 = vmatprep.mubr.bf16.mxu0 0
        %3629 = vmatmul.mubr.bf16.gmra.mrb[0].mxu0 %v3544
        %v3630 = vpop.f32.mrb[0].mxu0
        %v3631 = vadd.f32 %v3485, %v3630
        %v3632 = vpop.f32.mrb[0].mxu0
        %v3633 = vpop.f32.mrb[0].mxu0
        %v3634 = vadd.f32 %v3486, %v3633
        %v3635 = vpop.f32.mrb[0].mxu0
        %3636 = vmatprep.mubr.bf16.mxu0 0
        %3637 = vmatmul.mubr.bf16.gmra.mrb[0].mxu0 %v3547
        %v3638 = vpop.f32.mrb[0].mxu0
        %v3639 = vadd.f32 %v3487, %v3638
        %v3640 = vpop.f32.mrb[0].mxu0
        %v3641 = vpop.f32.mrb[0].mxu0
        %v3642 = vadd.f32 %v3488, %v3641
        %v3643 = vpop.f32.mrb[0].mxu0
        %3644 = vmatprep.mubr.bf16.mxu0 0
        %3645 = vmatmul.mubr.bf16.gmra.mrb[0].mxu0 %v3550
        %v3646 = vpop.f32.mrb[0].mxu0
        %v3647 = vadd.f32 %v3489, %v3646
        %v3648 = vpop.f32.mrb[0].mxu0
        %v3649 = vpop.f32.mrb[0].mxu0
        %v3650 = vadd.f32 %v3490, %v3649
        %v3651 = vpop.f32.mrb[0].mxu0
        %3652 = vmatprep.mubr.bf16.mxu0 0
        %3653 = vmatmul.mubr.bf16.gmra.mrb[0].mxu0 %v3553
        %v3654 = vpop.f32.mrb[0].mxu0
        %v3655 = vadd.f32 %v3491, %v3654
        %v3656 = vpop.f32.mrb[0].mxu0
        %v3657 = vpop.f32.mrb[0].mxu0
        %v3658 = vadd.f32 %v3492, %v3657
        %v3659 = vpop.f32.mrb[0].mxu0
        %3660 = vmatprep.mubr.bf16.mxu0 0
        %3661 = vmatmul.mubr.bf16.gmra.mrb[0].mxu0 %v3556
        %v3662 = vpop.f32.mrb[0].mxu0
        %v3663 = vadd.f32 %v3493, %v3662
        %v3664 = vpop.f32.mrb[0].mxu0
        %v3665 = vpop.f32.mrb[0].mxu0
        %v3666 = vadd.f32 %v3494, %v3665
        %v3667 = vpop.f32.mrb[0].mxu0
        %3668 = vmatprep.mubr.bf16.mxu0 0
        %3669 = vmatmul.mubr.bf16.gmra.mrb[0].mxu0 %v3559
        %v3670 = vpop.f32.mrb[0].mxu0
        %v3671 = vadd.f32 %v3495, %v3670
        %v3672 = vpop.f32.mrb[0].mxu0
        %v3673 = vpop.f32.mrb[0].mxu0
        %v3674 = vadd.f32 %v3496, %v3673
        %v3675 = vpop.f32.mrb[0].mxu0
        %3676 = vmatprep.mubr.bf16.mxu0 0
        %3677 = vmatmul.mubr.bf16.gmra.mrb[0].mxu0 %v3562
        %v3678 = vpop.f32.mrb[0].mxu0
        %v3679 = vadd.f32 %v3497, %v3678
        %v3680 = vpop.f32.mrb[0].mxu0
        %v3681 = vpop.f32.mrb[0].mxu0
        %v3682 = vadd.f32 %v3498, %v3681
        %v3683 = vpop.f32.mrb[0].mxu0
        %3684 = vmatprep.mubr.bf16.mxu0 0
        %3685 = vmatmul.mubr.bf16.gmra.mrb[0].mxu0 %v3565
        %v3686 = vpop.f32.mrb[0].mxu0
        %v3687 = vadd.f32 %v3499, %v3686
        %v3688 = vpop.f32.mrb[0].mxu0
        %v3689 = vpop.f32.mrb[0].mxu0
        %v3690 = vadd.f32 %v3500, %v3689
        %v3691 = vpop.f32.mrb[0].mxu0
        %3692 = vmatprep.mubr.bf16.mxu0 0
        %3693 = vmatmul.mubr.bf16.gmra.mrb[0].mxu0 %v3568
        %v3694 = vpop.f32.mrb[0].mxu0
        %v3695 = vadd.f32 %v3501, %v3694
        %v3696 = vpop.f32.mrb[0].mxu0
        %v3697 = vpop.f32.mrb[0].mxu0
        %v3698 = vadd.f32 %v3502, %v3697
        %v3699 = vpop.f32.mrb[0].mxu0
        %3700 = vmatprep.mubr.bf16.mxu0 0
        %3701 = vmatmul.mubr.bf16.gmra.mrb[0].mxu0 %v3571
        %v3702 = vpop.f32.mrb[0].mxu0
        %v3703 = vadd.f32 %v3503, %v3702
        %v3704 = vpop.f32.mrb[0].mxu0
        %v3705 = vpop.f32.mrb[0].mxu0
        %v3706 = vadd.f32 %v3504, %v3705
        %v3707 = vpop.f32.mrb[0].mxu0
        %3708 = vmatprep.mubr.bf16.mxu0 0
        %3709 = vmatmul.mubr.bf16.gmra.mrb[0].mxu0 %v3574
        %v3710 = vpop.f32.mrb[0].mxu0
        %v3711 = vadd.f32 %v3505, %v3710
        %v3712 = vpop.f32.mrb[0].mxu0
        %v3713 = vpop.f32.mrb[0].mxu0
        %v3714 = vadd.f32 %v3506, %v3713
        %v3715 = vpop.f32.mrb[0].mxu0
        %3716 = vmatprep.mubr.bf16.mxu0 0
        %3717 = vmatmul.mubr.bf16.gmra.mrb[0].mxu0 %v3577
        %v3718 = vpop.f32.mrb[0].mxu0
        %v3719 = vadd.f32 %v3507, %v3718
        %v3720 = vpop.f32.mrb[0].mxu0
        %v3721 = vpop.f32.mrb[0].mxu0
        %v3722 = vadd.f32 %v3508, %v3721
        %v3723 = vpop.f32.mrb[0].mxu0
        %3724 = vmatprep.mubr.bf16.mxu0 0
        %3725 = vmatmul.mubr.bf16.gmra.mrb[0].mxu0 %v3580
        %v3726 = vpop.f32.mrb[0].mxu0
        %v3727 = vadd.f32 %v3509, %v3726
        %v3728 = vpop.f32.mrb[0].mxu0
        %v3729 = vpop.f32.mrb[0].mxu0
        %v3730 = vadd.f32 %v3510, %v3729
        %v3731 = vpop.f32.mrb[0].mxu0
        %3732 = vmatprep.mubr.bf16.mxu0 0
        %3733 = vmatmul.mubr.bf16.gmra.mrb[0].mxu0 %v3583
        %v3734 = vpop.f32.mrb[0].mxu0
        %v3735 = vadd.f32 %v3511, %v3734
        %v3736 = vpop.f32.mrb[0].mxu0
        %v3737 = vpop.f32.mrb[0].mxu0
        %v3738 = vadd.f32 %v3512, %v3737
        %v3739 = vpop.f32.mrb[0].mxu0
        %3740 = vmatprep.mubr.bf16.mxu0 0
        %3741 = vmatmul.mubr.bf16.gmra.mrb[0].mxu0 %v3586
        %v3742 = vpop.f32.mrb[0].mxu0
        %v3743 = vadd.f32 %v3513, %v3742
        %v3744 = vpop.f32.mrb[0].mxu0
        %v3745 = vpop.f32.mrb[0].mxu0
        %v3746 = vadd.f32 %v3514, %v3745
        %v3747 = vpop.f32.mrb[0].mxu0
        %3748 = vdwg.mxu0
        %v3749 = vld [vmem:[%s15] sm:$0x1]
        %v3751 = vlaneseq
        %v3752 = vshrl.u32 %v3751, 7
        %v3753 = vsub.s32 0, %v3752
        %v3754 = vrot.slane %v3749, %v3753
        %v3756 = vmul.f32 %v3623, %v3754
        %v3757 = vmul.f32 %v3626, %v3754
        %v3758 = vmul.f32 %v3631, %v3754
        %v3759 = vmul.f32 %v3634, %v3754
        %v3760 = vmul.f32 %v3639, %v3754
        %v3761 = vmul.f32 %v3642, %v3754
        %v3762 = vmul.f32 %v3647, %v3754
        %v3763 = vmul.f32 %v3650, %v3754
        %v3764 = vmul.f32 %v3655, %v3754
        %v3765 = vmul.f32 %v3658, %v3754
        %v3766 = vmul.f32 %v3663, %v3754
        %v3767 = vmul.f32 %v3666, %v3754
        %v3768 = vmul.f32 %v3671, %v3754
        %v3769 = vmul.f32 %v3674, %v3754
        %v3770 = vmul.f32 %v3679, %v3754
        %v3771 = vmul.f32 %v3682, %v3754
        %v3772 = vmul.f32 %v3687, %v3754
        %v3773 = vmul.f32 %v3690, %v3754
        %v3774 = vmul.f32 %v3695, %v3754
        %v3775 = vmul.f32 %v3698, %v3754
        %v3776 = vmul.f32 %v3703, %v3754
        %v3777 = vmul.f32 %v3706, %v3754
        %v3778 = vmul.f32 %v3711, %v3754
        %v3779 = vmul.f32 %v3714, %v3754
        %v3780 = vmul.f32 %v3719, %v3754
        %v3781 = vmul.f32 %v3722, %v3754
        %v3782 = vmul.f32 %v3727, %v3754
        %v3783 = vmul.f32 %v3730, %v3754
        %v3784 = vmul.f32 %v3735, %v3754
        %v3785 = vmul.f32 %v3738, %v3754
        %v3786 = vmul.f32 %v3743, %v3754
        %v3787 = vmul.f32 %v3746, %v3754
        %v3788 = vld [vmem:[%s16] sm:$0x1]
        %v3790 = vlaneseq
        %v3791 = vshrl.u32 %v3790, 7
        %v3792 = vsub.s32 0, %v3791
        %v3793 = vrot.slane %v3788, %v3792
        %v3795 = vadd.f32 %v3756, %v3793
        %v3796 = vadd.f32 %v3757, %v3793
        %v3797 = vadd.f32 %v3758, %v3793
        %v3798 = vadd.f32 %v3759, %v3793
        %v3799 = vadd.f32 %v3760, %v3793
        %v3800 = vadd.f32 %v3761, %v3793
        %v3801 = vadd.f32 %v3762, %v3793
        %v3802 = vadd.f32 %v3763, %v3793
        %v3803 = vadd.f32 %v3764, %v3793
        %v3804 = vadd.f32 %v3765, %v3793
        %v3805 = vadd.f32 %v3766, %v3793
        %v3806 = vadd.f32 %v3767, %v3793
        %v3807 = vadd.f32 %v3768, %v3793
        %v3808 = vadd.f32 %v3769, %v3793
        %v3809 = vadd.f32 %v3770, %v3793
        %v3810 = vadd.f32 %v3771, %v3793
        %v3811 = vadd.f32 %v3772, %v3793
        %v3812 = vadd.f32 %v3773, %v3793
        %v3813 = vadd.f32 %v3774, %v3793
        %v3814 = vadd.f32 %v3775, %v3793
        %v3815 = vadd.f32 %v3776, %v3793
        %v3816 = vadd.f32 %v3777, %v3793
        %v3817 = vadd.f32 %v3778, %v3793
        %v3818 = vadd.f32 %v3779, %v3793
        %v3819 = vadd.f32 %v3780, %v3793
        %v3820 = vadd.f32 %v3781, %v3793
        %v3821 = vadd.f32 %v3782, %v3793
        %v3822 = vadd.f32 %v3783, %v3793
        %v3823 = vadd.f32 %v3784, %v3793
        %v3824 = vadd.f32 %v3785, %v3793
        %v3825 = vadd.f32 %v3786, %v3793
        %v3826 = vadd.f32 %v3787, %v3793
        %v3827 = vmax.f32 %v3795, 0.0
        %v3828 = vmax.f32 %v3796, 0.0
        %v3829 = vmax.f32 %v3797, 0.0
        %v3830 = vmax.f32 %v3798, 0.0
        %v3831 = vmax.f32 %v3799, 0.0
        %v3832 = vmax.f32 %v3800, 0.0
        %v3833 = vmax.f32 %v3801, 0.0
        %v3834 = vmax.f32 %v3802, 0.0
        %v3835 = vmax.f32 %v3803, 0.0
        %v3836 = vmax.f32 %v3804, 0.0
        %v3837 = vmax.f32 %v3805, 0.0
        %v3838 = vmax.f32 %v3806, 0.0
        %v3839 = vmax.f32 %v3807, 0.0
        %v3840 = vmax.f32 %v3808, 0.0
        %v3841 = vmax.f32 %v3809, 0.0
        %v3842 = vmax.f32 %v3810, 0.0
        %v3843 = vmax.f32 %v3811, 0.0
        %v3844 = vmax.f32 %v3812, 0.0
        %v3845 = vmax.f32 %v3813, 0.0
        %v3846 = vmax.f32 %v3814, 0.0
        %v3847 = vmax.f32 %v3815, 0.0
        %v3848 = vmax.f32 %v3816, 0.0
        %v3849 = vmax.f32 %v3817, 0.0
        %v3850 = vmax.f32 %v3818, 0.0
        %v3851 = vmax.f32 %v3819, 0.0
        %v3852 = vmax.f32 %v3820, 0.0
        %v3853 = vmax.f32 %v3821, 0.0
        %v3854 = vmax.f32 %v3822, 0.0
        %v3855 = vmax.f32 %v3823, 0.0
        %v3856 = vmax.f32 %v3824, 0.0
        %v3857 = vmax.f32 %v3825, 0.0
        %v3858 = vmax.f32 %v3826, 0.0
        %3859 = vst [vmem:[%s650] sm:$0xff] %v3827
        %3860 = vst [vmem:[%s650 + $0x8] sm:$0xff] %v3828
        %3861 = vst [vmem:[%s650 + $0x10] sm:$0xff] %v3829
        %3862 = vst [vmem:[%s650 + $0x18] sm:$0xff] %v3830
        %3863 = vst [vmem:[%s650 + $0x20] sm:$0xff] %v3831
        %3864 = vst [vmem:[%s650 + $0x28] sm:$0xff] %v3832
        %3865 = vst [vmem:[%s650 + $0x30] sm:$0xff] %v3833
        %3866 = vst [vmem:[%s650 + $0x38] sm:$0xff] %v3834
        %3867 = vst [vmem:[%s650 + $0x40] sm:$0xff] %v3835
        %3868 = vst [vmem:[%s650 + $0x48] sm:$0xff] %v3836
        %3869 = vst [vmem:[%s650 + $0x50] sm:$0xff] %v3837
        %3870 = vst [vmem:[%s650 + $0x58] sm:$0xff] %v3838
        %3871 = vst [vmem:[%s650 + $0x60] sm:$0xff] %v3839
        %3872 = vst [vmem:[%s650 + $0x68] sm:$0xff] %v3840
        %3873 = vst [vmem:[%s650 + $0x70] sm:$0xff] %v3841
        %3874 = vst [vmem:[%s650 + $0x78] sm:$0xff] %v3842
        %3875 = vst [vmem:[%s650 + $0x80] sm:$0xff] %v3843
        %3876 = vst [vmem:[%s650 + $0x88] sm:$0xff] %v3844
        %3877 = vst [vmem:[%s650 + $0x90] sm:$0xff] %v3845
        %3878 = vst [vmem:[%s650 + $0x98] sm:$0xff] %v3846
        %3879 = vst [vmem:[%s650 + $0xa0] sm:$0xff] %v3847
        %3880 = vst [vmem:[%s650 + $0xa8] sm:$0xff] %v3848
        %3881 = vst [vmem:[%s650 + $0xb0] sm:$0xff] %v3849
        %3882 = vst [vmem:[%s650 + $0xb8] sm:$0xff] %v3850
        %3883 = vst [vmem:[%s650 + $0xc0] sm:$0xff] %v3851
        %3884 = vst [vmem:[%s650 + $0xc8] sm:$0xff] %v3852
        %3885 = vst [vmem:[%s650 + $0xd0] sm:$0xff] %v3853
        %3886 = vst [vmem:[%s650 + $0xd8] sm:$0xff] %v3854
        %3887 = vst [vmem:[%s650 + $0xe0] sm:$0xff] %v3855
        %3888 = vst [vmem:[%s650 + $0xe8] sm:$0xff] %v3856
        %3889 = vst [vmem:[%s650 + $0xf0] sm:$0xff] %v3857
        %3890 = vst [vmem:[%s650 + $0xf8] sm:$0xff] %v3858
        %s3891 = sand.u32 %s471, 1
        %s3892 = scalar_lea.sflag [#allocation6], %s3891
        %s3893 = sand.u32 %s471, 1
        %s3894 = smul.addr %s3893, 256
        %s3895 = scalar_lea.vmem [#allocation5], %s3894
        // Predicated region
        $region101: #{_lambda_.1} parent=95 // pred_check
          %p3896 = pneg %p481
        $region102: #{_lambda_.1} parent=95 // pred_check_branch
          %3898 = sbr.rel (%p3896) target = $region104
        $region103: #{_lambda_.1} parent=95 // pred_region
          %s3899 = smul.u32 32, %s38
          %s3901 = ssub.s32 4096, 4096
          %3902 = vsyncadd %s3892, %s3901
          %s3903 = smul.addr %s37, 32
          %s3904 = sadd.s32 %s3899, %s3903
          %s3905 = smul.addr %s3904, 128
          %s3906 = scalar_lea.hbm %s19, %s3905
          %s3907 = sshll.u32 %s3895, 4
          %s3908 = int_to_ptr.vmem [resolvable:$true] %s3907
          %3913 = dma.vmem_to_hbm [thread:$0]  %s3908, 4096, %s3906, %s3892, 128, 128, 8
        $region104: #{_lambda_.1} parent=95 // pred_fallthru
          _
      $region96: #{_lambda_.1} parent=5 // pred_fallthru
        _
      %p3914 = scmp.le.s32.totalorder 2, %s28
      // Predicated region
      $region105: #{_lambda_.1} parent=5 // pred_check
        %p3915 = pneg %p3914
      $region106: #{_lambda_.1} parent=5 // pred_check_branch
        %3917 = sbr.rel (%p3915) target = $region108
      $region107: #{_lambda_.1} parent=5 // pred_region
        %s3918 = ssub.s32 %s28, 2
        // Predicated region
        $region109: #{_lambda_.1} parent=107 // pred_check
          %p3919 = pneg %p487
        $region110: #{_lambda_.1} parent=107 // pred_check_branch
          %3921 = sbr.rel (%p3919) target = $region112
        $region111: #{_lambda_.1} parent=107 // pred_region
          %s3922 = sand.u32 %s472, 1
          %s3923 = scalar_lea.sflag [#allocation6], %s3922
          %s3924 = sand.u32 %s472, 1
          %s3925 = smul.addr %s3924, 256
          %s3926 = scalar_lea.vmem [#allocation5], %s3925
          %3927 = dma.done %s3923, 4096
        $region112: #{_lambda_.1} parent=107 // pred_fallthru
          _
      $region108: #{_lambda_.1} parent=5 // pred_fallthru
        _
    $region6: #{_lambda_.1} parent=1 // loop_footer
      %s32 = sadd.s32 1, %s28
    $region7: #{_lambda_.1} parent=1 // loop_footer_branch
      %27 = sbr.rel target = $region3
    $region8: #{_lambda_.1} parent=1 // loop_exit
      _
    %3928 = vsyncpa [#allocation6], 1
    %s3929 = scalar_lea.sflag [#allocation6], 1
    %3930 = vsyncpa %s3929, 1

</llo_original>
